<compile_context>
chip_gen: v6e
topology: v6e:2x2x1
jax: 0.10.0
libtpu: 0.0.40
codegen_flags: <defaults>
</compile_context>

<pallas_src>
import functools
import math

import jax
import jax.numpy as jnp
from jax import lax
from jax.experimental import pallas as pl
from jax.experimental.pallas import tpu as pltpu


# ----------------------------------------------------------------------------
# small helpers
# ----------------------------------------------------------------------------
def _pick_tile(dim, target, aligns):
    """Largest tile <= target that divides `dim` and is aligned to one of `aligns`
    (tried in order); else the full dim."""
    if dim <= target:
        return dim
    for align in aligns:
        t = (target // align) * align
        while t >= align:
            if dim % t == 0:
                return t
            t -= align
    # TODO(synk): full-dim fallback can blow VMEM for huge awkward shapes; fine here.
    return dim


def _bf16(x):
    return x if x.dtype == jnp.bfloat16 else x.astype(jnp.bfloat16)


def _gelu(y):
    # tanh-approx GELU.
    # TODO(synk): PyTorch nn.GELU default is the exact erf form; tanh approx differs ~1e-3.
    return 0.5 * y * (1.0 + jnp.tanh(0.7978845608028654 * (y + 0.044715 * y * y * y)))


# ----------------------------------------------------------------------------
# Pallas kernels
# ----------------------------------------------------------------------------
def _linear_kernel(x_ref, w_ref, b_ref, o_ref, acc_ref, *, activation, nk):
    """Tiled matmul with f32 accumulator; bf16 MXU operands."""
    @pl.when(pl.program_id(2) == 0)
    def _():
        acc_ref[...] = jnp.zeros_like(acc_ref)

    acc_ref[...] += jnp.dot(_bf16(x_ref[...]), _bf16(w_ref[...]),
                            preferred_element_type=jnp.float32)

    @pl.when(pl.program_id(2) == nk - 1)
    def _():
        y = acc_ref[...] + b_ref[...]
        if activation == "gelu":
            y = _gelu(y)
        o_ref[...] = y.astype(o_ref.dtype)


def linear(x, w, b, activation=None, out_dtype=jnp.bfloat16):
    """x: (M, K), w: (K, N) bf16, b: (1, N) f32 -> (M, N) out_dtype."""
    M, K = x.shape
    N = w.shape[1]
    tm = _pick_tile(M, 256, (8,))
    tn = _pick_tile(N, 512, (256, 128))     # prefer 256-multiples (v6e/v7x MXU)
    tk = _pick_tile(K, 512, (256, 128))
    nk = K // tk
    return pl.pallas_call(
        functools.partial(_linear_kernel, activation=activation, nk=nk),
        grid=(M // tm, N // tn, nk),
        in_specs=[
            pl.BlockSpec((tm, tk), lambda i, j, k: (i, k)),
            pl.BlockSpec((tk, tn), lambda i, j, k: (k, j)),
            pl.BlockSpec((1, tn), lambda i, j, k: (0, j)),
        ],
        out_specs=pl.BlockSpec((tm, tn), lambda i, j, k: (i, j)),
        out_shape=jax.ShapeDtypeStruct((M, N), out_dtype),
        scratch_shapes=[pltpu.VMEM((tm, tn), jnp.float32)],
        compiler_params=pltpu.CompilerParams(
            dimension_semantics=("parallel", "parallel", "arbitrary")),
    )(x, w, b)


def _linear_add_ln_kernel(x_ref, w_ref, b_ref, res_ref, g_ref, bln_ref, o_ref,
                          acc_ref, *, nk, eps):
    """Tiled matmul with fused (residual add + LayerNorm) epilogue.  tn == N."""
    @pl.when(pl.program_id(1) == 0)
    def _():
        acc_ref[...] = jnp.zeros_like(acc_ref)

    acc_ref[...] += jnp.dot(_bf16(x_ref[...]), _bf16(w_ref[...]),
                            preferred_element_type=jnp.float32)

    @pl.when(pl.program_id(1) == nk - 1)
    def _():
        z = acc_ref[...] + b_ref[...] + res_ref[...].astype(jnp.float32)
        mean = jnp.mean(z, axis=-1, keepdims=True)
        var = jnp.mean(jnp.square(z - mean), axis=-1, keepdims=True)
        y = (z - mean) * lax.rsqrt(var + eps)
        o_ref[...] = (y * g_ref[...] + bln_ref[...]).astype(o_ref.dtype)


def linear_add_ln(x, w, b, res, gamma, beta, eps=1e-5, out_dtype=jnp.bfloat16):
    """LayerNorm(res + x @ w + b).  x: (M, K), w: (K, N), res: (M, N)."""
    M, K = x.shape
    N = w.shape[1]
    tm = _pick_tile(M, 256, (8,))
    tk = _pick_tile(K, 512, (256, 128))
    nk = K // tk
    return pl.pallas_call(
        functools.partial(_linear_add_ln_kernel, nk=nk, eps=eps),
        grid=(M // tm, nk),
        in_specs=[
            pl.BlockSpec((tm, tk), lambda i, k: (i, k)),
            pl.BlockSpec((tk, N), lambda i, k: (k, 0)),
            pl.BlockSpec((1, N), lambda i, k: (0, 0)),
            pl.BlockSpec((tm, N), lambda i, k: (i, 0)),
            pl.BlockSpec((1, N), lambda i, k: (0, 0)),
            pl.BlockSpec((1, N), lambda i, k: (0, 0)),
        ],
        out_specs=pl.BlockSpec((tm, N), lambda i, k: (i, 0)),
        out_shape=jax.ShapeDtypeStruct((M, N), out_dtype),
        scratch_shapes=[pltpu.VMEM((tm, N), jnp.float32)],
        compiler_params=pltpu.CompilerParams(
            dimension_semantics=("parallel", "arbitrary")),
    )(x, w, b, res, gamma, beta)


def _ln_kernel(x_ref, g_ref, b_ref, o_ref, *, eps):
    x = x_ref[...].astype(jnp.float32)
    mean = jnp.mean(x, axis=-1, keepdims=True)
    var = jnp.mean(jnp.square(x - mean), axis=-1, keepdims=True)
    y = (x - mean) * lax.rsqrt(var + eps)
    o_ref[...] = (y * g_ref[...] + b_ref[...]).astype(o_ref.dtype)


def layernorm(x2d, gamma, beta, eps, out_dtype=jnp.bfloat16):
    """x2d: (M, H), gamma/beta: (1, H)."""
    M, H = x2d.shape
    tm = _pick_tile(M, 512, (8,))          # HBM-bandwidth-bound: bigger row tiles
    return pl.pallas_call(
        functools.partial(_ln_kernel, eps=eps),
        grid=(M // tm,),
        in_specs=[
            pl.BlockSpec((tm, H), lambda i: (i, 0)),
            pl.BlockSpec((1, H), lambda i: (0, 0)),
            pl.BlockSpec((1, H), lambda i: (0, 0)),
        ],
        out_specs=pl.BlockSpec((tm, H), lambda i: (i, 0)),
        out_shape=jax.ShapeDtypeStruct((M, H), out_dtype),
        compiler_params=pltpu.CompilerParams(dimension_semantics=("parallel",)),
    )(x2d, gamma, beta)


def _mha_kernel(xq_ref, xkv_ref, wq_ref, bq_ref, wkv_ref, bkv_ref, wo_ref, bo_ref,
                g_ref, bln_ref, o_ref, *rest,
                n_heads, scale, causal, return_probs, eps):
    """Fused MHA + residual + LayerNorm for one batch element.

    Q/KV projection -> per-head softmax attention -> (Sq,H) context scratch ->
    single full-width output projection -> LN(x_q + attn) epilogue.
    """
    if return_probs:
        prob_ref, ctx_ref = rest
    else:
        (ctx_ref,) = rest

    f32 = jnp.float32
    bf16 = jnp.bfloat16

    H = wq_ref.shape[0]
    Dh = H // n_heads
    xq = _bf16(xq_ref[0])       # (Sq, H)
    xkv = _bf16(xkv_ref[0])     # (Sk, H)
    Sq = xq.shape[0]
    Sk = xkv.shape[0]

    # fused projections (bf16 MXU operands, f32 accumulation); scale folded into q
    q = (jnp.dot(xq, _bf16(wq_ref[...]), preferred_element_type=f32)
         + bq_ref[...]) * scale
    kv = jnp.dot(xkv, _bf16(wkv_ref[...]), preferred_element_type=f32) + bkv_ref[...]
    k = kv[:, :H]
    v = kv[:, H:]

    if causal:
        row = lax.broadcasted_iota(jnp.int32, (Sq, Sk), 0)
        col = lax.broadcasted_iota(jnp.int32, (Sq, Sk), 1)
        neg_mask = jnp.where(col > row, jnp.float32(-1e9), jnp.float32(0.0))

    # per-head attention; contexts land in a (Sq, H) bf16 VMEM scratch
    for h in range(n_heads):
        sl = slice(h * Dh, (h + 1) * Dh)
        s = jnp.dot(q[:, sl].astype(bf16), k[:, sl].astype(bf16).T,
                    preferred_element_type=f32)
        if causal:
            s = s + neg_mask
        s = s - jnp.max(s, axis=-1, keepdims=True)
        p = jnp.exp(s)
        denom = jnp.sum(p, axis=-1, keepdims=True)
        if return_probs:
            p = p / denom                      # exact: these probs are returned
            prob_ref[0, h] = p.astype(prob_ref.dtype)
        else:
            p = p * pl.reciprocal(denom, approx=True)
        ctx_ref[:, sl] = jnp.dot(p.astype(bf16), v[:, sl].astype(bf16),
                                 preferred_element_type=f32).astype(ctx_ref.dtype)

    # single full-width output projection (contraction dim = H)
    out = jnp.dot(ctx_ref[...], _bf16(wo_ref[...]),
                  preferred_element_type=f32) + bo_ref[...]

    # fused residual add + LayerNorm epilogue
    z = xq_ref[0].astype(f32) + out
    mean = jnp.mean(z, axis=-1, keepdims=True)
    var = jnp.mean(jnp.square(z - mean), axis=-1, keepdims=True)
    y = (z - mean) * lax.rsqrt(var + eps)
    o_ref[0] = (y * g_ref[...] + bln_ref[...]).astype(o_ref.dtype)


def multi_head_attention(x_q, x_kv, p, ln_g, ln_b, n_heads, *, causal,
                         return_probs, eps=1e-5, out_dtype=jnp.bfloat16):
    """Returns LayerNorm(x_q + MHA(x_q, x_kv)); grid over batch."""
    B, Sq, H = x_q.shape
    Sk = x_kv.shape[1]
    scale = 1.0 / math.sqrt(H // n_heads)

    in_specs = [
        pl.BlockSpec((1, Sq, H), lambda b: (b, 0, 0)),
        pl.BlockSpec((1, Sk, H), lambda b: (b, 0, 0)),
        pl.BlockSpec((H, H), lambda b: (0, 0)),
        pl.BlockSpec((1, H), lambda b: (0, 0)),
        pl.BlockSpec((H, 2 * H), lambda b: (0, 0)),
        pl.BlockSpec((1, 2 * H), lambda b: (0, 0)),
        pl.BlockSpec((H, H), lambda b: (0, 0)),
        pl.BlockSpec((1, H), lambda b: (0, 0)),
        pl.BlockSpec((1, H), lambda b: (0, 0)),   # LN gamma
        pl.BlockSpec((1, H), lambda b: (0, 0)),   # LN beta
    ]
    scratch = [pltpu.VMEM((Sq, H), jnp.bfloat16)]
    if return_probs:
        out_shape = (jax.ShapeDtypeStruct((B, Sq, H), out_dtype),
                     jax.ShapeDtypeStruct((B, n_heads, Sq, Sk), jnp.float32))
        out_specs = (pl.BlockSpec((1, Sq, H), lambda b: (b, 0, 0)),
                     pl.BlockSpec((1, n_heads, Sq, Sk), lambda b: (b, 0, 0, 0)))
    else:
        out_shape = jax.ShapeDtypeStruct((B, Sq, H), out_dtype)
        out_specs = pl.BlockSpec((1, Sq, H), lambda b: (b, 0, 0))

    return pl.pallas_call(
        functools.partial(_mha_kernel, n_heads=n_heads, scale=scale,
                          causal=causal, return_probs=return_probs, eps=eps),
        grid=(B,),
        in_specs=in_specs,
        out_specs=out_specs,
        out_shape=out_shape,
        scratch_shapes=scratch,
        compiler_params=pltpu.CompilerParams(dimension_semantics=("parallel",)),
    )(x_q, x_kv, p["wq"], p["bq"], p["wkv"], p["bkv"], p["wo"], p["bo"], ln_g, ln_b)


# ----------------------------------------------------------------------------
# Model components (glue in plain JAX, hot paths in Pallas kernels above)
# ----------------------------------------------------------------------------
def feed_forward_block(x, p, ln_g, ln_b):
    """LayerNorm(x + W2 @ gelu(W1 @ x))."""
    B, S, H = x.shape
    x2d = x.reshape(B * S, H)
    h = linear(x2d, p["w1"], p["b1"], activation="gelu")
    o = linear_add_ln(h, p["w2"], p["b2"], x2d, ln_g, ln_b)
    return o.reshape(B, S, H)


def encoder_layer(x, p, n_heads):
    x = multi_head_attention(x, x, p["self_attn"], p["ln1_g"], p["ln1_b"], n_heads,
                             causal=False, return_probs=False)
    x = feed_forward_block(x, p["ffn"], p["ln2_g"], p["ln2_b"])
    return x


def decoder_layer(memory, trg, p, n_heads, return_probs):
    x = multi_head_attention(trg, trg, p["self_attn"], p["ln1_g"], p["ln1_b"], n_heads,
                             causal=True, return_probs=False)
    if return_probs:
        x, cross_attn = multi_head_attention(
            x, memory, p["cross_attn"], p["ln2_g"], p["ln2_b"], n_heads,
            causal=False, return_probs=True)
    else:
        x = multi_head_attention(
            x, memory, p["cross_attn"], p["ln2_g"], p["ln2_b"], n_heads,
            causal=False, return_probs=False)
        cross_attn = None
    x = feed_forward_block(x, p["ffn"], p["ln3_g"], p["ln3_b"])
    return x, cross_attn


def bert_embeddings(ids, p):
    # TODO(synk): embedding gather has no clean Pallas tiling at this size; done in JAX glue.
    B, S = ids.shape
    emb = p["word_emb"][ids] + p["pos_emb"][:S][None, :, :] + p["type_emb"][0][None, None, :]
    H = emb.shape[-1]
    return layernorm(emb.reshape(B * S, H), p["ln_g"], p["ln_b"],
                     eps=1e-12).reshape(B, S, H)


def nlg_bert_forward(params, src, trg, config):
    n_heads = config["n_heads"]
    n_layers = config["n_layers"]

    src_emb = bert_embeddings(src, params["embedding"])
    trg_emb = bert_embeddings(trg, params["embedding"])

    # Encoder: single layer's weights reused n_layers times (tied, as in reference)
    enc = lax.fori_loop(
        0, n_layers,
        lambda i, x: encoder_layer(x, params["enc_layer"], n_heads),
        src_emb)

    # Decoder: tied weights; only the LAST layer emits cross-attention probabilities
    dec = lax.fori_loop(
        0, n_layers - 1,
        lambda i, t: decoder_layer(enc, t, params["dec_layer"], n_heads, False)[0],
        trg_emb)
    dec, attn = decoder_layer(enc, dec, params["dec_layer"], n_heads, True)

    B, S, H = dec.shape
    out = linear(dec.reshape(B * S, H), params["fc_out_w"], params["fc_out_b"],
                 out_dtype=jnp.float32)
    out = out.reshape(B, S, -1)
    return out, attn


# ----------------------------------------------------------------------------
# Deterministic parameter initialization (projection weights stored bf16 in HBM)
# ----------------------------------------------------------------------------
def _init_lin(key, k_in, k_out, scale=0.02):
    w = (scale * jax.random.normal(key, (k_in, k_out), jnp.float32)).astype(jnp.bfloat16)
    return w, jnp.zeros((1, k_out), jnp.float32)


def init_params(key, config):
    H, F = config["hidden_dim"], config["ffn_dim"]
    V, O = config["input_dim"], config["output_dim"]
    max_pos = config["max_pos"]
    keys = iter(jax.random.split(key, 64))

    def attn_block():
        wq, bq = _init_lin(next(keys), H, H)
        wkv, bkv = _init_lin(next(keys), H, 2 * H)     # fused K|V projection
        wo, bo = _init_lin(next(keys), H, H)
        return dict(wq=wq, bq=bq, wkv=wkv, bkv=bkv, wo=wo, bo=bo)

    def ffn_block():
        w1, b1 = _init_lin(next(keys), H, F)
        w2, b2 = _init_lin(next(keys), F, H)
        return dict(w1=w1, b1=b1, w2=w2, b2=b2)

    ones = jnp.ones((1, H), jnp.float32)
    zeros = jnp.zeros((1, H), jnp.float32)

    embedding = dict(
        word_emb=0.02 * jax.random.normal(next(keys), (V, H), jnp.float32),
        pos_emb=0.02 * jax.random.normal(next(keys), (max_pos, H), jnp.float32),
        type_emb=0.02 * jax.random.normal(next(keys), (2, H), jnp.float32),
        ln_g=ones, ln_b=zeros,
    )
    enc_layer = dict(self_attn=attn_block(), ffn=ffn_block(),
                     ln1_g=ones, ln1_b=zeros, ln2_g=ones, ln2_b=zeros)
    dec_layer = dict(self_attn=attn_block(), cross_attn=attn_block(), ffn=ffn_block(),
                     ln1_g=ones, ln1_b=zeros, ln2_g=ones, ln2_b=zeros,
                     ln3_g=ones, ln3_b=zeros)
    fc_w, fc_b = _init_lin(next(keys), H, O)
    return dict(embedding=embedding, enc_layer=enc_layer, dec_layer=dec_layer,
                fc_out_w=fc_w, fc_out_b=fc_b)


# ----------------------------------------------------------------------------
if __name__ == "__main__":
    config = dict(
        input_dim=100,    # vocab size (after resize_token_embeddings)
        output_dim=50,
        hidden_dim=32,
        ffn_dim=64,
        n_heads=4,
        n_layers=2,
        max_pos=16,
    )
    key = jax.random.PRNGKey(0)
    k_param, k_src, k_trg = jax.random.split(key, 3)

    params = init_params(k_param, config)

    B, S_src, S_trg = 2, 8, 8
    src = jax.random.randint(k_src, (B, S_src), 0, config["input_dim"], dtype=jnp.int32)
    trg = jax.random.randint(k_trg, (B, S_trg), 0, config["input_dim"], dtype=jnp.int32)

    fwd = jax.jit(functools.partial(nlg_bert_forward, config=config))
    out, attn = fwd(params, src, trg)
    jax.block_until_ready((out, attn))

    assert out.shape == (B, S_trg, config["output_dim"])
    assert attn.shape == (B, config["n_heads"], S_trg, S_src)
    assert bool(jnp.all(jnp.isfinite(out)))
    assert bool(jnp.all(jnp.isfinite(attn)))
    print("KERNEL_OK")
</pallas_src>

<mosaic_0001>
module attributes {stable_mosaic.version = 11 : i64} {
  func.func @_mha_kernel(%arg0: i32, %arg1: memref<1x8x32xbf16, #tpu.memory_space<vmem>>, %arg2: memref<1x8x32xbf16, #tpu.memory_space<vmem>>, %arg3: memref<32x32xbf16, #tpu.memory_space<vmem>>, %arg4: memref<1x32xf32, #tpu.memory_space<vmem>>, %arg5: memref<32x64xbf16, #tpu.memory_space<vmem>>, %arg6: memref<1x64xf32, #tpu.memory_space<vmem>>, %arg7: memref<32x32xbf16, #tpu.memory_space<vmem>>, %arg8: memref<1x32xf32, #tpu.memory_space<vmem>>, %arg9: memref<1x32xf32, #tpu.memory_space<vmem>>, %arg10: memref<1x32xf32, #tpu.memory_space<vmem>>, %arg11: memref<1x8x32xbf16, #tpu.memory_space<vmem>>, %arg12: memref<8x32xbf16, #tpu.memory_space<vmem>>) attributes {dimension_semantics = [#tpu.dimension_semantics<parallel>], iteration_bounds = array<i64: 2>, scalar_prefetch = 0 : i64, scratch_operands = 1 : i64, tpu.core_type = #tpu.core_type<tc>, window_params = [{transform_indices = @transform_0, window_bounds = array<i64: 1, 8, 32>}, {transform_indices = @transform_1, window_bounds = array<i64: 1, 8, 32>}, {pipeline_mode = #tpu.pipeline_mode<synchronous>, transform_indices = @transform_2, window_bounds = array<i64: 32, 32>}, {pipeline_mode = #tpu.pipeline_mode<synchronous>, transform_indices = @transform_3, window_bounds = array<i64: 1, 32>}, {pipeline_mode = #tpu.pipeline_mode<synchronous>, transform_indices = @transform_4, window_bounds = array<i64: 32, 64>}, {pipeline_mode = #tpu.pipeline_mode<synchronous>, transform_indices = @transform_5, window_bounds = array<i64: 1, 64>}, {pipeline_mode = #tpu.pipeline_mode<synchronous>, transform_indices = @transform_6, window_bounds = array<i64: 32, 32>}, {pipeline_mode = #tpu.pipeline_mode<synchronous>, transform_indices = @transform_7, window_bounds = array<i64: 1, 32>}, {pipeline_mode = #tpu.pipeline_mode<synchronous>, transform_indices = @transform_8, window_bounds = array<i64: 1, 32>}, {pipeline_mode = #tpu.pipeline_mode<synchronous>, transform_indices = @transform_9, window_bounds = array<i64: 1, 32>}, {transform_indices = @transform_10, window_bounds = array<i64: 1, 8, 32>}]} {
    %c0 = arith.constant 0 : index
    %c0_0 = arith.constant 0 : index
    %c0_1 = arith.constant 0 : index
    %0 = vector.load %arg1[%c0, %c0_0, %c0_1] : memref<1x8x32xbf16, #tpu.memory_space<vmem>>, vector<1x8x32xbf16>
    %1 = vector.shape_cast %0 : vector<1x8x32xbf16> to vector<8x32xbf16>
    %c0_2 = arith.constant 0 : index
    %c0_3 = arith.constant 0 : index
    %c0_4 = arith.constant 0 : index
    %2 = vector.load %arg2[%c0_2, %c0_3, %c0_4] : memref<1x8x32xbf16, #tpu.memory_space<vmem>>, vector<1x8x32xbf16>
    %3 = vector.shape_cast %2 : vector<1x8x32xbf16> to vector<8x32xbf16>
    %c0_5 = arith.constant 0 : index
    %c0_6 = arith.constant 0 : index
    %4 = vector.load %arg3[%c0_5, %c0_6] : memref<32x32xbf16, #tpu.memory_space<vmem>>, vector<32x32xbf16>
    %cst = arith.constant dense<0.000000e+00> : vector<8x32xf32>
    %5 = tpu.matmul %1, %4, %cst {dimension_numbers = #tpu.dot_dimension_numbers<[1], [0], [0], [1], [0, 0, 1, 1], [], []>} : vector<8x32xbf16>, vector<32x32xbf16>, vector<8x32xf32> -> vector<8x32xf32>
    %c0_7 = arith.constant 0 : index
    %c0_8 = arith.constant 0 : index
    %6 = vector.load %arg4[%c0_7, %c0_8] : memref<1x32xf32, #tpu.memory_space<vmem>>, vector<1x32xf32>
    %7 = vector.broadcast %6 : vector<1x32xf32> to vector<8x32xf32>
    %8 = arith.addf %5, %7 : vector<8x32xf32>
    %cst_9 = arith.constant 0.353553385 : f32
    %9 = vector.broadcast %cst_9 : f32 to vector<8x32xf32>
    %10 = arith.mulf %8, %9 : vector<8x32xf32>
    %c0_10 = arith.constant 0 : index
    %c0_11 = arith.constant 0 : index
    %11 = vector.load %arg5[%c0_10, %c0_11] : memref<32x64xbf16, #tpu.memory_space<vmem>>, vector<32x64xbf16>
    %cst_12 = arith.constant dense<0.000000e+00> : vector<8x64xf32>
    %12 = tpu.matmul %3, %11, %cst_12 {dimension_numbers = #tpu.dot_dimension_numbers<[1], [0], [0], [1], [0, 0, 1, 1], [], []>} : vector<8x32xbf16>, vector<32x64xbf16>, vector<8x64xf32> -> vector<8x64xf32>
    %c0_13 = arith.constant 0 : index
    %c0_14 = arith.constant 0 : index
    %13 = vector.load %arg6[%c0_13, %c0_14] : memref<1x64xf32, #tpu.memory_space<vmem>>, vector<1x64xf32>
    %14 = vector.broadcast %13 : vector<1x64xf32> to vector<8x64xf32>
    %15 = arith.addf %12, %14 : vector<8x64xf32>
    %16 = vector.extract_strided_slice %15 {offsets = [0, 0], sizes = [8, 32], strides = [1, 1]} : vector<8x64xf32> to vector<8x32xf32>
    %17 = vector.extract_strided_slice %15 {offsets = [0, 32], sizes = [8, 32], strides = [1, 1]} : vector<8x64xf32> to vector<8x32xf32>
    %18 = vector.extract_strided_slice %10 {offsets = [0, 0], sizes = [8, 8], strides = [1, 1]} : vector<8x32xf32> to vector<8x8xf32>
    %19 = arith.truncf %18 : vector<8x8xf32> to vector<8x8xbf16>
    %20 = vector.extract_strided_slice %16 {offsets = [0, 0], sizes = [8, 8], strides = [1, 1]} : vector<8x32xf32> to vector<8x8xf32>
    %21 = arith.truncf %20 : vector<8x8xf32> to vector<8x8xbf16>
    %22 = tpu.transpose %21, [1, 0] : vector<8x8xbf16> -> vector<8x8xbf16>
    %cst_15 = arith.constant dense<0.000000e+00> : vector<8x8xf32>
    %23 = tpu.matmul %19, %22, %cst_15 {dimension_numbers = #tpu.dot_dimension_numbers<[1], [0], [0], [1], [0, 0, 1, 1], [], []>} : vector<8x8xbf16>, vector<8x8xbf16>, vector<8x8xf32> -> vector<8x8xf32>
    %cst_16 = arith.constant dense<0xFF800000> : vector<8xf32>
    %24 = vector.multi_reduction <maximumf>, %23, %cst_16 [1] : vector<8x8xf32> to vector<8xf32>
    %25 = vector.shape_cast %24 : vector<8xf32> to vector<8x1xf32>
    %26 = vector.broadcast %25 : vector<8x1xf32> to vector<8x8xf32>
    %27 = arith.subf %23, %26 : vector<8x8xf32>
    %28 = math.exp %27 : vector<8x8xf32>
    %cst_17 = arith.constant dense<0.000000e+00> : vector<8xf32>
    %29 = vector.multi_reduction <add>, %28, %cst_17 [1] : vector<8x8xf32> to vector<8xf32>
    %30 = vector.shape_cast %29 : vector<8xf32> to vector<8x1xf32>
    %31 = tpu.reciprocal %30 {approx = true} : vector<8x1xf32> -> vector<8x1xf32>
    %32 = vector.broadcast %31 : vector<8x1xf32> to vector<8x8xf32>
    %33 = arith.mulf %28, %32 : vector<8x8xf32>
    %34 = arith.truncf %33 : vector<8x8xf32> to vector<8x8xbf16>
    %35 = vector.extract_strided_slice %17 {offsets = [0, 0], sizes = [8, 8], strides = [1, 1]} : vector<8x32xf32> to vector<8x8xf32>
    %36 = arith.truncf %35 : vector<8x8xf32> to vector<8x8xbf16>
    %cst_18 = arith.constant dense<0.000000e+00> : vector<8x8xf32>
    %37 = tpu.matmul %34, %36, %cst_18 {dimension_numbers = #tpu.dot_dimension_numbers<[1], [0], [0], [1], [0, 0, 1, 1], [], []>} : vector<8x8xbf16>, vector<8x8xbf16>, vector<8x8xf32> -> vector<8x8xf32>
    %38 = arith.truncf %37 : vector<8x8xf32> to vector<8x8xbf16>
    %c0_19 = arith.constant 0 : index
    %c0_20 = arith.constant 0 : index
    %39 = vector.load %arg12[%c0_19, %c0_20] : memref<8x32xbf16, #tpu.memory_space<vmem>>, vector<8x8xbf16>
    tpu.vector_store %arg12[%c0_19, %c0_20], %38 {strides = array<i32>} : memref<8x32xbf16, #tpu.memory_space<vmem>>, vector<8x8xbf16>,
    %40 = vector.extract_strided_slice %10 {offsets = [0, 8], sizes = [8, 8], strides = [1, 1]} : vector<8x32xf32> to vector<8x8xf32>
    %41 = arith.truncf %40 : vector<8x8xf32> to vector<8x8xbf16>
    %42 = vector.extract_strided_slice %16 {offsets = [0, 8], sizes = [8, 8], strides = [1, 1]} : vector<8x32xf32> to vector<8x8xf32>
    %43 = arith.truncf %42 : vector<8x8xf32> to vector<8x8xbf16>
    %44 = tpu.transpose %43, [1, 0] : vector<8x8xbf16> -> vector<8x8xbf16>
    %cst_21 = arith.constant dense<0.000000e+00> : vector<8x8xf32>
    %45 = tpu.matmul %41, %44, %cst_21 {dimension_numbers = #tpu.dot_dimension_numbers<[1], [0], [0], [1], [0, 0, 1, 1], [], []>} : vector<8x8xbf16>, vector<8x8xbf16>, vector<8x8xf32> -> vector<8x8xf32>
    %cst_22 = arith.constant dense<0xFF800000> : vector<8xf32>
    %46 = vector.multi_reduction <maximumf>, %45, %cst_22 [1] : vector<8x8xf32> to vector<8xf32>
    %47 = vector.shape_cast %46 : vector<8xf32> to vector<8x1xf32>
    %48 = vector.broadcast %47 : vector<8x1xf32> to vector<8x8xf32>
    %49 = arith.subf %45, %48 : vector<8x8xf32>
    %50 = math.exp %49 : vector<8x8xf32>
    %cst_23 = arith.constant dense<0.000000e+00> : vector<8xf32>
    %51 = vector.multi_reduction <add>, %50, %cst_23 [1] : vector<8x8xf32> to vector<8xf32>
    %52 = vector.shape_cast %51 : vector<8xf32> to vector<8x1xf32>
    %53 = tpu.reciprocal %52 {approx = true} : vector<8x1xf32> -> vector<8x1xf32>
    %54 = vector.broadcast %53 : vector<8x1xf32> to vector<8x8xf32>
    %55 = arith.mulf %50, %54 : vector<8x8xf32>
    %56 = arith.truncf %55 : vector<8x8xf32> to vector<8x8xbf16>
    %57 = vector.extract_strided_slice %17 {offsets = [0, 8], sizes = [8, 8], strides = [1, 1]} : vector<8x32xf32> to vector<8x8xf32>
    %58 = arith.truncf %57 : vector<8x8xf32> to vector<8x8xbf16>
    %cst_24 = arith.constant dense<0.000000e+00> : vector<8x8xf32>
    %59 = tpu.matmul %56, %58, %cst_24 {dimension_numbers = #tpu.dot_dimension_numbers<[1], [0], [0], [1], [0, 0, 1, 1], [], []>} : vector<8x8xbf16>, vector<8x8xbf16>, vector<8x8xf32> -> vector<8x8xf32>
    %60 = arith.truncf %59 : vector<8x8xf32> to vector<8x8xbf16>
    %c0_25 = arith.constant 0 : index
    %c8 = arith.constant 8 : index
    %61 = vector.load %arg12[%c0_25, %c8] : memref<8x32xbf16, #tpu.memory_space<vmem>>, vector<8x8xbf16>
    tpu.vector_store %arg12[%c0_25, %c8], %60 {strides = array<i32>} : memref<8x32xbf16, #tpu.memory_space<vmem>>, vector<8x8xbf16>,
    %62 = vector.extract_strided_slice %10 {offsets = [0, 16], sizes = [8, 8], strides = [1, 1]} : vector<8x32xf32> to vector<8x8xf32>
    %63 = arith.truncf %62 : vector<8x8xf32> to vector<8x8xbf16>
    %64 = vector.extract_strided_slice %16 {offsets = [0, 16], sizes = [8, 8], strides = [1, 1]} : vector<8x32xf32> to vector<8x8xf32>
    %65 = arith.truncf %64 : vector<8x8xf32> to vector<8x8xbf16>
    %66 = tpu.transpose %65, [1, 0] : vector<8x8xbf16> -> vector<8x8xbf16>
    %cst_26 = arith.constant dense<0.000000e+00> : vector<8x8xf32>
    %67 = tpu.matmul %63, %66, %cst_26 {dimension_numbers = #tpu.dot_dimension_numbers<[1], [0], [0], [1], [0, 0, 1, 1], [], []>} : vector<8x8xbf16>, vector<8x8xbf16>, vector<8x8xf32> -> vector<8x8xf32>
    %cst_27 = arith.constant dense<0xFF800000> : vector<8xf32>
    %68 = vector.multi_reduction <maximumf>, %67, %cst_27 [1] : vector<8x8xf32> to vector<8xf32>
    %69 = vector.shape_cast %68 : vector<8xf32> to vector<8x1xf32>
    %70 = vector.broadcast %69 : vector<8x1xf32> to vector<8x8xf32>
    %71 = arith.subf %67, %70 : vector<8x8xf32>
    %72 = math.exp %71 : vector<8x8xf32>
    %cst_28 = arith.constant dense<0.000000e+00> : vector<8xf32>
    %73 = vector.multi_reduction <add>, %72, %cst_28 [1] : vector<8x8xf32> to vector<8xf32>
    %74 = vector.shape_cast %73 : vector<8xf32> to vector<8x1xf32>
    %75 = tpu.reciprocal %74 {approx = true} : vector<8x1xf32> -> vector<8x1xf32>
    %76 = vector.broadcast %75 : vector<8x1xf32> to vector<8x8xf32>
    %77 = arith.mulf %72, %76 : vector<8x8xf32>
    %78 = arith.truncf %77 : vector<8x8xf32> to vector<8x8xbf16>
    %79 = vector.extract_strided_slice %17 {offsets = [0, 16], sizes = [8, 8], strides = [1, 1]} : vector<8x32xf32> to vector<8x8xf32>
    %80 = arith.truncf %79 : vector<8x8xf32> to vector<8x8xbf16>
    %cst_29 = arith.constant dense<0.000000e+00> : vector<8x8xf32>
    %81 = tpu.matmul %78, %80, %cst_29 {dimension_numbers = #tpu.dot_dimension_numbers<[1], [0], [0], [1], [0, 0, 1, 1], [], []>} : vector<8x8xbf16>, vector<8x8xbf16>, vector<8x8xf32> -> vector<8x8xf32>
    %82 = arith.truncf %81 : vector<8x8xf32> to vector<8x8xbf16>
    %c0_30 = arith.constant 0 : index
    %c16 = arith.constant 16 : index
    %83 = vector.load %arg12[%c0_30, %c16] : memref<8x32xbf16, #tpu.memory_space<vmem>>, vector<8x8xbf16>
    tpu.vector_store %arg12[%c0_30, %c16], %82 {strides = array<i32>} : memref<8x32xbf16, #tpu.memory_space<vmem>>, vector<8x8xbf16>,
    %84 = vector.extract_strided_slice %10 {offsets = [0, 24], sizes = [8, 8], strides = [1, 1]} : vector<8x32xf32> to vector<8x8xf32>
    %85 = arith.truncf %84 : vector<8x8xf32> to vector<8x8xbf16>
    %86 = vector.extract_strided_slice %16 {offsets = [0, 24], sizes = [8, 8], strides = [1, 1]} : vector<8x32xf32> to vector<8x8xf32>
    %87 = arith.truncf %86 : vector<8x8xf32> to vector<8x8xbf16>
    %88 = tpu.transpose %87, [1, 0] : vector<8x8xbf16> -> vector<8x8xbf16>
    %cst_31 = arith.constant dense<0.000000e+00> : vector<8x8xf32>
    %89 = tpu.matmul %85, %88, %cst_31 {dimension_numbers = #tpu.dot_dimension_numbers<[1], [0], [0], [1], [0, 0, 1, 1], [], []>} : vector<8x8xbf16>, vector<8x8xbf16>, vector<8x8xf32> -> vector<8x8xf32>
    %cst_32 = arith.constant dense<0xFF800000> : vector<8xf32>
    %90 = vector.multi_reduction <maximumf>, %89, %cst_32 [1] : vector<8x8xf32> to vector<8xf32>
    %91 = vector.shape_cast %90 : vector<8xf32> to vector<8x1xf32>
    %92 = vector.broadcast %91 : vector<8x1xf32> to vector<8x8xf32>
    %93 = arith.subf %89, %92 : vector<8x8xf32>
    %94 = math.exp %93 : vector<8x8xf32>
    %cst_33 = arith.constant dense<0.000000e+00> : vector<8xf32>
    %95 = vector.multi_reduction <add>, %94, %cst_33 [1] : vector<8x8xf32> to vector<8xf32>
    %96 = vector.shape_cast %95 : vector<8xf32> to vector<8x1xf32>
    %97 = tpu.reciprocal %96 {approx = true} : vector<8x1xf32> -> vector<8x1xf32>
    %98 = vector.broadcast %97 : vector<8x1xf32> to vector<8x8xf32>
    %99 = arith.mulf %94, %98 : vector<8x8xf32>
    %100 = arith.truncf %99 : vector<8x8xf32> to vector<8x8xbf16>
    %101 = vector.extract_strided_slice %17 {offsets = [0, 24], sizes = [8, 8], strides = [1, 1]} : vector<8x32xf32> to vector<8x8xf32>
    %102 = arith.truncf %101 : vector<8x8xf32> to vector<8x8xbf16>
    %cst_34 = arith.constant dense<0.000000e+00> : vector<8x8xf32>
    %103 = tpu.matmul %100, %102, %cst_34 {dimension_numbers = #tpu.dot_dimension_numbers<[1], [0], [0], [1], [0, 0, 1, 1], [], []>} : vector<8x8xbf16>, vector<8x8xbf16>, vector<8x8xf32> -> vector<8x8xf32>
    %104 = arith.truncf %103 : vector<8x8xf32> to vector<8x8xbf16>
    %c0_35 = arith.constant 0 : index
    %c24 = arith.constant 24 : index
    %105 = vector.load %arg12[%c0_35, %c24] : memref<8x32xbf16, #tpu.memory_space<vmem>>, vector<8x8xbf16>
    tpu.vector_store %arg12[%c0_35, %c24], %104 {strides = array<i32>} : memref<8x32xbf16, #tpu.memory_space<vmem>>, vector<8x8xbf16>,
    %c0_36 = arith.constant 0 : index
    %c0_37 = arith.constant 0 : index
    %106 = vector.load %arg12[%c0_36, %c0_37] : memref<8x32xbf16, #tpu.memory_space<vmem>>, vector<8x32xbf16>
    %c0_38 = arith.constant 0 : index
    %c0_39 = arith.constant 0 : index
    %107 = vector.load %arg7[%c0_38, %c0_39] : memref<32x32xbf16, #tpu.memory_space<vmem>>, vector<32x32xbf16>
    %cst_40 = arith.constant dense<0.000000e+00> : vector<8x32xf32>
    %108 = tpu.matmul %106, %107, %cst_40 {dimension_numbers = #tpu.dot_dimension_numbers<[1], [0], [0], [1], [0, 0, 1, 1], [], []>} : vector<8x32xbf16>, vector<32x32xbf16>, vector<8x32xf32> -> vector<8x32xf32>
    %c0_41 = arith.constant 0 : index
    %c0_42 = arith.constant 0 : index
    %109 = vector.load %arg8[%c0_41, %c0_42] : memref<1x32xf32, #tpu.memory_space<vmem>>, vector<1x32xf32>
    %110 = vector.broadcast %109 : vector<1x32xf32> to vector<8x32xf32>
    %111 = arith.addf %108, %110 : vector<8x32xf32>
    %c0_43 = arith.constant 0 : index
    %c0_44 = arith.constant 0 : index
    %c0_45 = arith.constant 0 : index
    %112 = vector.load %arg1[%c0_43, %c0_44, %c0_45] : memref<1x8x32xbf16, #tpu.memory_space<vmem>>, vector<1x8x32xbf16>
    %113 = vector.shape_cast %112 : vector<1x8x32xbf16> to vector<8x32xbf16>
    %114 = arith.extf %113 : vector<8x32xbf16> to vector<8x32xf32>
    %115 = arith.addf %114, %111 : vector<8x32xf32>
    %cst_46 = arith.constant dense<0.000000e+00> : vector<8xf32>
    %116 = vector.multi_reduction <add>, %115, %cst_46 [1] : vector<8x32xf32> to vector<8xf32>
    %117 = vector.shape_cast %116 : vector<8xf32> to vector<8x1xf32>
    %cst_47 = arith.constant 3.200000e+01 : f32
    %118 = vector.broadcast %cst_47 : f32 to vector<8x1xf32>
    %119 = arith.divf %117, %118 : vector<8x1xf32>
    %120 = vector.broadcast %119 : vector<8x1xf32> to vector<8x32xf32>
    %121 = arith.subf %115, %120 : vector<8x32xf32>
    %122 = arith.mulf %121, %121 : vector<8x32xf32>
    %cst_48 = arith.constant dense<0.000000e+00> : vector<8xf32>
    %123 = vector.multi_reduction <add>, %122, %cst_48 [1] : vector<8x32xf32> to vector<8xf32>
    %124 = vector.shape_cast %123 : vector<8xf32> to vector<8x1xf32>
    %cst_49 = arith.constant 3.200000e+01 : f32
    %125 = vector.broadcast %cst_49 : f32 to vector<8x1xf32>
    %126 = arith.divf %124, %125 : vector<8x1xf32>
    %127 = vector.broadcast %119 : vector<8x1xf32> to vector<8x32xf32>
    %128 = arith.subf %115, %127 : vector<8x32xf32>
    %cst_50 = arith.constant 9.99999974E-6 : f32
    %129 = vector.broadcast %cst_50 : f32 to vector<8x1xf32>
    %130 = arith.addf %126, %129 : vector<8x1xf32>
    %131 = math.rsqrt %130 : vector<8x1xf32>
    %132 = vector.broadcast %131 : vector<8x1xf32> to vector<8x32xf32>
    %133 = arith.mulf %128, %132 : vector<8x32xf32>
    %c0_51 = arith.constant 0 : index
    %c0_52 = arith.constant 0 : index
    %134 = vector.load %arg9[%c0_51, %c0_52] : memref<1x32xf32, #tpu.memory_space<vmem>>, vector<1x32xf32>
    %135 = vector.broadcast %134 : vector<1x32xf32> to vector<8x32xf32>
    %136 = arith.mulf %133, %135 : vector<8x32xf32>
    %c0_53 = arith.constant 0 : index
    %c0_54 = arith.constant 0 : index
    %137 = vector.load %arg10[%c0_53, %c0_54] : memref<1x32xf32, #tpu.memory_space<vmem>>, vector<1x32xf32>
    %138 = vector.broadcast %137 : vector<1x32xf32> to vector<8x32xf32>
    %139 = arith.addf %136, %138 : vector<8x32xf32>
    %140 = arith.truncf %139 : vector<8x32xf32> to vector<8x32xbf16>
    %c0_55 = arith.constant 0 : index
    %c0_56 = arith.constant 0 : index
    %c0_57 = arith.constant 0 : index
    %141 = vector.load %arg11[%c0_55, %c0_56, %c0_57] : memref<1x8x32xbf16, #tpu.memory_space<vmem>>, vector<1x8x32xbf16>
    %142 = vector.shape_cast %141 : vector<1x8x32xbf16> to vector<8x32xbf16>
    %143 = vector.shape_cast %140 : vector<8x32xbf16> to vector<1x8x32xbf16>
    tpu.vector_store %arg11[%c0_55, %c0_56, %c0_57], %143 {strides = array<i32>} : memref<1x8x32xbf16, #tpu.memory_space<vmem>>, vector<1x8x32xbf16>,
    return
  }
  func.func @transform_0(%arg0: i32) -> (i32, i32, i32) {
    %c0_i32 = arith.constant 0 : i32
    %c0_i32_0 = arith.constant 0 : i32
    %c0_i32_1 = arith.constant 0 : i32
    return %arg0, %c0_i32, %c0_i32_0 : i32, i32, i32
  }
  func.func @transform_1(%arg0: i32) -> (i32, i32, i32) {
    %c0_i32 = arith.constant 0 : i32
    %c0_i32_0 = arith.constant 0 : i32
    %c0_i32_1 = arith.constant 0 : i32
    return %arg0, %c0_i32, %c0_i32_0 : i32, i32, i32
  }
  func.func @transform_2(%arg0: i32) -> (i32, i32) {
    %c0_i32 = arith.constant 0 : i32
    %c0_i32_0 = arith.constant 0 : i32
    %c0_i32_1 = arith.constant 0 : i32
    return %c0_i32, %c0_i32_0 : i32, i32
  }
  func.func @transform_3(%arg0: i32) -> (i32, i32) {
    %c0_i32 = arith.constant 0 : i32
    %c0_i32_0 = arith.constant 0 : i32
    %c0_i32_1 = arith.constant 0 : i32
    return %c0_i32, %c0_i32_0 : i32, i32
  }
  func.func @transform_4(%arg0: i32) -> (i32, i32) {
    %c0_i32 = arith.constant 0 : i32
    %c0_i32_0 = arith.constant 0 : i32
    %c0_i32_1 = arith.constant 0 : i32
    return %c0_i32, %c0_i32_0 : i32, i32
  }
  func.func @transform_5(%arg0: i32) -> (i32, i32) {
    %c0_i32 = arith.constant 0 : i32
    %c0_i32_0 = arith.constant 0 : i32
    %c0_i32_1 = arith.constant 0 : i32
    return %c0_i32, %c0_i32_0 : i32, i32
  }
  func.func @transform_6(%arg0: i32) -> (i32, i32) {
    %c0_i32 = arith.constant 0 : i32
    %c0_i32_0 = arith.constant 0 : i32
    %c0_i32_1 = arith.constant 0 : i32
    return %c0_i32, %c0_i32_0 : i32, i32
  }
  func.func @transform_7(%arg0: i32) -> (i32, i32) {
    %c0_i32 = arith.constant 0 : i32
    %c0_i32_0 = arith.constant 0 : i32
    %c0_i32_1 = arith.constant 0 : i32
    return %c0_i32, %c0_i32_0 : i32, i32
  }
  func.func @transform_8(%arg0: i32) -> (i32, i32) {
    %c0_i32 = arith.constant 0 : i32
    %c0_i32_0 = arith.constant 0 : i32
    %c0_i32_1 = arith.constant 0 : i32
    return %c0_i32, %c0_i32_0 : i32, i32
  }
  func.func @transform_9(%arg0: i32) -> (i32, i32) {
    %c0_i32 = arith.constant 0 : i32
    %c0_i32_0 = arith.constant 0 : i32
    %c0_i32_1 = arith.constant 0 : i32
    return %c0_i32, %c0_i32_0 : i32, i32
  }
  func.func @transform_10(%arg0: i32) -> (i32, i32, i32) {
    %c0_i32 = arith.constant 0 : i32
    %c0_i32_0 = arith.constant 0 : i32
    %c0_i32_1 = arith.constant 0 : i32
    return %arg0, %c0_i32, %c0_i32_0 : i32, i32, i32
  }
}

module attributes {stable_mosaic.version = 11 : i64} {
  func.func @_ln_kernel(%arg0: i32, %arg1: memref<16x32xf32, #tpu.memory_space<vmem>>, %arg2: memref<1x32xf32, #tpu.memory_space<vmem>>, %arg3: memref<1x32xf32, #tpu.memory_space<vmem>>, %arg4: memref<16x32xbf16, #tpu.memory_space<vmem>>) attributes {dimension_semantics = [#tpu.dimension_semantics<parallel>], iteration_bounds = array<i64: 1>, scalar_prefetch = 0 : i64, scratch_operands = 0 : i64, tpu.core_type = #tpu.core_type<tc>, window_params = [{transform_indices = @transform_0, window_bounds = array<i64: 16, 32>}, {pipeline_mode = #tpu.pipeline_mode<synchronous>, transform_indices = @transform_1, window_bounds = array<i64: 1, 32>}, {pipeline_mode = #tpu.pipeline_mode<synchronous>, transform_indices = @transform_2, window_bounds = array<i64: 1, 32>}, {transform_indices = @transform_3, window_bounds = array<i64: 16, 32>}]} {
    %c0 = arith.constant 0 : index
    %c0_0 = arith.constant 0 : index
    %0 = vector.load %arg1[%c0, %c0_0] : memref<16x32xf32, #tpu.memory_space<vmem>>, vector<16x32xf32>
    %cst = arith.constant dense<0.000000e+00> : vector<16xf32>
    %1 = vector.multi_reduction <add>, %0, %cst [1] : vector<16x32xf32> to vector<16xf32>
    %2 = vector.shape_cast %1 : vector<16xf32> to vector<16x1xf32>
    %cst_1 = arith.constant 3.200000e+01 : f32
    %3 = vector.broadcast %cst_1 : f32 to vector<16x1xf32>
    %4 = arith.divf %2, %3 : vector<16x1xf32>
    %5 = vector.broadcast %4 : vector<16x1xf32> to vector<16x32xf32>
    %6 = arith.subf %0, %5 : vector<16x32xf32>
    %7 = arith.mulf %6, %6 : vector<16x32xf32>
    %cst_2 = arith.constant dense<0.000000e+00> : vector<16xf32>
    %8 = vector.multi_reduction <add>, %7, %cst_2 [1] : vector<16x32xf32> to vector<16xf32>
    %9 = vector.shape_cast %8 : vector<16xf32> to vector<16x1xf32>
    %cst_3 = arith.constant 3.200000e+01 : f32
    %10 = vector.broadcast %cst_3 : f32 to vector<16x1xf32>
    %11 = arith.divf %9, %10 : vector<16x1xf32>
    %12 = vector.broadcast %4 : vector<16x1xf32> to vector<16x32xf32>
    %13 = arith.subf %0, %12 : vector<16x32xf32>
    %cst_4 = arith.constant 9.99999996E-13 : f32
    %14 = vector.broadcast %cst_4 : f32 to vector<16x1xf32>
    %15 = arith.addf %11, %14 : vector<16x1xf32>
    %16 = math.rsqrt %15 : vector<16x1xf32>
    %17 = vector.broadcast %16 : vector<16x1xf32> to vector<16x32xf32>
    %18 = arith.mulf %13, %17 : vector<16x32xf32>
    %c0_5 = arith.constant 0 : index
    %c0_6 = arith.constant 0 : index
    %19 = vector.load %arg2[%c0_5, %c0_6] : memref<1x32xf32, #tpu.memory_space<vmem>>, vector<1x32xf32>
    %20 = vector.broadcast %19 : vector<1x32xf32> to vector<16x32xf32>
    %21 = arith.mulf %18, %20 : vector<16x32xf32>
    %c0_7 = arith.constant 0 : index
    %c0_8 = arith.constant 0 : index
    %22 = vector.load %arg3[%c0_7, %c0_8] : memref<1x32xf32, #tpu.memory_space<vmem>>, vector<1x32xf32>
    %23 = vector.broadcast %22 : vector<1x32xf32> to vector<16x32xf32>
    %24 = arith.addf %21, %23 : vector<16x32xf32>
    %25 = arith.truncf %24 : vector<16x32xf32> to vector<16x32xbf16>
    %c0_9 = arith.constant 0 : index
    %c0_10 = arith.constant 0 : index
    %26 = vector.load %arg4[%c0_9, %c0_10] : memref<16x32xbf16, #tpu.memory_space<vmem>>, vector<16x32xbf16>
    tpu.vector_store %arg4[%c0_9, %c0_10], %25 {strides = array<i32>} : memref<16x32xbf16, #tpu.memory_space<vmem>>, vector<16x32xbf16>,
    return
  }
  func.func @transform_0(%arg0: i32) -> (i32, i32) {
    %c0_i32 = arith.constant 0 : i32
    %c0_i32_0 = arith.constant 0 : i32
    return %arg0, %c0_i32 : i32, i32
  }
  func.func @transform_1(%arg0: i32) -> (i32, i32) {
    %c0_i32 = arith.constant 0 : i32
    %c0_i32_0 = arith.constant 0 : i32
    %c0_i32_1 = arith.constant 0 : i32
    return %c0_i32, %c0_i32_0 : i32, i32
  }
  func.func @transform_2(%arg0: i32) -> (i32, i32) {
    %c0_i32 = arith.constant 0 : i32
    %c0_i32_0 = arith.constant 0 : i32
    %c0_i32_1 = arith.constant 0 : i32
    return %c0_i32, %c0_i32_0 : i32, i32
  }
  func.func @transform_3(%arg0: i32) -> (i32, i32) {
    %c0_i32 = arith.constant 0 : i32
    %c0_i32_0 = arith.constant 0 : i32
    return %arg0, %c0_i32 : i32, i32
  }
}

module attributes {stable_mosaic.version = 11 : i64} {
  func.func @_linear_kernel(%arg0: i32, %arg1: i32, %arg2: i32, %arg3: memref<16x32xbf16, #tpu.memory_space<vmem>>, %arg4: memref<32x64xbf16, #tpu.memory_space<vmem>>, %arg5: memref<1x64xf32, #tpu.memory_space<vmem>>, %arg6: memref<16x64xbf16, #tpu.memory_space<vmem>>, %arg7: memref<16x64xf32, #tpu.memory_space<vmem>>) attributes {dimension_semantics = [#tpu.dimension_semantics<parallel>, #tpu.dimension_semantics<parallel>, #tpu.dimension_semantics<arbitrary>], iteration_bounds = array<i64: 1, 1, 1>, scalar_prefetch = 0 : i64, scratch_operands = 1 : i64, tpu.core_type = #tpu.core_type<tc>, window_params = [{transform_indices = @transform_0, window_bounds = array<i64: 16, 32>}, {transform_indices = @transform_1, window_bounds = array<i64: 32, 64>}, {transform_indices = @transform_2, window_bounds = array<i64: 1, 64>}, {transform_indices = @transform_3, window_bounds = array<i64: 16, 64>}]} {
    %c0_i32 = arith.constant 0 : i32
    %0 = arith.cmpi eq, %arg2, %c0_i32 : i32
    %1 = arith.extui %0 : i1 to i32
    %c0_i32_0 = arith.constant 0 : i32
    %2 = arith.cmpi ne, %1, %c0_i32_0 : i32
    scf.if %2 {
      %cst_10 = arith.constant 0.000000e+00 : f32
      %12 = vector.broadcast %cst_10 : f32 to vector<16x64xf32>
      %c0_11 = arith.constant 0 : index
      %c0_12 = arith.constant 0 : index
      %13 = vector.load %arg7[%c0_11, %c0_12] : memref<16x64xf32, #tpu.memory_space<vmem>>, vector<16x64xf32>
      tpu.vector_store %arg7[%c0_11, %c0_12], %12 {strides = array<i32>} : memref<16x64xf32, #tpu.memory_space<vmem>>, vector<16x64xf32>,
    } else {
    }
    %c0 = arith.constant 0 : index
    %c0_1 = arith.constant 0 : index
    %3 = vector.load %arg7[%c0, %c0_1] : memref<16x64xf32, #tpu.memory_space<vmem>>, vector<16x64xf32>
    %c0_2 = arith.constant 0 : index
    %c0_3 = arith.constant 0 : index
    %4 = vector.load %arg3[%c0_2, %c0_3] : memref<16x32xbf16, #tpu.memory_space<vmem>>, vector<16x32xbf16>
    %c0_4 = arith.constant 0 : index
    %c0_5 = arith.constant 0 : index
    %5 = vector.load %arg4[%c0_4, %c0_5] : memref<32x64xbf16, #tpu.memory_space<vmem>>, vector<32x64xbf16>
    %cst = arith.constant dense<0.000000e+00> : vector<16x64xf32>
    %6 = tpu.matmul %4, %5, %cst {dimension_numbers = #tpu.dot_dimension_numbers<[1], [0], [0], [1], [0, 0, 1, 1], [], []>} : vector<16x32xbf16>, vector<32x64xbf16>, vector<16x64xf32> -> vector<16x64xf32>
    %7 = arith.addf %3, %6 : vector<16x64xf32>
    %c0_6 = arith.constant 0 : index
    %c0_7 = arith.constant 0 : index
    %8 = vector.load %arg7[%c0_6, %c0_7] : memref<16x64xf32, #tpu.memory_space<vmem>>, vector<16x64xf32>
    tpu.vector_store %arg7[%c0_6, %c0_7], %7 {strides = array<i32>} : memref<16x64xf32, #tpu.memory_space<vmem>>, vector<16x64xf32>,
    %c0_i32_8 = arith.constant 0 : i32
    %9 = arith.cmpi eq, %arg2, %c0_i32_8 : i32
    %10 = arith.extui %9 : i1 to i32
    %c0_i32_9 = arith.constant 0 : i32
    %11 = arith.cmpi ne, %10, %c0_i32_9 : i32
    scf.if %11 {
      %c0_10 = arith.constant 0 : index
      %c0_11 = arith.constant 0 : index
      %12 = vector.load %arg7[%c0_10, %c0_11] : memref<16x64xf32, #tpu.memory_space<vmem>>, vector<16x64xf32>
      %c0_12 = arith.constant 0 : index
      %c0_13 = arith.constant 0 : index
      %13 = vector.load %arg5[%c0_12, %c0_13] : memref<1x64xf32, #tpu.memory_space<vmem>>, vector<1x64xf32>
      %14 = vector.broadcast %13 : vector<1x64xf32> to vector<16x64xf32>
      %15 = arith.addf %12, %14 : vector<16x64xf32>
      %cst_14 = arith.constant 5.000000e-01 : f32
      %16 = vector.broadcast %cst_14 : f32 to vector<16x64xf32>
      %17 = arith.mulf %16, %15 : vector<16x64xf32>
      %cst_15 = arith.constant 4.471500e-02 : f32
      %18 = vector.broadcast %cst_15 : f32 to vector<16x64xf32>
      %19 = arith.mulf %18, %15 : vector<16x64xf32>
      %20 = arith.mulf %19, %15 : vector<16x64xf32>
      %21 = arith.mulf %20, %15 : vector<16x64xf32>
      %22 = arith.addf %15, %21 : vector<16x64xf32>
      %cst_16 = arith.constant 0.797884583 : f32
      %23 = vector.broadcast %cst_16 : f32 to vector<16x64xf32>
      %24 = arith.mulf %23, %22 : vector<16x64xf32>
      %25 = math.tanh %24 : vector<16x64xf32>
      %cst_17 = arith.constant 1.000000e+00 : f32
      %26 = vector.broadcast %cst_17 : f32 to vector<16x64xf32>
      %27 = arith.addf %26, %25 : vector<16x64xf32>
      %28 = arith.mulf %17, %27 : vector<16x64xf32>
      %29 = arith.truncf %28 : vector<16x64xf32> to vector<16x64xbf16>
      %c0_18 = arith.constant 0 : index
      %c0_19 = arith.constant 0 : index
      %30 = vector.load %arg6[%c0_18, %c0_19] : memref<16x64xbf16, #tpu.memory_space<vmem>>, vector<16x64xbf16>
      tpu.vector_store %arg6[%c0_18, %c0_19], %29 {strides = array<i32>} : memref<16x64xbf16, #tpu.memory_space<vmem>>, vector<16x64xbf16>,
    } else {
    }
    return
  }
  func.func @transform_0(%arg0: i32, %arg1: i32, %arg2: i32) -> (i32, i32) {
    %c0_i32 = arith.constant 0 : i32
    return %arg0, %arg2 : i32, i32
  }
  func.func @transform_1(%arg0: i32, %arg1: i32, %arg2: i32) -> (i32, i32) {
    %c0_i32 = arith.constant 0 : i32
    return %arg2, %arg1 : i32, i32
  }
  func.func @transform_2(%arg0: i32, %arg1: i32, %arg2: i32) -> (i32, i32) {
    %c0_i32 = arith.constant 0 : i32
    %c0_i32_0 = arith.constant 0 : i32
    return %c0_i32, %arg1 : i32, i32
  }
  func.func @transform_3(%arg0: i32, %arg1: i32, %arg2: i32) -> (i32, i32) {
    %c0_i32 = arith.constant 0 : i32
    return %arg0, %arg1 : i32, i32
  }
}

module attributes {stable_mosaic.version = 11 : i64} {
  func.func @_linear_add_ln_kernel(%arg0: i32, %arg1: i32, %arg2: memref<16x64xbf16, #tpu.memory_space<vmem>>, %arg3: memref<64x32xbf16, #tpu.memory_space<vmem>>, %arg4: memref<1x32xf32, #tpu.memory_space<vmem>>, %arg5: memref<16x32xbf16, #tpu.memory_space<vmem>>, %arg6: memref<1x32xf32, #tpu.memory_space<vmem>>, %arg7: memref<1x32xf32, #tpu.memory_space<vmem>>, %arg8: memref<16x32xbf16, #tpu.memory_space<vmem>>, %arg9: memref<16x32xf32, #tpu.memory_space<vmem>>) attributes {dimension_semantics = [#tpu.dimension_semantics<parallel>, #tpu.dimension_semantics<arbitrary>], iteration_bounds = array<i64: 1, 1>, scalar_prefetch = 0 : i64, scratch_operands = 1 : i64, tpu.core_type = #tpu.core_type<tc>, window_params = [{transform_indices = @transform_0, window_bounds = array<i64: 16, 64>}, {transform_indices = @transform_1, window_bounds = array<i64: 64, 32>}, {pipeline_mode = #tpu.pipeline_mode<synchronous>, transform_indices = @transform_2, window_bounds = array<i64: 1, 32>}, {transform_indices = @transform_3, window_bounds = array<i64: 16, 32>}, {pipeline_mode = #tpu.pipeline_mode<synchronous>, transform_indices = @transform_4, window_bounds = array<i64: 1, 32>}, {pipeline_mode = #tpu.pipeline_mode<synchronous>, transform_indices = @transform_5, window_bounds = array<i64: 1, 32>}, {transform_indices = @transform_6, window_bounds = array<i64: 16, 32>}]} {
    %c0_i32 = arith.constant 0 : i32
    %0 = arith.cmpi eq, %arg1, %c0_i32 : i32
    %1 = arith.extui %0 : i1 to i32
    %c0_i32_0 = arith.constant 0 : i32
    %2 = arith.cmpi ne, %1, %c0_i32_0 : i32
    scf.if %2 {
      %cst_10 = arith.constant 0.000000e+00 : f32
      %12 = vector.broadcast %cst_10 : f32 to vector<16x32xf32>
      %c0_11 = arith.constant 0 : index
      %c0_12 = arith.constant 0 : index
      %13 = vector.load %arg9[%c0_11, %c0_12] : memref<16x32xf32, #tpu.memory_space<vmem>>, vector<16x32xf32>
      tpu.vector_store %arg9[%c0_11, %c0_12], %12 {strides = array<i32>} : memref<16x32xf32, #tpu.memory_space<vmem>>, vector<16x32xf32>,
    } else {
    }
    %c0 = arith.constant 0 : index
    %c0_1 = arith.constant 0 : index
    %3 = vector.load %arg9[%c0, %c0_1] : memref<16x32xf32, #tpu.memory_space<vmem>>, vector<16x32xf32>
    %c0_2 = arith.constant 0 : index
    %c0_3 = arith.constant 0 : index
    %4 = vector.load %arg2[%c0_2, %c0_3] : memref<16x64xbf16, #tpu.memory_space<vmem>>, vector<16x64xbf16>
    %c0_4 = arith.constant 0 : index
    %c0_5 = arith.constant 0 : index
    %5 = vector.load %arg3[%c0_4, %c0_5] : memref<64x32xbf16, #tpu.memory_space<vmem>>, vector<64x32xbf16>
    %cst = arith.constant dense<0.000000e+00> : vector<16x32xf32>
    %6 = tpu.matmul %4, %5, %cst {dimension_numbers = #tpu.dot_dimension_numbers<[1], [0], [0], [1], [0, 0, 1, 1], [], []>} : vector<16x64xbf16>, vector<64x32xbf16>, vector<16x32xf32> -> vector<16x32xf32>
    %7 = arith.addf %3, %6 : vector<16x32xf32>
    %c0_6 = arith.constant 0 : index
    %c0_7 = arith.constant 0 : index
    %8 = vector.load %arg9[%c0_6, %c0_7] : memref<16x32xf32, #tpu.memory_space<vmem>>, vector<16x32xf32>
    tpu.vector_store %arg9[%c0_6, %c0_7], %7 {strides = array<i32>} : memref<16x32xf32, #tpu.memory_space<vmem>>, vector<16x32xf32>,
    %c0_i32_8 = arith.constant 0 : i32
    %9 = arith.cmpi eq, %arg1, %c0_i32_8 : i32
    %10 = arith.extui %9 : i1 to i32
    %c0_i32_9 = arith.constant 0 : i32
    %11 = arith.cmpi ne, %10, %c0_i32_9 : i32
    scf.if %11 {
      %c0_10 = arith.constant 0 : index
      %c0_11 = arith.constant 0 : index
      %12 = vector.load %arg9[%c0_10, %c0_11] : memref<16x32xf32, #tpu.memory_space<vmem>>, vector<16x32xf32>
      %c0_12 = arith.constant 0 : index
      %c0_13 = arith.constant 0 : index
      %13 = vector.load %arg4[%c0_12, %c0_13] : memref<1x32xf32, #tpu.memory_space<vmem>>, vector<1x32xf32>
      %14 = vector.broadcast %13 : vector<1x32xf32> to vector<16x32xf32>
      %15 = arith.addf %12, %14 : vector<16x32xf32>
      %c0_14 = arith.constant 0 : index
      %c0_15 = arith.constant 0 : index
      %16 = vector.load %arg5[%c0_14, %c0_15] : memref<16x32xbf16, #tpu.memory_space<vmem>>, vector<16x32xbf16>
      %17 = arith.extf %16 : vector<16x32xbf16> to vector<16x32xf32>
      %18 = arith.addf %15, %17 : vector<16x32xf32>
      %cst_16 = arith.constant dense<0.000000e+00> : vector<16xf32>
      %19 = vector.multi_reduction <add>, %18, %cst_16 [1] : vector<16x32xf32> to vector<16xf32>
      %20 = vector.shape_cast %19 : vector<16xf32> to vector<16x1xf32>
      %cst_17 = arith.constant 3.200000e+01 : f32
      %21 = vector.broadcast %cst_17 : f32 to vector<16x1xf32>
      %22 = arith.divf %20, %21 : vector<16x1xf32>
      %23 = vector.broadcast %22 : vector<16x1xf32> to vector<16x32xf32>
      %24 = arith.subf %18, %23 : vector<16x32xf32>
      %25 = arith.mulf %24, %24 : vector<16x32xf32>
      %cst_18 = arith.constant dense<0.000000e+00> : vector<16xf32>
      %26 = vector.multi_reduction <add>, %25, %cst_18 [1] : vector<16x32xf32> to vector<16xf32>
      %27 = vector.shape_cast %26 : vector<16xf32> to vector<16x1xf32>
      %cst_19 = arith.constant 3.200000e+01 : f32
      %28 = vector.broadcast %cst_19 : f32 to vector<16x1xf32>
      %29 = arith.divf %27, %28 : vector<16x1xf32>
      %30 = vector.broadcast %22 : vector<16x1xf32> to vector<16x32xf32>
      %31 = arith.subf %18, %30 : vector<16x32xf32>
      %cst_20 = arith.constant 9.99999974E-6 : f32
      %32 = vector.broadcast %cst_20 : f32 to vector<16x1xf32>
      %33 = arith.addf %29, %32 : vector<16x1xf32>
      %34 = math.rsqrt %33 : vector<16x1xf32>
      %35 = vector.broadcast %34 : vector<16x1xf32> to vector<16x32xf32>
      %36 = arith.mulf %31, %35 : vector<16x32xf32>
      %c0_21 = arith.constant 0 : index
      %c0_22 = arith.constant 0 : index
      %37 = vector.load %arg6[%c0_21, %c0_22] : memref<1x32xf32, #tpu.memory_space<vmem>>, vector<1x32xf32>
      %38 = vector.broadcast %37 : vector<1x32xf32> to vector<16x32xf32>
      %39 = arith.mulf %36, %38 : vector<16x32xf32>
      %c0_23 = arith.constant 0 : index
      %c0_24 = arith.constant 0 : index
      %40 = vector.load %arg7[%c0_23, %c0_24] : memref<1x32xf32, #tpu.memory_space<vmem>>, vector<1x32xf32>
      %41 = vector.broadcast %40 : vector<1x32xf32> to vector<16x32xf32>
      %42 = arith.addf %39, %41 : vector<16x32xf32>
      %43 = arith.truncf %42 : vector<16x32xf32> to vector<16x32xbf16>
      %c0_25 = arith.constant 0 : index
      %c0_26 = arith.constant 0 : index
      %44 = vector.load %arg8[%c0_25, %c0_26] : memref<16x32xbf16, #tpu.memory_space<vmem>>, vector<16x32xbf16>
      tpu.vector_store %arg8[%c0_25, %c0_26], %43 {strides = array<i32>} : memref<16x32xbf16, #tpu.memory_space<vmem>>, vector<16x32xbf16>,
    } else {
    }
    return
  }
  func.func @transform_0(%arg0: i32, %arg1: i32) -> (i32, i32) {
    %c0_i32 = arith.constant 0 : i32
    return %arg0, %arg1 : i32, i32
  }
  func.func @transform_1(%arg0: i32, %arg1: i32) -> (i32, i32) {
    %c0_i32 = arith.constant 0 : i32
    %c0_i32_0 = arith.constant 0 : i32
    return %arg1, %c0_i32 : i32, i32
  }
  func.func @transform_2(%arg0: i32, %arg1: i32) -> (i32, i32) {
    %c0_i32 = arith.constant 0 : i32
    %c0_i32_0 = arith.constant 0 : i32
    %c0_i32_1 = arith.constant 0 : i32
    return %c0_i32, %c0_i32_0 : i32, i32
  }
  func.func @transform_3(%arg0: i32, %arg1: i32) -> (i32, i32) {
    %c0_i32 = arith.constant 0 : i32
    %c0_i32_0 = arith.constant 0 : i32
    return %arg0, %c0_i32 : i32, i32
  }
  func.func @transform_4(%arg0: i32, %arg1: i32) -> (i32, i32) {
    %c0_i32 = arith.constant 0 : i32
    %c0_i32_0 = arith.constant 0 : i32
    %c0_i32_1 = arith.constant 0 : i32
    return %c0_i32, %c0_i32_0 : i32, i32
  }
  func.func @transform_5(%arg0: i32, %arg1: i32) -> (i32, i32) {
    %c0_i32 = arith.constant 0 : i32
    %c0_i32_0 = arith.constant 0 : i32
    %c0_i32_1 = arith.constant 0 : i32
    return %c0_i32, %c0_i32_0 : i32, i32
  }
  func.func @transform_6(%arg0: i32, %arg1: i32) -> (i32, i32) {
    %c0_i32 = arith.constant 0 : i32
    %c0_i32_0 = arith.constant 0 : i32
    return %arg0, %c0_i32 : i32, i32
  }
}

module attributes {stable_mosaic.version = 11 : i64} {
  func.func @_mha_kernel(%arg0: i32, %arg1: memref<1x8x32xbf16, #tpu.memory_space<vmem>>, %arg2: memref<1x8x32xbf16, #tpu.memory_space<vmem>>, %arg3: memref<32x32xbf16, #tpu.memory_space<vmem>>, %arg4: memref<1x32xf32, #tpu.memory_space<vmem>>, %arg5: memref<32x64xbf16, #tpu.memory_space<vmem>>, %arg6: memref<1x64xf32, #tpu.memory_space<vmem>>, %arg7: memref<32x32xbf16, #tpu.memory_space<vmem>>, %arg8: memref<1x32xf32, #tpu.memory_space<vmem>>, %arg9: memref<1x32xf32, #tpu.memory_space<vmem>>, %arg10: memref<1x32xf32, #tpu.memory_space<vmem>>, %arg11: memref<1x8x32xbf16, #tpu.memory_space<vmem>>, %arg12: memref<8x32xbf16, #tpu.memory_space<vmem>>) attributes {dimension_semantics = [#tpu.dimension_semantics<parallel>], iteration_bounds = array<i64: 2>, scalar_prefetch = 0 : i64, scratch_operands = 1 : i64, tpu.core_type = #tpu.core_type<tc>, window_params = [{transform_indices = @transform_0, window_bounds = array<i64: 1, 8, 32>}, {transform_indices = @transform_1, window_bounds = array<i64: 1, 8, 32>}, {pipeline_mode = #tpu.pipeline_mode<synchronous>, transform_indices = @transform_2, window_bounds = array<i64: 32, 32>}, {pipeline_mode = #tpu.pipeline_mode<synchronous>, transform_indices = @transform_3, window_bounds = array<i64: 1, 32>}, {pipeline_mode = #tpu.pipeline_mode<synchronous>, transform_indices = @transform_4, window_bounds = array<i64: 32, 64>}, {pipeline_mode = #tpu.pipeline_mode<synchronous>, transform_indices = @transform_5, window_bounds = array<i64: 1, 64>}, {pipeline_mode = #tpu.pipeline_mode<synchronous>, transform_indices = @transform_6, window_bounds = array<i64: 32, 32>}, {pipeline_mode = #tpu.pipeline_mode<synchronous>, transform_indices = @transform_7, window_bounds = array<i64: 1, 32>}, {pipeline_mode = #tpu.pipeline_mode<synchronous>, transform_indices = @transform_8, window_bounds = array<i64: 1, 32>}, {pipeline_mode = #tpu.pipeline_mode<synchronous>, transform_indices = @transform_9, window_bounds = array<i64: 1, 32>}, {transform_indices = @transform_10, window_bounds = array<i64: 1, 8, 32>}]} {
    %c0 = arith.constant 0 : index
    %c0_0 = arith.constant 0 : index
    %c0_1 = arith.constant 0 : index
    %0 = vector.load %arg1[%c0, %c0_0, %c0_1] : memref<1x8x32xbf16, #tpu.memory_space<vmem>>, vector<1x8x32xbf16>
    %1 = vector.shape_cast %0 : vector<1x8x32xbf16> to vector<8x32xbf16>
    %c0_2 = arith.constant 0 : index
    %c0_3 = arith.constant 0 : index
    %c0_4 = arith.constant 0 : index
    %2 = vector.load %arg2[%c0_2, %c0_3, %c0_4] : memref<1x8x32xbf16, #tpu.memory_space<vmem>>, vector<1x8x32xbf16>
    %3 = vector.shape_cast %2 : vector<1x8x32xbf16> to vector<8x32xbf16>
    %c0_5 = arith.constant 0 : index
    %c0_6 = arith.constant 0 : index
    %4 = vector.load %arg3[%c0_5, %c0_6] : memref<32x32xbf16, #tpu.memory_space<vmem>>, vector<32x32xbf16>
    %cst = arith.constant dense<0.000000e+00> : vector<8x32xf32>
    %5 = tpu.matmul %1, %4, %cst {dimension_numbers = #tpu.dot_dimension_numbers<[1], [0], [0], [1], [0, 0, 1, 1], [], []>} : vector<8x32xbf16>, vector<32x32xbf16>, vector<8x32xf32> -> vector<8x32xf32>
    %c0_7 = arith.constant 0 : index
    %c0_8 = arith.constant 0 : index
    %6 = vector.load %arg4[%c0_7, %c0_8] : memref<1x32xf32, #tpu.memory_space<vmem>>, vector<1x32xf32>
    %7 = vector.broadcast %6 : vector<1x32xf32> to vector<8x32xf32>
    %8 = arith.addf %5, %7 : vector<8x32xf32>
    %cst_9 = arith.constant 0.353553385 : f32
    %9 = vector.broadcast %cst_9 : f32 to vector<8x32xf32>
    %10 = arith.mulf %8, %9 : vector<8x32xf32>
    %c0_10 = arith.constant 0 : index
    %c0_11 = arith.constant 0 : index
    %11 = vector.load %arg5[%c0_10, %c0_11] : memref<32x64xbf16, #tpu.memory_space<vmem>>, vector<32x64xbf16>
    %cst_12 = arith.constant dense<0.000000e+00> : vector<8x64xf32>
    %12 = tpu.matmul %3, %11, %cst_12 {dimension_numbers = #tpu.dot_dimension_numbers<[1], [0], [0], [1], [0, 0, 1, 1], [], []>} : vector<8x32xbf16>, vector<32x64xbf16>, vector<8x64xf32> -> vector<8x64xf32>
    %c0_13 = arith.constant 0 : index
    %c0_14 = arith.constant 0 : index
    %13 = vector.load %arg6[%c0_13, %c0_14] : memref<1x64xf32, #tpu.memory_space<vmem>>, vector<1x64xf32>
    %14 = vector.broadcast %13 : vector<1x64xf32> to vector<8x64xf32>
    %15 = arith.addf %12, %14 : vector<8x64xf32>
    %16 = vector.extract_strided_slice %15 {offsets = [0, 0], sizes = [8, 32], strides = [1, 1]} : vector<8x64xf32> to vector<8x32xf32>
    %17 = vector.extract_strided_slice %15 {offsets = [0, 32], sizes = [8, 32], strides = [1, 1]} : vector<8x64xf32> to vector<8x32xf32>
    %18 = tpu.iota {dimensions = array<i32: 0>} : vector<8x8xi32>
    %19 = tpu.iota {dimensions = array<i32: 1>} : vector<8x8xi32>
    %20 = arith.cmpi sgt, %19, %18 : vector<8x8xi32>
    %cst_15 = arith.constant -1.000000e+09 : f32
    %cst_16 = arith.constant 0.000000e+00 : f32
    %21 = vector.broadcast %cst_15 : f32 to vector<8x8xf32>
    %22 = vector.broadcast %cst_16 : f32 to vector<8x8xf32>
    %23 = arith.select %20, %21, %22 : vector<8x8xi1>, vector<8x8xf32>
    %24 = vector.extract_strided_slice %10 {offsets = [0, 0], sizes = [8, 8], strides = [1, 1]} : vector<8x32xf32> to vector<8x8xf32>
    %25 = arith.truncf %24 : vector<8x8xf32> to vector<8x8xbf16>
    %26 = vector.extract_strided_slice %16 {offsets = [0, 0], sizes = [8, 8], strides = [1, 1]} : vector<8x32xf32> to vector<8x8xf32>
    %27 = arith.truncf %26 : vector<8x8xf32> to vector<8x8xbf16>
    %28 = tpu.transpose %27, [1, 0] : vector<8x8xbf16> -> vector<8x8xbf16>
    %cst_17 = arith.constant dense<0.000000e+00> : vector<8x8xf32>
    %29 = tpu.matmul %25, %28, %cst_17 {dimension_numbers = #tpu.dot_dimension_numbers<[1], [0], [0], [1], [0, 0, 1, 1], [], []>} : vector<8x8xbf16>, vector<8x8xbf16>, vector<8x8xf32> -> vector<8x8xf32>
    %30 = arith.addf %29, %23 : vector<8x8xf32>
    %cst_18 = arith.constant dense<0xFF800000> : vector<8xf32>
    %31 = vector.multi_reduction <maximumf>, %30, %cst_18 [1] : vector<8x8xf32> to vector<8xf32>
    %32 = vector.shape_cast %31 : vector<8xf32> to vector<8x1xf32>
    %33 = vector.broadcast %32 : vector<8x1xf32> to vector<8x8xf32>
    %34 = arith.subf %30, %33 : vector<8x8xf32>
    %35 = math.exp %34 : vector<8x8xf32>
    %cst_19 = arith.constant dense<0.000000e+00> : vector<8xf32>
    %36 = vector.multi_reduction <add>, %35, %cst_19 [1] : vector<8x8xf32> to vector<8xf32>
    %37 = vector.shape_cast %36 : vector<8xf32> to vector<8x1xf32>
    %38 = tpu.reciprocal %37 {approx = true} : vector<8x1xf32> -> vector<8x1xf32>
    %39 = vector.broadcast %38 : vector<8x1xf32> to vector<8x8xf32>
    %40 = arith.mulf %35, %39 : vector<8x8xf32>
    %41 = arith.truncf %40 : vector<8x8xf32> to vector<8x8xbf16>
    %42 = vector.extract_strided_slice %17 {offsets = [0, 0], sizes = [8, 8], strides = [1, 1]} : vector<8x32xf32> to vector<8x8xf32>
    %43 = arith.truncf %42 : vector<8x8xf32> to vector<8x8xbf16>
    %cst_20 = arith.constant dense<0.000000e+00> : vector<8x8xf32>
    %44 = tpu.matmul %41, %43, %cst_20 {dimension_numbers = #tpu.dot_dimension_numbers<[1], [0], [0], [1], [0, 0, 1, 1], [], []>} : vector<8x8xbf16>, vector<8x8xbf16>, vector<8x8xf32> -> vector<8x8xf32>
    %45 = arith.truncf %44 : vector<8x8xf32> to vector<8x8xbf16>
    %c0_21 = arith.constant 0 : index
    %c0_22 = arith.constant 0 : index
    %46 = vector.load %arg12[%c0_21, %c0_22] : memref<8x32xbf16, #tpu.memory_space<vmem>>, vector<8x8xbf16>
    tpu.vector_store %arg12[%c0_21, %c0_22], %45 {strides = array<i32>} : memref<8x32xbf16, #tpu.memory_space<vmem>>, vector<8x8xbf16>,
    %47 = vector.extract_strided_slice %10 {offsets = [0, 8], sizes = [8, 8], strides = [1, 1]} : vector<8x32xf32> to vector<8x8xf32>
    %48 = arith.truncf %47 : vector<8x8xf32> to vector<8x8xbf16>
    %49 = vector.extract_strided_slice %16 {offsets = [0, 8], sizes = [8, 8], strides = [1, 1]} : vector<8x32xf32> to vector<8x8xf32>
    %50 = arith.truncf %49 : vector<8x8xf32> to vector<8x8xbf16>
    %51 = tpu.transpose %50, [1, 0] : vector<8x8xbf16> -> vector<8x8xbf16>
    %cst_23 = arith.constant dense<0.000000e+00> : vector<8x8xf32>
    %52 = tpu.matmul %48, %51, %cst_23 {dimension_numbers = #tpu.dot_dimension_numbers<[1], [0], [0], [1], [0, 0, 1, 1], [], []>} : vector<8x8xbf16>, vector<8x8xbf16>, vector<8x8xf32> -> vector<8x8xf32>
    %53 = arith.addf %52, %23 : vector<8x8xf32>
    %cst_24 = arith.constant dense<0xFF800000> : vector<8xf32>
    %54 = vector.multi_reduction <maximumf>, %53, %cst_24 [1] : vector<8x8xf32> to vector<8xf32>
    %55 = vector.shape_cast %54 : vector<8xf32> to vector<8x1xf32>
    %56 = vector.broadcast %55 : vector<8x1xf32> to vector<8x8xf32>
    %57 = arith.subf %53, %56 : vector<8x8xf32>
    %58 = math.exp %57 : vector<8x8xf32>
    %cst_25 = arith.constant dense<0.000000e+00> : vector<8xf32>
    %59 = vector.multi_reduction <add>, %58, %cst_25 [1] : vector<8x8xf32> to vector<8xf32>
    %60 = vector.shape_cast %59 : vector<8xf32> to vector<8x1xf32>
    %61 = tpu.reciprocal %60 {approx = true} : vector<8x1xf32> -> vector<8x1xf32>
    %62 = vector.broadcast %61 : vector<8x1xf32> to vector<8x8xf32>
    %63 = arith.mulf %58, %62 : vector<8x8xf32>
    %64 = arith.truncf %63 : vector<8x8xf32> to vector<8x8xbf16>
    %65 = vector.extract_strided_slice %17 {offsets = [0, 8], sizes = [8, 8], strides = [1, 1]} : vector<8x32xf32> to vector<8x8xf32>
    %66 = arith.truncf %65 : vector<8x8xf32> to vector<8x8xbf16>
    %cst_26 = arith.constant dense<0.000000e+00> : vector<8x8xf32>
    %67 = tpu.matmul %64, %66, %cst_26 {dimension_numbers = #tpu.dot_dimension_numbers<[1], [0], [0], [1], [0, 0, 1, 1], [], []>} : vector<8x8xbf16>, vector<8x8xbf16>, vector<8x8xf32> -> vector<8x8xf32>
    %68 = arith.truncf %67 : vector<8x8xf32> to vector<8x8xbf16>
    %c0_27 = arith.constant 0 : index
    %c8 = arith.constant 8 : index
    %69 = vector.load %arg12[%c0_27, %c8] : memref<8x32xbf16, #tpu.memory_space<vmem>>, vector<8x8xbf16>
    tpu.vector_store %arg12[%c0_27, %c8], %68 {strides = array<i32>} : memref<8x32xbf16, #tpu.memory_space<vmem>>, vector<8x8xbf16>,
    %70 = vector.extract_strided_slice %10 {offsets = [0, 16], sizes = [8, 8], strides = [1, 1]} : vector<8x32xf32> to vector<8x8xf32>
    %71 = arith.truncf %70 : vector<8x8xf32> to vector<8x8xbf16>
    %72 = vector.extract_strided_slice %16 {offsets = [0, 16], sizes = [8, 8], strides = [1, 1]} : vector<8x32xf32> to vector<8x8xf32>
    %73 = arith.truncf %72 : vector<8x8xf32> to vector<8x8xbf16>
    %74 = tpu.transpose %73, [1, 0] : vector<8x8xbf16> -> vector<8x8xbf16>
    %cst_28 = arith.constant dense<0.000000e+00> : vector<8x8xf32>
    %75 = tpu.matmul %71, %74, %cst_28 {dimension_numbers = #tpu.dot_dimension_numbers<[1], [0], [0], [1], [0, 0, 1, 1], [], []>} : vector<8x8xbf16>, vector<8x8xbf16>, vector<8x8xf32> -> vector<8x8xf32>
    %76 = arith.addf %75, %23 : vector<8x8xf32>
    %cst_29 = arith.constant dense<0xFF800000> : vector<8xf32>
    %77 = vector.multi_reduction <maximumf>, %76, %cst_29 [1] : vector<8x8xf32> to vector<8xf32>
    %78 = vector.shape_cast %77 : vector<8xf32> to vector<8x1xf32>
    %79 = vector.broadcast %78 : vector<8x1xf32> to vector<8x8xf32>
    %80 = arith.subf %76, %79 : vector<8x8xf32>
    %81 = math.exp %80 : vector<8x8xf32>
    %cst_30 = arith.constant dense<0.000000e+00> : vector<8xf32>
    %82 = vector.multi_reduction <add>, %81, %cst_30 [1] : vector<8x8xf32> to vector<8xf32>
    %83 = vector.shape_cast %82 : vector<8xf32> to vector<8x1xf32>
    %84 = tpu.reciprocal %83 {approx = true} : vector<8x1xf32> -> vector<8x1xf32>
    %85 = vector.broadcast %84 : vector<8x1xf32> to vector<8x8xf32>
    %86 = arith.mulf %81, %85 : vector<8x8xf32>
    %87 = arith.truncf %86 : vector<8x8xf32> to vector<8x8xbf16>
    %88 = vector.extract_strided_slice %17 {offsets = [0, 16], sizes = [8, 8], strides = [1, 1]} : vector<8x32xf32> to vector<8x8xf32>
    %89 = arith.truncf %88 : vector<8x8xf32> to vector<8x8xbf16>
    %cst_31 = arith.constant dense<0.000000e+00> : vector<8x8xf32>
    %90 = tpu.matmul %87, %89, %cst_31 {dimension_numbers = #tpu.dot_dimension_numbers<[1], [0], [0], [1], [0, 0, 1, 1], [], []>} : vector<8x8xbf16>, vector<8x8xbf16>, vector<8x8xf32> -> vector<8x8xf32>
    %91 = arith.truncf %90 : vector<8x8xf32> to vector<8x8xbf16>
    %c0_32 = arith.constant 0 : index
    %c16 = arith.constant 16 : index
    %92 = vector.load %arg12[%c0_32, %c16] : memref<8x32xbf16, #tpu.memory_space<vmem>>, vector<8x8xbf16>
    tpu.vector_store %arg12[%c0_32, %c16], %91 {strides = array<i32>} : memref<8x32xbf16, #tpu.memory_space<vmem>>, vector<8x8xbf16>,
    %93 = vector.extract_strided_slice %10 {offsets = [0, 24], sizes = [8, 8], strides = [1, 1]} : vector<8x32xf32> to vector<8x8xf32>
    %94 = arith.truncf %93 : vector<8x8xf32> to vector<8x8xbf16>
    %95 = vector.extract_strided_slice %16 {offsets = [0, 24], sizes = [8, 8], strides = [1, 1]} : vector<8x32xf32> to vector<8x8xf32>
    %96 = arith.truncf %95 : vector<8x8xf32> to vector<8x8xbf16>
    %97 = tpu.transpose %96, [1, 0] : vector<8x8xbf16> -> vector<8x8xbf16>
    %cst_33 = arith.constant dense<0.000000e+00> : vector<8x8xf32>
    %98 = tpu.matmul %94, %97, %cst_33 {dimension_numbers = #tpu.dot_dimension_numbers<[1], [0], [0], [1], [0, 0, 1, 1], [], []>} : vector<8x8xbf16>, vector<8x8xbf16>, vector<8x8xf32> -> vector<8x8xf32>
    %99 = arith.addf %98, %23 : vector<8x8xf32>
    %cst_34 = arith.constant dense<0xFF800000> : vector<8xf32>
    %100 = vector.multi_reduction <maximumf>, %99, %cst_34 [1] : vector<8x8xf32> to vector<8xf32>
    %101 = vector.shape_cast %100 : vector<8xf32> to vector<8x1xf32>
    %102 = vector.broadcast %101 : vector<8x1xf32> to vector<8x8xf32>
    %103 = arith.subf %99, %102 : vector<8x8xf32>
    %104 = math.exp %103 : vector<8x8xf32>
    %cst_35 = arith.constant dense<0.000000e+00> : vector<8xf32>
    %105 = vector.multi_reduction <add>, %104, %cst_35 [1] : vector<8x8xf32> to vector<8xf32>
    %106 = vector.shape_cast %105 : vector<8xf32> to vector<8x1xf32>
    %107 = tpu.reciprocal %106 {approx = true} : vector<8x1xf32> -> vector<8x1xf32>
    %108 = vector.broadcast %107 : vector<8x1xf32> to vector<8x8xf32>
    %109 = arith.mulf %104, %108 : vector<8x8xf32>
    %110 = arith.truncf %109 : vector<8x8xf32> to vector<8x8xbf16>
    %111 = vector.extract_strided_slice %17 {offsets = [0, 24], sizes = [8, 8], strides = [1, 1]} : vector<8x32xf32> to vector<8x8xf32>
    %112 = arith.truncf %111 : vector<8x8xf32> to vector<8x8xbf16>
    %cst_36 = arith.constant dense<0.000000e+00> : vector<8x8xf32>
    %113 = tpu.matmul %110, %112, %cst_36 {dimension_numbers = #tpu.dot_dimension_numbers<[1], [0], [0], [1], [0, 0, 1, 1], [], []>} : vector<8x8xbf16>, vector<8x8xbf16>, vector<8x8xf32> -> vector<8x8xf32>
    %114 = arith.truncf %113 : vector<8x8xf32> to vector<8x8xbf16>
    %c0_37 = arith.constant 0 : index
    %c24 = arith.constant 24 : index
    %115 = vector.load %arg12[%c0_37, %c24] : memref<8x32xbf16, #tpu.memory_space<vmem>>, vector<8x8xbf16>
    tpu.vector_store %arg12[%c0_37, %c24], %114 {strides = array<i32>} : memref<8x32xbf16, #tpu.memory_space<vmem>>, vector<8x8xbf16>,
    %c0_38 = arith.constant 0 : index
    %c0_39 = arith.constant 0 : index
    %116 = vector.load %arg12[%c0_38, %c0_39] : memref<8x32xbf16, #tpu.memory_space<vmem>>, vector<8x32xbf16>
    %c0_40 = arith.constant 0 : index
    %c0_41 = arith.constant 0 : index
    %117 = vector.load %arg7[%c0_40, %c0_41] : memref<32x32xbf16, #tpu.memory_space<vmem>>, vector<32x32xbf16>
    %cst_42 = arith.constant dense<0.000000e+00> : vector<8x32xf32>
    %118 = tpu.matmul %116, %117, %cst_42 {dimension_numbers = #tpu.dot_dimension_numbers<[1], [0], [0], [1], [0, 0, 1, 1], [], []>} : vector<8x32xbf16>, vector<32x32xbf16>, vector<8x32xf32> -> vector<8x32xf32>
    %c0_43 = arith.constant 0 : index
    %c0_44 = arith.constant 0 : index
    %119 = vector.load %arg8[%c0_43, %c0_44] : memref<1x32xf32, #tpu.memory_space<vmem>>, vector<1x32xf32>
    %120 = vector.broadcast %119 : vector<1x32xf32> to vector<8x32xf32>
    %121 = arith.addf %118, %120 : vector<8x32xf32>
    %c0_45 = arith.constant 0 : index
    %c0_46 = arith.constant 0 : index
    %c0_47 = arith.constant 0 : index
    %122 = vector.load %arg1[%c0_45, %c0_46, %c0_47] : memref<1x8x32xbf16, #tpu.memory_space<vmem>>, vector<1x8x32xbf16>
    %123 = vector.shape_cast %122 : vector<1x8x32xbf16> to vector<8x32xbf16>
    %124 = arith.extf %123 : vector<8x32xbf16> to vector<8x32xf32>
    %125 = arith.addf %124, %121 : vector<8x32xf32>
    %cst_48 = arith.constant dense<0.000000e+00> : vector<8xf32>
    %126 = vector.multi_reduction <add>, %125, %cst_48 [1] : vector<8x32xf32> to vector<8xf32>
    %127 = vector.shape_cast %126 : vector<8xf32> to vector<8x1xf32>
    %cst_49 = arith.constant 3.200000e+01 : f32
    %128 = vector.broadcast %cst_49 : f32 to vector<8x1xf32>
    %129 = arith.divf %127, %128 : vector<8x1xf32>
    %130 = vector.broadcast %129 : vector<8x1xf32> to vector<8x32xf32>
    %131 = arith.subf %125, %130 : vector<8x32xf32>
    %132 = arith.mulf %131, %131 : vector<8x32xf32>
    %cst_50 = arith.constant dense<0.000000e+00> : vector<8xf32>
    %133 = vector.multi_reduction <add>, %132, %cst_50 [1] : vector<8x32xf32> to vector<8xf32>
    %134 = vector.shape_cast %133 : vector<8xf32> to vector<8x1xf32>
    %cst_51 = arith.constant 3.200000e+01 : f32
    %135 = vector.broadcast %cst_51 : f32 to vector<8x1xf32>
    %136 = arith.divf %134, %135 : vector<8x1xf32>
    %137 = vector.broadcast %129 : vector<8x1xf32> to vector<8x32xf32>
    %138 = arith.subf %125, %137 : vector<8x32xf32>
    %cst_52 = arith.constant 9.99999974E-6 : f32
    %139 = vector.broadcast %cst_52 : f32 to vector<8x1xf32>
    %140 = arith.addf %136, %139 : vector<8x1xf32>
    %141 = math.rsqrt %140 : vector<8x1xf32>
    %142 = vector.broadcast %141 : vector<8x1xf32> to vector<8x32xf32>
    %143 = arith.mulf %138, %142 : vector<8x32xf32>
    %c0_53 = arith.constant 0 : index
    %c0_54 = arith.constant 0 : index
    %144 = vector.load %arg9[%c0_53, %c0_54] : memref<1x32xf32, #tpu.memory_space<vmem>>, vector<1x32xf32>
    %145 = vector.broadcast %144 : vector<1x32xf32> to vector<8x32xf32>
    %146 = arith.mulf %143, %145 : vector<8x32xf32>
    %c0_55 = arith.constant 0 : index
    %c0_56 = arith.constant 0 : index
    %147 = vector.load %arg10[%c0_55, %c0_56] : memref<1x32xf32, #tpu.memory_space<vmem>>, vector<1x32xf32>
    %148 = vector.broadcast %147 : vector<1x32xf32> to vector<8x32xf32>
    %149 = arith.addf %146, %148 : vector<8x32xf32>
    %150 = arith.truncf %149 : vector<8x32xf32> to vector<8x32xbf16>
    %c0_57 = arith.constant 0 : index
    %c0_58 = arith.constant 0 : index
    %c0_59 = arith.constant 0 : index
    %151 = vector.load %arg11[%c0_57, %c0_58, %c0_59] : memref<1x8x32xbf16, #tpu.memory_space<vmem>>, vector<1x8x32xbf16>
    %152 = vector.shape_cast %151 : vector<1x8x32xbf16> to vector<8x32xbf16>
    %153 = vector.shape_cast %150 : vector<8x32xbf16> to vector<1x8x32xbf16>
    tpu.vector_store %arg11[%c0_57, %c0_58, %c0_59], %153 {strides = array<i32>} : memref<1x8x32xbf16, #tpu.memory_space<vmem>>, vector<1x8x32xbf16>,
    return
  }
  func.func @transform_0(%arg0: i32) -> (i32, i32, i32) {
    %c0_i32 = arith.constant 0 : i32
    %c0_i32_0 = arith.constant 0 : i32
    %c0_i32_1 = arith.constant 0 : i32
    return %arg0, %c0_i32, %c0_i32_0 : i32, i32, i32
  }
  func.func @transform_1(%arg0: i32) -> (i32, i32, i32) {
    %c0_i32 = arith.constant 0 : i32
    %c0_i32_0 = arith.constant 0 : i32
    %c0_i32_1 = arith.constant 0 : i32
    return %arg0, %c0_i32, %c0_i32_0 : i32, i32, i32
  }
  func.func @transform_2(%arg0: i32) -> (i32, i32) {
    %c0_i32 = arith.constant 0 : i32
    %c0_i32_0 = arith.constant 0 : i32
    %c0_i32_1 = arith.constant 0 : i32
    return %c0_i32, %c0_i32_0 : i32, i32
  }
  func.func @transform_3(%arg0: i32) -> (i32, i32) {
    %c0_i32 = arith.constant 0 : i32
    %c0_i32_0 = arith.constant 0 : i32
    %c0_i32_1 = arith.constant 0 : i32
    return %c0_i32, %c0_i32_0 : i32, i32
  }
  func.func @transform_4(%arg0: i32) -> (i32, i32) {
    %c0_i32 = arith.constant 0 : i32
    %c0_i32_0 = arith.constant 0 : i32
    %c0_i32_1 = arith.constant 0 : i32
    return %c0_i32, %c0_i32_0 : i32, i32
  }
  func.func @transform_5(%arg0: i32) -> (i32, i32) {
    %c0_i32 = arith.constant 0 : i32
    %c0_i32_0 = arith.constant 0 : i32
    %c0_i32_1 = arith.constant 0 : i32
    return %c0_i32, %c0_i32_0 : i32, i32
  }
  func.func @transform_6(%arg0: i32) -> (i32, i32) {
    %c0_i32 = arith.constant 0 : i32
    %c0_i32_0 = arith.constant 0 : i32
    %c0_i32_1 = arith.constant 0 : i32
    return %c0_i32, %c0_i32_0 : i32, i32
  }
  func.func @transform_7(%arg0: i32) -> (i32, i32) {
    %c0_i32 = arith.constant 0 : i32
    %c0_i32_0 = arith.constant 0 : i32
    %c0_i32_1 = arith.constant 0 : i32
    return %c0_i32, %c0_i32_0 : i32, i32
  }
  func.func @transform_8(%arg0: i32) -> (i32, i32) {
    %c0_i32 = arith.constant 0 : i32
    %c0_i32_0 = arith.constant 0 : i32
    %c0_i32_1 = arith.constant 0 : i32
    return %c0_i32, %c0_i32_0 : i32, i32
  }
  func.func @transform_9(%arg0: i32) -> (i32, i32) {
    %c0_i32 = arith.constant 0 : i32
    %c0_i32_0 = arith.constant 0 : i32
    %c0_i32_1 = arith.constant 0 : i32
    return %c0_i32, %c0_i32_0 : i32, i32
  }
  func.func @transform_10(%arg0: i32) -> (i32, i32, i32) {
    %c0_i32 = arith.constant 0 : i32
    %c0_i32_0 = arith.constant 0 : i32
    %c0_i32_1 = arith.constant 0 : i32
    return %arg0, %c0_i32, %c0_i32_0 : i32, i32, i32
  }
}

module attributes {stable_mosaic.version = 11 : i64} {
  func.func @_mha_kernel(%arg0: i32, %arg1: memref<1x8x32xbf16, #tpu.memory_space<vmem>>, %arg2: memref<1x8x32xbf16, #tpu.memory_space<vmem>>, %arg3: memref<32x32xbf16, #tpu.memory_space<vmem>>, %arg4: memref<1x32xf32, #tpu.memory_space<vmem>>, %arg5: memref<32x64xbf16, #tpu.memory_space<vmem>>, %arg6: memref<1x64xf32, #tpu.memory_space<vmem>>, %arg7: memref<32x32xbf16, #tpu.memory_space<vmem>>, %arg8: memref<1x32xf32, #tpu.memory_space<vmem>>, %arg9: memref<1x32xf32, #tpu.memory_space<vmem>>, %arg10: memref<1x32xf32, #tpu.memory_space<vmem>>, %arg11: memref<1x8x32xbf16, #tpu.memory_space<vmem>>, %arg12: memref<1x4x8x8xf32, #tpu.memory_space<vmem>>, %arg13: memref<8x32xbf16, #tpu.memory_space<vmem>>) attributes {dimension_semantics = [#tpu.dimension_semantics<parallel>], iteration_bounds = array<i64: 2>, scalar_prefetch = 0 : i64, scratch_operands = 1 : i64, tpu.core_type = #tpu.core_type<tc>, window_params = [{transform_indices = @transform_0, window_bounds = array<i64: 1, 8, 32>}, {transform_indices = @transform_1, window_bounds = array<i64: 1, 8, 32>}, {pipeline_mode = #tpu.pipeline_mode<synchronous>, transform_indices = @transform_2, window_bounds = array<i64: 32, 32>}, {pipeline_mode = #tpu.pipeline_mode<synchronous>, transform_indices = @transform_3, window_bounds = array<i64: 1, 32>}, {pipeline_mode = #tpu.pipeline_mode<synchronous>, transform_indices = @transform_4, window_bounds = array<i64: 32, 64>}, {pipeline_mode = #tpu.pipeline_mode<synchronous>, transform_indices = @transform_5, window_bounds = array<i64: 1, 64>}, {pipeline_mode = #tpu.pipeline_mode<synchronous>, transform_indices = @transform_6, window_bounds = array<i64: 32, 32>}, {pipeline_mode = #tpu.pipeline_mode<synchronous>, transform_indices = @transform_7, window_bounds = array<i64: 1, 32>}, {pipeline_mode = #tpu.pipeline_mode<synchronous>, transform_indices = @transform_8, window_bounds = array<i64: 1, 32>}, {pipeline_mode = #tpu.pipeline_mode<synchronous>, transform_indices = @transform_9, window_bounds = array<i64: 1, 32>}, {transform_indices = @transform_10, window_bounds = array<i64: 1, 8, 32>}, {transform_indices = @transform_11, window_bounds = array<i64: 1, 4, 8, 8>}]} {
    %c0 = arith.constant 0 : index
    %c0_0 = arith.constant 0 : index
    %c0_1 = arith.constant 0 : index
    %0 = vector.load %arg1[%c0, %c0_0, %c0_1] : memref<1x8x32xbf16, #tpu.memory_space<vmem>>, vector<1x8x32xbf16>
    %1 = vector.shape_cast %0 : vector<1x8x32xbf16> to vector<8x32xbf16>
    %c0_2 = arith.constant 0 : index
    %c0_3 = arith.constant 0 : index
    %c0_4 = arith.constant 0 : index
    %2 = vector.load %arg2[%c0_2, %c0_3, %c0_4] : memref<1x8x32xbf16, #tpu.memory_space<vmem>>, vector<1x8x32xbf16>
    %3 = vector.shape_cast %2 : vector<1x8x32xbf16> to vector<8x32xbf16>
    %c0_5 = arith.constant 0 : index
    %c0_6 = arith.constant 0 : index
    %4 = vector.load %arg3[%c0_5, %c0_6] : memref<32x32xbf16, #tpu.memory_space<vmem>>, vector<32x32xbf16>
    %cst = arith.constant dense<0.000000e+00> : vector<8x32xf32>
    %5 = tpu.matmul %1, %4, %cst {dimension_numbers = #tpu.dot_dimension_numbers<[1], [0], [0], [1], [0, 0, 1, 1], [], []>} : vector<8x32xbf16>, vector<32x32xbf16>, vector<8x32xf32> -> vector<8x32xf32>
    %c0_7 = arith.constant 0 : index
    %c0_8 = arith.constant 0 : index
    %6 = vector.load %arg4[%c0_7, %c0_8] : memref<1x32xf32, #tpu.memory_space<vmem>>, vector<1x32xf32>
    %7 = vector.broadcast %6 : vector<1x32xf32> to vector<8x32xf32>
    %8 = arith.addf %5, %7 : vector<8x32xf32>
    %cst_9 = arith.constant 0.353553385 : f32
    %9 = vector.broadcast %cst_9 : f32 to vector<8x32xf32>
    %10 = arith.mulf %8, %9 : vector<8x32xf32>
    %c0_10 = arith.constant 0 : index
    %c0_11 = arith.constant 0 : index
    %11 = vector.load %arg5[%c0_10, %c0_11] : memref<32x64xbf16, #tpu.memory_space<vmem>>, vector<32x64xbf16>
    %cst_12 = arith.constant dense<0.000000e+00> : vector<8x64xf32>
    %12 = tpu.matmul %3, %11, %cst_12 {dimension_numbers = #tpu.dot_dimension_numbers<[1], [0], [0], [1], [0, 0, 1, 1], [], []>} : vector<8x32xbf16>, vector<32x64xbf16>, vector<8x64xf32> -> vector<8x64xf32>
    %c0_13 = arith.constant 0 : index
    %c0_14 = arith.constant 0 : index
    %13 = vector.load %arg6[%c0_13, %c0_14] : memref<1x64xf32, #tpu.memory_space<vmem>>, vector<1x64xf32>
    %14 = vector.broadcast %13 : vector<1x64xf32> to vector<8x64xf32>
    %15 = arith.addf %12, %14 : vector<8x64xf32>
    %16 = vector.extract_strided_slice %15 {offsets = [0, 0], sizes = [8, 32], strides = [1, 1]} : vector<8x64xf32> to vector<8x32xf32>
    %17 = vector.extract_strided_slice %15 {offsets = [0, 32], sizes = [8, 32], strides = [1, 1]} : vector<8x64xf32> to vector<8x32xf32>
    %18 = vector.extract_strided_slice %10 {offsets = [0, 0], sizes = [8, 8], strides = [1, 1]} : vector<8x32xf32> to vector<8x8xf32>
    %19 = arith.truncf %18 : vector<8x8xf32> to vector<8x8xbf16>
    %20 = vector.extract_strided_slice %16 {offsets = [0, 0], sizes = [8, 8], strides = [1, 1]} : vector<8x32xf32> to vector<8x8xf32>
    %21 = arith.truncf %20 : vector<8x8xf32> to vector<8x8xbf16>
    %22 = tpu.transpose %21, [1, 0] : vector<8x8xbf16> -> vector<8x8xbf16>
    %cst_15 = arith.constant dense<0.000000e+00> : vector<8x8xf32>
    %23 = tpu.matmul %19, %22, %cst_15 {dimension_numbers = #tpu.dot_dimension_numbers<[1], [0], [0], [1], [0, 0, 1, 1], [], []>} : vector<8x8xbf16>, vector<8x8xbf16>, vector<8x8xf32> -> vector<8x8xf32>
    %cst_16 = arith.constant dense<0xFF800000> : vector<8xf32>
    %24 = vector.multi_reduction <maximumf>, %23, %cst_16 [1] : vector<8x8xf32> to vector<8xf32>
    %25 = vector.shape_cast %24 : vector<8xf32> to vector<8x1xf32>
    %26 = vector.broadcast %25 : vector<8x1xf32> to vector<8x8xf32>
    %27 = arith.subf %23, %26 : vector<8x8xf32>
    %28 = math.exp %27 : vector<8x8xf32>
    %cst_17 = arith.constant dense<0.000000e+00> : vector<8xf32>
    %29 = vector.multi_reduction <add>, %28, %cst_17 [1] : vector<8x8xf32> to vector<8xf32>
    %30 = vector.shape_cast %29 : vector<8xf32> to vector<8x1xf32>
    %31 = vector.broadcast %30 : vector<8x1xf32> to vector<8x8xf32>
    %32 = arith.divf %28, %31 : vector<8x8xf32>
    %c0_18 = arith.constant 0 : index
    %c0_19 = arith.constant 0 : index
    %c0_20 = arith.constant 0 : index
    %c0_21 = arith.constant 0 : index
    %33 = vector.load %arg12[%c0_18, %c0_19, %c0_20, %c0_21] : memref<1x4x8x8xf32, #tpu.memory_space<vmem>>, vector<1x1x8x8xf32>
    %34 = vector.shape_cast %33 : vector<1x1x8x8xf32> to vector<8x8xf32>
    %35 = vector.shape_cast %32 : vector<8x8xf32> to vector<1x1x8x8xf32>
    tpu.vector_store %arg12[%c0_18, %c0_19, %c0_20, %c0_21], %35 {strides = array<i32>} : memref<1x4x8x8xf32, #tpu.memory_space<vmem>>, vector<1x1x8x8xf32>,
    %36 = arith.truncf %32 : vector<8x8xf32> to vector<8x8xbf16>
    %37 = vector.extract_strided_slice %17 {offsets = [0, 0], sizes = [8, 8], strides = [1, 1]} : vector<8x32xf32> to vector<8x8xf32>
    %38 = arith.truncf %37 : vector<8x8xf32> to vector<8x8xbf16>
    %cst_22 = arith.constant dense<0.000000e+00> : vector<8x8xf32>
    %39 = tpu.matmul %36, %38, %cst_22 {dimension_numbers = #tpu.dot_dimension_numbers<[1], [0], [0], [1], [0, 0, 1, 1], [], []>} : vector<8x8xbf16>, vector<8x8xbf16>, vector<8x8xf32> -> vector<8x8xf32>
    %40 = arith.truncf %39 : vector<8x8xf32> to vector<8x8xbf16>
    %c0_23 = arith.constant 0 : index
    %c0_24 = arith.constant 0 : index
    %41 = vector.load %arg13[%c0_23, %c0_24] : memref<8x32xbf16, #tpu.memory_space<vmem>>, vector<8x8xbf16>
    tpu.vector_store %arg13[%c0_23, %c0_24], %40 {strides = array<i32>} : memref<8x32xbf16, #tpu.memory_space<vmem>>, vector<8x8xbf16>,
    %42 = vector.extract_strided_slice %10 {offsets = [0, 8], sizes = [8, 8], strides = [1, 1]} : vector<8x32xf32> to vector<8x8xf32>
    %43 = arith.truncf %42 : vector<8x8xf32> to vector<8x8xbf16>
    %44 = vector.extract_strided_slice %16 {offsets = [0, 8], sizes = [8, 8], strides = [1, 1]} : vector<8x32xf32> to vector<8x8xf32>
    %45 = arith.truncf %44 : vector<8x8xf32> to vector<8x8xbf16>
    %46 = tpu.transpose %45, [1, 0] : vector<8x8xbf16> -> vector<8x8xbf16>
    %cst_25 = arith.constant dense<0.000000e+00> : vector<8x8xf32>
    %47 = tpu.matmul %43, %46, %cst_25 {dimension_numbers = #tpu.dot_dimension_numbers<[1], [0], [0], [1], [0, 0, 1, 1], [], []>} : vector<8x8xbf16>, vector<8x8xbf16>, vector<8x8xf32> -> vector<8x8xf32>
    %cst_26 = arith.constant dense<0xFF800000> : vector<8xf32>
    %48 = vector.multi_reduction <maximumf>, %47, %cst_26 [1] : vector<8x8xf32> to vector<8xf32>
    %49 = vector.shape_cast %48 : vector<8xf32> to vector<8x1xf32>
    %50 = vector.broadcast %49 : vector<8x1xf32> to vector<8x8xf32>
    %51 = arith.subf %47, %50 : vector<8x8xf32>
    %52 = math.exp %51 : vector<8x8xf32>
    %cst_27 = arith.constant dense<0.000000e+00> : vector<8xf32>
    %53 = vector.multi_reduction <add>, %52, %cst_27 [1] : vector<8x8xf32> to vector<8xf32>
    %54 = vector.shape_cast %53 : vector<8xf32> to vector<8x1xf32>
    %55 = vector.broadcast %54 : vector<8x1xf32> to vector<8x8xf32>
    %56 = arith.divf %52, %55 : vector<8x8xf32>
    %c0_28 = arith.constant 0 : index
    %c1 = arith.constant 1 : index
    %c0_29 = arith.constant 0 : index
    %c0_30 = arith.constant 0 : index
    %57 = vector.load %arg12[%c0_28, %c1, %c0_29, %c0_30] : memref<1x4x8x8xf32, #tpu.memory_space<vmem>>, vector<1x1x8x8xf32>
    %58 = vector.shape_cast %57 : vector<1x1x8x8xf32> to vector<8x8xf32>
    %59 = vector.shape_cast %56 : vector<8x8xf32> to vector<1x1x8x8xf32>
    tpu.vector_store %arg12[%c0_28, %c1, %c0_29, %c0_30], %59 {strides = array<i32>} : memref<1x4x8x8xf32, #tpu.memory_space<vmem>>, vector<1x1x8x8xf32>,
    %60 = arith.truncf %56 : vector<8x8xf32> to vector<8x8xbf16>
    %61 = vector.extract_strided_slice %17 {offsets = [0, 8], sizes = [8, 8], strides = [1, 1]} : vector<8x32xf32> to vector<8x8xf32>
    %62 = arith.truncf %61 : vector<8x8xf32> to vector<8x8xbf16>
    %cst_31 = arith.constant dense<0.000000e+00> : vector<8x8xf32>
    %63 = tpu.matmul %60, %62, %cst_31 {dimension_numbers = #tpu.dot_dimension_numbers<[1], [0], [0], [1], [0, 0, 1, 1], [], []>} : vector<8x8xbf16>, vector<8x8xbf16>, vector<8x8xf32> -> vector<8x8xf32>
    %64 = arith.truncf %63 : vector<8x8xf32> to vector<8x8xbf16>
    %c0_32 = arith.constant 0 : index
    %c8 = arith.constant 8 : index
    %65 = vector.load %arg13[%c0_32, %c8] : memref<8x32xbf16, #tpu.memory_space<vmem>>, vector<8x8xbf16>
    tpu.vector_store %arg13[%c0_32, %c8], %64 {strides = array<i32>} : memref<8x32xbf16, #tpu.memory_space<vmem>>, vector<8x8xbf16>,
    %66 = vector.extract_strided_slice %10 {offsets = [0, 16], sizes = [8, 8], strides = [1, 1]} : vector<8x32xf32> to vector<8x8xf32>
    %67 = arith.truncf %66 : vector<8x8xf32> to vector<8x8xbf16>
    %68 = vector.extract_strided_slice %16 {offsets = [0, 16], sizes = [8, 8], strides = [1, 1]} : vector<8x32xf32> to vector<8x8xf32>
    %69 = arith.truncf %68 : vector<8x8xf32> to vector<8x8xbf16>
    %70 = tpu.transpose %69, [1, 0] : vector<8x8xbf16> -> vector<8x8xbf16>
    %cst_33 = arith.constant dense<0.000000e+00> : vector<8x8xf32>
    %71 = tpu.matmul %67, %70, %cst_33 {dimension_numbers = #tpu.dot_dimension_numbers<[1], [0], [0], [1], [0, 0, 1, 1], [], []>} : vector<8x8xbf16>, vector<8x8xbf16>, vector<8x8xf32> -> vector<8x8xf32>
    %cst_34 = arith.constant dense<0xFF800000> : vector<8xf32>
    %72 = vector.multi_reduction <maximumf>, %71, %cst_34 [1] : vector<8x8xf32> to vector<8xf32>
    %73 = vector.shape_cast %72 : vector<8xf32> to vector<8x1xf32>
    %74 = vector.broadcast %73 : vector<8x1xf32> to vector<8x8xf32>
    %75 = arith.subf %71, %74 : vector<8x8xf32>
    %76 = math.exp %75 : vector<8x8xf32>
    %cst_35 = arith.constant dense<0.000000e+00> : vector<8xf32>
    %77 = vector.multi_reduction <add>, %76, %cst_35 [1] : vector<8x8xf32> to vector<8xf32>
    %78 = vector.shape_cast %77 : vector<8xf32> to vector<8x1xf32>
    %79 = vector.broadcast %78 : vector<8x1xf32> to vector<8x8xf32>
    %80 = arith.divf %76, %79 : vector<8x8xf32>
    %c0_36 = arith.constant 0 : index
    %c2 = arith.constant 2 : index
    %c0_37 = arith.constant 0 : index
    %c0_38 = arith.constant 0 : index
    %81 = vector.load %arg12[%c0_36, %c2, %c0_37, %c0_38] : memref<1x4x8x8xf32, #tpu.memory_space<vmem>>, vector<1x1x8x8xf32>
    %82 = vector.shape_cast %81 : vector<1x1x8x8xf32> to vector<8x8xf32>
    %83 = vector.shape_cast %80 : vector<8x8xf32> to vector<1x1x8x8xf32>
    tpu.vector_store %arg12[%c0_36, %c2, %c0_37, %c0_38], %83 {strides = array<i32>} : memref<1x4x8x8xf32, #tpu.memory_space<vmem>>, vector<1x1x8x8xf32>,
    %84 = arith.truncf %80 : vector<8x8xf32> to vector<8x8xbf16>
    %85 = vector.extract_strided_slice %17 {offsets = [0, 16], sizes = [8, 8], strides = [1, 1]} : vector<8x32xf32> to vector<8x8xf32>
    %86 = arith.truncf %85 : vector<8x8xf32> to vector<8x8xbf16>
    %cst_39 = arith.constant dense<0.000000e+00> : vector<8x8xf32>
    %87 = tpu.matmul %84, %86, %cst_39 {dimension_numbers = #tpu.dot_dimension_numbers<[1], [0], [0], [1], [0, 0, 1, 1], [], []>} : vector<8x8xbf16>, vector<8x8xbf16>, vector<8x8xf32> -> vector<8x8xf32>
    %88 = arith.truncf %87 : vector<8x8xf32> to vector<8x8xbf16>
    %c0_40 = arith.constant 0 : index
    %c16 = arith.constant 16 : index
    %89 = vector.load %arg13[%c0_40, %c16] : memref<8x32xbf16, #tpu.memory_space<vmem>>, vector<8x8xbf16>
    tpu.vector_store %arg13[%c0_40, %c16], %88 {strides = array<i32>} : memref<8x32xbf16, #tpu.memory_space<vmem>>, vector<8x8xbf16>,
    %90 = vector.extract_strided_slice %10 {offsets = [0, 24], sizes = [8, 8], strides = [1, 1]} : vector<8x32xf32> to vector<8x8xf32>
    %91 = arith.truncf %90 : vector<8x8xf32> to vector<8x8xbf16>
    %92 = vector.extract_strided_slice %16 {offsets = [0, 24], sizes = [8, 8], strides = [1, 1]} : vector<8x32xf32> to vector<8x8xf32>
    %93 = arith.truncf %92 : vector<8x8xf32> to vector<8x8xbf16>
    %94 = tpu.transpose %93, [1, 0] : vector<8x8xbf16> -> vector<8x8xbf16>
    %cst_41 = arith.constant dense<0.000000e+00> : vector<8x8xf32>
    %95 = tpu.matmul %91, %94, %cst_41 {dimension_numbers = #tpu.dot_dimension_numbers<[1], [0], [0], [1], [0, 0, 1, 1], [], []>} : vector<8x8xbf16>, vector<8x8xbf16>, vector<8x8xf32> -> vector<8x8xf32>
    %cst_42 = arith.constant dense<0xFF800000> : vector<8xf32>
    %96 = vector.multi_reduction <maximumf>, %95, %cst_42 [1] : vector<8x8xf32> to vector<8xf32>
    %97 = vector.shape_cast %96 : vector<8xf32> to vector<8x1xf32>
    %98 = vector.broadcast %97 : vector<8x1xf32> to vector<8x8xf32>
    %99 = arith.subf %95, %98 : vector<8x8xf32>
    %100 = math.exp %99 : vector<8x8xf32>
    %cst_43 = arith.constant dense<0.000000e+00> : vector<8xf32>
    %101 = vector.multi_reduction <add>, %100, %cst_43 [1] : vector<8x8xf32> to vector<8xf32>
    %102 = vector.shape_cast %101 : vector<8xf32> to vector<8x1xf32>
    %103 = vector.broadcast %102 : vector<8x1xf32> to vector<8x8xf32>
    %104 = arith.divf %100, %103 : vector<8x8xf32>
    %c0_44 = arith.constant 0 : index
    %c3 = arith.constant 3 : index
    %c0_45 = arith.constant 0 : index
    %c0_46 = arith.constant 0 : index
    %105 = vector.load %arg12[%c0_44, %c3, %c0_45, %c0_46] : memref<1x4x8x8xf32, #tpu.memory_space<vmem>>, vector<1x1x8x8xf32>
    %106 = vector.shape_cast %105 : vector<1x1x8x8xf32> to vector<8x8xf32>
    %107 = vector.shape_cast %104 : vector<8x8xf32> to vector<1x1x8x8xf32>
    tpu.vector_store %arg12[%c0_44, %c3, %c0_45, %c0_46], %107 {strides = array<i32>} : memref<1x4x8x8xf32, #tpu.memory_space<vmem>>, vector<1x1x8x8xf32>,
    %108 = arith.truncf %104 : vector<8x8xf32> to vector<8x8xbf16>
    %109 = vector.extract_strided_slice %17 {offsets = [0, 24], sizes = [8, 8], strides = [1, 1]} : vector<8x32xf32> to vector<8x8xf32>
    %110 = arith.truncf %109 : vector<8x8xf32> to vector<8x8xbf16>
    %cst_47 = arith.constant dense<0.000000e+00> : vector<8x8xf32>
    %111 = tpu.matmul %108, %110, %cst_47 {dimension_numbers = #tpu.dot_dimension_numbers<[1], [0], [0], [1], [0, 0, 1, 1], [], []>} : vector<8x8xbf16>, vector<8x8xbf16>, vector<8x8xf32> -> vector<8x8xf32>
    %112 = arith.truncf %111 : vector<8x8xf32> to vector<8x8xbf16>
    %c0_48 = arith.constant 0 : index
    %c24 = arith.constant 24 : index
    %113 = vector.load %arg13[%c0_48, %c24] : memref<8x32xbf16, #tpu.memory_space<vmem>>, vector<8x8xbf16>
    tpu.vector_store %arg13[%c0_48, %c24], %112 {strides = array<i32>} : memref<8x32xbf16, #tpu.memory_space<vmem>>, vector<8x8xbf16>,
    %c0_49 = arith.constant 0 : index
    %c0_50 = arith.constant 0 : index
    %114 = vector.load %arg13[%c0_49, %c0_50] : memref<8x32xbf16, #tpu.memory_space<vmem>>, vector<8x32xbf16>
    %c0_51 = arith.constant 0 : index
    %c0_52 = arith.constant 0 : index
    %115 = vector.load %arg7[%c0_51, %c0_52] : memref<32x32xbf16, #tpu.memory_space<vmem>>, vector<32x32xbf16>
    %cst_53 = arith.constant dense<0.000000e+00> : vector<8x32xf32>
    %116 = tpu.matmul %114, %115, %cst_53 {dimension_numbers = #tpu.dot_dimension_numbers<[1], [0], [0], [1], [0, 0, 1, 1], [], []>} : vector<8x32xbf16>, vector<32x32xbf16>, vector<8x32xf32> -> vector<8x32xf32>
    %c0_54 = arith.constant 0 : index
    %c0_55 = arith.constant 0 : index
    %117 = vector.load %arg8[%c0_54, %c0_55] : memref<1x32xf32, #tpu.memory_space<vmem>>, vector<1x32xf32>
    %118 = vector.broadcast %117 : vector<1x32xf32> to vector<8x32xf32>
    %119 = arith.addf %116, %118 : vector<8x32xf32>
    %c0_56 = arith.constant 0 : index
    %c0_57 = arith.constant 0 : index
    %c0_58 = arith.constant 0 : index
    %120 = vector.load %arg1[%c0_56, %c0_57, %c0_58] : memref<1x8x32xbf16, #tpu.memory_space<vmem>>, vector<1x8x32xbf16>
    %121 = vector.shape_cast %120 : vector<1x8x32xbf16> to vector<8x32xbf16>
    %122 = arith.extf %121 : vector<8x32xbf16> to vector<8x32xf32>
    %123 = arith.addf %122, %119 : vector<8x32xf32>
    %cst_59 = arith.constant dense<0.000000e+00> : vector<8xf32>
    %124 = vector.multi_reduction <add>, %123, %cst_59 [1] : vector<8x32xf32> to vector<8xf32>
    %125 = vector.shape_cast %124 : vector<8xf32> to vector<8x1xf32>
    %cst_60 = arith.constant 3.200000e+01 : f32
    %126 = vector.broadcast %cst_60 : f32 to vector<8x1xf32>
    %127 = arith.divf %125, %126 : vector<8x1xf32>
    %128 = vector.broadcast %127 : vector<8x1xf32> to vector<8x32xf32>
    %129 = arith.subf %123, %128 : vector<8x32xf32>
    %130 = arith.mulf %129, %129 : vector<8x32xf32>
    %cst_61 = arith.constant dense<0.000000e+00> : vector<8xf32>
    %131 = vector.multi_reduction <add>, %130, %cst_61 [1] : vector<8x32xf32> to vector<8xf32>
    %132 = vector.shape_cast %131 : vector<8xf32> to vector<8x1xf32>
    %cst_62 = arith.constant 3.200000e+01 : f32
    %133 = vector.broadcast %cst_62 : f32 to vector<8x1xf32>
    %134 = arith.divf %132, %133 : vector<8x1xf32>
    %135 = vector.broadcast %127 : vector<8x1xf32> to vector<8x32xf32>
    %136 = arith.subf %123, %135 : vector<8x32xf32>
    %cst_63 = arith.constant 9.99999974E-6 : f32
    %137 = vector.broadcast %cst_63 : f32 to vector<8x1xf32>
    %138 = arith.addf %134, %137 : vector<8x1xf32>
    %139 = math.rsqrt %138 : vector<8x1xf32>
    %140 = vector.broadcast %139 : vector<8x1xf32> to vector<8x32xf32>
    %141 = arith.mulf %136, %140 : vector<8x32xf32>
    %c0_64 = arith.constant 0 : index
    %c0_65 = arith.constant 0 : index
    %142 = vector.load %arg9[%c0_64, %c0_65] : memref<1x32xf32, #tpu.memory_space<vmem>>, vector<1x32xf32>
    %143 = vector.broadcast %142 : vector<1x32xf32> to vector<8x32xf32>
    %144 = arith.mulf %141, %143 : vector<8x32xf32>
    %c0_66 = arith.constant 0 : index
    %c0_67 = arith.constant 0 : index
    %145 = vector.load %arg10[%c0_66, %c0_67] : memref<1x32xf32, #tpu.memory_space<vmem>>, vector<1x32xf32>
    %146 = vector.broadcast %145 : vector<1x32xf32> to vector<8x32xf32>
    %147 = arith.addf %144, %146 : vector<8x32xf32>
    %148 = arith.truncf %147 : vector<8x32xf32> to vector<8x32xbf16>
    %c0_68 = arith.constant 0 : index
    %c0_69 = arith.constant 0 : index
    %c0_70 = arith.constant 0 : index
    %149 = vector.load %arg11[%c0_68, %c0_69, %c0_70] : memref<1x8x32xbf16, #tpu.memory_space<vmem>>, vector<1x8x32xbf16>
    %150 = vector.shape_cast %149 : vector<1x8x32xbf16> to vector<8x32xbf16>
    %151 = vector.shape_cast %148 : vector<8x32xbf16> to vector<1x8x32xbf16>
    tpu.vector_store %arg11[%c0_68, %c0_69, %c0_70], %151 {strides = array<i32>} : memref<1x8x32xbf16, #tpu.memory_space<vmem>>, vector<1x8x32xbf16>,
    return
  }
  func.func @transform_0(%arg0: i32) -> (i32, i32, i32) {
    %c0_i32 = arith.constant 0 : i32
    %c0_i32_0 = arith.constant 0 : i32
    %c0_i32_1 = arith.constant 0 : i32
    return %arg0, %c0_i32, %c0_i32_0 : i32, i32, i32
  }
  func.func @transform_1(%arg0: i32) -> (i32, i32, i32) {
    %c0_i32 = arith.constant 0 : i32
    %c0_i32_0 = arith.constant 0 : i32
    %c0_i32_1 = arith.constant 0 : i32
    return %arg0, %c0_i32, %c0_i32_0 : i32, i32, i32
  }
  func.func @transform_2(%arg0: i32) -> (i32, i32) {
    %c0_i32 = arith.constant 0 : i32
    %c0_i32_0 = arith.constant 0 : i32
    %c0_i32_1 = arith.constant 0 : i32
    return %c0_i32, %c0_i32_0 : i32, i32
  }
  func.func @transform_3(%arg0: i32) -> (i32, i32) {
    %c0_i32 = arith.constant 0 : i32
    %c0_i32_0 = arith.constant 0 : i32
    %c0_i32_1 = arith.constant 0 : i32
    return %c0_i32, %c0_i32_0 : i32, i32
  }
  func.func @transform_4(%arg0: i32) -> (i32, i32) {
    %c0_i32 = arith.constant 0 : i32
    %c0_i32_0 = arith.constant 0 : i32
    %c0_i32_1 = arith.constant 0 : i32
    return %c0_i32, %c0_i32_0 : i32, i32
  }
  func.func @transform_5(%arg0: i32) -> (i32, i32) {
    %c0_i32 = arith.constant 0 : i32
    %c0_i32_0 = arith.constant 0 : i32
    %c0_i32_1 = arith.constant 0 : i32
    return %c0_i32, %c0_i32_0 : i32, i32
  }
  func.func @transform_6(%arg0: i32) -> (i32, i32) {
    %c0_i32 = arith.constant 0 : i32
    %c0_i32_0 = arith.constant 0 : i32
    %c0_i32_1 = arith.constant 0 : i32
    return %c0_i32, %c0_i32_0 : i32, i32
  }
  func.func @transform_7(%arg0: i32) -> (i32, i32) {
    %c0_i32 = arith.constant 0 : i32
    %c0_i32_0 = arith.constant 0 : i32
    %c0_i32_1 = arith.constant 0 : i32
    return %c0_i32, %c0_i32_0 : i32, i32
  }
  func.func @transform_8(%arg0: i32) -> (i32, i32) {
    %c0_i32 = arith.constant 0 : i32
    %c0_i32_0 = arith.constant 0 : i32
    %c0_i32_1 = arith.constant 0 : i32
    return %c0_i32, %c0_i32_0 : i32, i32
  }
  func.func @transform_9(%arg0: i32) -> (i32, i32) {
    %c0_i32 = arith.constant 0 : i32
    %c0_i32_0 = arith.constant 0 : i32
    %c0_i32_1 = arith.constant 0 : i32
    return %c0_i32, %c0_i32_0 : i32, i32
  }
  func.func @transform_10(%arg0: i32) -> (i32, i32, i32) {
    %c0_i32 = arith.constant 0 : i32
    %c0_i32_0 = arith.constant 0 : i32
    %c0_i32_1 = arith.constant 0 : i32
    return %arg0, %c0_i32, %c0_i32_0 : i32, i32, i32
  }
  func.func @transform_11(%arg0: i32) -> (i32, i32, i32, i32) {
    %c0_i32 = arith.constant 0 : i32
    %c0_i32_0 = arith.constant 0 : i32
    %c0_i32_1 = arith.constant 0 : i32
    %c0_i32_2 = arith.constant 0 : i32
    return %arg0, %c0_i32, %c0_i32_0, %c0_i32_1 : i32, i32, i32, i32
  }
}

module attributes {stable_mosaic.version = 11 : i64} {
  func.func @_linear_kernel(%arg0: i32, %arg1: i32, %arg2: i32, %arg3: memref<16x32xbf16, #tpu.memory_space<vmem>>, %arg4: memref<32x50xbf16, #tpu.memory_space<vmem>>, %arg5: memref<1x50xf32, #tpu.memory_space<vmem>>, %arg6: memref<16x50xf32, #tpu.memory_space<vmem>>, %arg7: memref<16x50xf32, #tpu.memory_space<vmem>>) attributes {dimension_semantics = [#tpu.dimension_semantics<parallel>, #tpu.dimension_semantics<parallel>, #tpu.dimension_semantics<arbitrary>], iteration_bounds = array<i64: 1, 1, 1>, scalar_prefetch = 0 : i64, scratch_operands = 1 : i64, tpu.core_type = #tpu.core_type<tc>, window_params = [{transform_indices = @transform_0, window_bounds = array<i64: 16, 32>}, {transform_indices = @transform_1, window_bounds = array<i64: 32, 50>}, {transform_indices = @transform_2, window_bounds = array<i64: 1, 50>}, {transform_indices = @transform_3, window_bounds = array<i64: 16, 50>}]} {
    %c0_i32 = arith.constant 0 : i32
    %0 = arith.cmpi eq, %arg2, %c0_i32 : i32
    %1 = arith.extui %0 : i1 to i32
    %c0_i32_0 = arith.constant 0 : i32
    %2 = arith.cmpi ne, %1, %c0_i32_0 : i32
    scf.if %2 {
      %cst_10 = arith.constant 0.000000e+00 : f32
      %12 = vector.broadcast %cst_10 : f32 to vector<16x50xf32>
      %c0_11 = arith.constant 0 : index
      %c0_12 = arith.constant 0 : index
      %13 = vector.load %arg7[%c0_11, %c0_12] : memref<16x50xf32, #tpu.memory_space<vmem>>, vector<16x50xf32>
      tpu.vector_store %arg7[%c0_11, %c0_12], %12 {strides = array<i32>} : memref<16x50xf32, #tpu.memory_space<vmem>>, vector<16x50xf32>,
    } else {
    }
    %c0 = arith.constant 0 : index
    %c0_1 = arith.constant 0 : index
    %3 = vector.load %arg7[%c0, %c0_1] : memref<16x50xf32, #tpu.memory_space<vmem>>, vector<16x50xf32>
    %c0_2 = arith.constant 0 : index
    %c0_3 = arith.constant 0 : index
    %4 = vector.load %arg3[%c0_2, %c0_3] : memref<16x32xbf16, #tpu.memory_space<vmem>>, vector<16x32xbf16>
    %c0_4 = arith.constant 0 : index
    %c0_5 = arith.constant 0 : index
    %5 = vector.load %arg4[%c0_4, %c0_5] : memref<32x50xbf16, #tpu.memory_space<vmem>>, vector<32x50xbf16>
    %cst = arith.constant dense<0.000000e+00> : vector<16x50xf32>
    %6 = tpu.matmul %4, %5, %cst {dimension_numbers = #tpu.dot_dimension_numbers<[1], [0], [0], [1], [0, 0, 1, 1], [], []>} : vector<16x32xbf16>, vector<32x50xbf16>, vector<16x50xf32> -> vector<16x50xf32>
    %7 = arith.addf %3, %6 : vector<16x50xf32>
    %c0_6 = arith.constant 0 : index
    %c0_7 = arith.constant 0 : index
    %8 = vector.load %arg7[%c0_6, %c0_7] : memref<16x50xf32, #tpu.memory_space<vmem>>, vector<16x50xf32>
    tpu.vector_store %arg7[%c0_6, %c0_7], %7 {strides = array<i32>} : memref<16x50xf32, #tpu.memory_space<vmem>>, vector<16x50xf32>,
    %c0_i32_8 = arith.constant 0 : i32
    %9 = arith.cmpi eq, %arg2, %c0_i32_8 : i32
    %10 = arith.extui %9 : i1 to i32
    %c0_i32_9 = arith.constant 0 : i32
    %11 = arith.cmpi ne, %10, %c0_i32_9 : i32
    scf.if %11 {
      %c0_10 = arith.constant 0 : index
      %c0_11 = arith.constant 0 : index
      %12 = vector.load %arg7[%c0_10, %c0_11] : memref<16x50xf32, #tpu.memory_space<vmem>>, vector<16x50xf32>
      %c0_12 = arith.constant 0 : index
      %c0_13 = arith.constant 0 : index
      %13 = vector.load %arg5[%c0_12, %c0_13] : memref<1x50xf32, #tpu.memory_space<vmem>>, vector<1x50xf32>
      %14 = vector.broadcast %13 : vector<1x50xf32> to vector<16x50xf32>
      %15 = arith.addf %12, %14 : vector<16x50xf32>
      %c0_14 = arith.constant 0 : index
      %c0_15 = arith.constant 0 : index
      %16 = vector.load %arg6[%c0_14, %c0_15] : memref<16x50xf32, #tpu.memory_space<vmem>>, vector<16x50xf32>
      tpu.vector_store %arg6[%c0_14, %c0_15], %15 {strides = array<i32>} : memref<16x50xf32, #tpu.memory_space<vmem>>, vector<16x50xf32>,
    } else {
    }
    return
  }
  func.func @transform_0(%arg0: i32, %arg1: i32, %arg2: i32) -> (i32, i32) {
    %c0_i32 = arith.constant 0 : i32
    return %arg0, %arg2 : i32, i32
  }
  func.func @transform_1(%arg0: i32, %arg1: i32, %arg2: i32) -> (i32, i32) {
    %c0_i32 = arith.constant 0 : i32
    return %arg2, %arg1 : i32, i32
  }
  func.func @transform_2(%arg0: i32, %arg1: i32, %arg2: i32) -> (i32, i32) {
    %c0_i32 = arith.constant 0 : i32
    %c0_i32_0 = arith.constant 0 : i32
    return %c0_i32, %arg1 : i32, i32
  }
  func.func @transform_3(%arg0: i32, %arg1: i32, %arg2: i32) -> (i32, i32) {
    %c0_i32 = arith.constant 0 : i32
    return %arg0, %arg1 : i32, i32
  }
}

</mosaic_0001>

<llo_original>
// kernel: closed_call.24
$region0: #{closed_call.24}
  #allocation0 [shape = 'u32[]', space=smem, size = 0x4, offset = 0x4, fixed_abs, tag = 'smem constant byte address 0x4 - core index']
  #allocation1 [shape = 'u32[144,128]{1,0:T(1,128)}', space=vmem, size = 0x12000, scoped, tag = 'internal scratch']
  #allocation2 [shape = 'f32[16,64]{1,0:T(8,128)}', space=vmem, size = 0x2000, scoped, tag = 'scratch operand']
  %s0 = inlined_call_operand.vmem [shape: bf16[16,32], index: 0, kind: input, shape index: {}]
  %s1 = inlined_call_operand.vmem [shape: bf16[32,64], index: 1, kind: input, shape index: {}]
  %s2 = inlined_call_operand.vmem [shape: f32[1,64], index: 2, kind: input, shape index: {}]
  %s3 = inlined_call_operand.vmem [shape: bf16[16,64], index: 3, kind: output, shape index: {}]
  %s4 = sld [smem:[#allocation0]]
  $region30: #{closed_call.24} parent=0
    _
  %s6 = ssub.s32 1, %s4
  %s7 = scalar_select 0, %s6, %s4
  // Predicated region
  $region2: #{closed_call.24} parent=0 // pred_check
    _
  $region3: #{closed_call.24} parent=0 // pred_check_branch
    %9 = sbr.rel (0) target = $region5
  $region4: #{closed_call.24} parent=0 // pred_region
    _
  $region5: #{closed_call.24} parent=0 // pred_fallthru
    _
  // Predicated region
  $region6: #{closed_call.24} parent=0 // pred_check
    _
  $region7: #{closed_call.24} parent=0 // pred_check_branch
    %11 = sbr.rel (0) target = $region9
  $region8: #{closed_call.24} parent=0 // pred_region
    _
  $region9: #{closed_call.24} parent=0 // pred_fallthru
    _
  // Predicated region
  $region10: #{closed_call.24} parent=0 // pred_check
    _
  $region11: #{closed_call.24} parent=0 // pred_check_branch
    %13 = sbr.rel (0) target = $region13
  $region12: #{closed_call.24} parent=0 // pred_region
    _
  $region13: #{closed_call.24} parent=0 // pred_fallthru
    _
  %p15 = scmp.eq.s32.totalorder 0, 0
  // Predicated region
  $region14: #{closed_call.24} parent=0 // pred_check
    %p16 = pneg %p15
  $region15: #{closed_call.24} parent=0 // pred_check_branch
    %18 = sbr.rel (%p16) target = $region17
  $region16: #{closed_call.24} parent=0 // pred_region
    %vm19 = vcmask 523264
    %20 = vst.msk [vmem:[#allocation2] sm:$0xff] %vm19, 0.0
    %21 = vst.msk [vmem:[#allocation2 + $0x8] sm:$0xff] %vm19, 0.0
  $region17: #{closed_call.24} parent=0 // pred_fallthru
    _
  %v22 = vld [vmem:[#allocation2] sm:$0xff]
  %v23 = vld [vmem:[#allocation2 + $0x8] sm:$0xff]
  %v24 = vld [vmem:[%s0] sm:$0xf]
  %v25 = vld [vmem:[%s0 + $0x4] sm:$0xf]
  %v26 = vld [vmem:[%s1] sm:$0xf]
  %v27 = vld [vmem:[%s1 + $0x4] sm:$0xf]
  %v28 = vld [vmem:[%s1 + $0x8] sm:$0xf]
  %v29 = vld [vmem:[%s1 + $0xc] sm:$0xf]
  %v32 = vunpack.c.l.b16 %v24
  %v33 = vunpack.c.l.b16 %v25
  %v34 = vpack.c.b16 %v33, %v32
  %v39 = vunpack.c.l.b16 %v26
  %v40 = vunpack.c.l.b16 %v27
  %v41 = vunpack.c.l.b16 %v28
  %v42 = vunpack.c.l.b16 %v29
  %v43 = vpack.c.b16 %v40, %v39
  %v44 = vpack.c.b16 %v42, %v41
  %vm47 = vcmask 261120
  %v49 = vsel %vm47, %v34, 0
  %51 = vmatprep.subr.bf16.mxu0 0
  %52 = vmatpush1.bf16.msra.mxu0 0
  %53 = vmatprep.subr.bf16.mxu0 0
  %54 = vmatpush1.bf16.msra.mxu0 0
  %55 = vmatprep.subr.bf16.mxu0 0
  %56 = vmatpush1.bf16.msra.mxu0 0
  %57 = vmatprep.subr.bf16.mxu0 0
  %58 = vmatpush1.bf16.msra.mxu0 0
  %59 = vmatprep.subr.bf16.mxu0 0
  %60 = vmatpush1.bf16.msra.mxu0 0
  %61 = vmatprep.subr.bf16.mxu0 0
  %62 = vmatpush1.bf16.msra.mxu0 0
  %63 = vmatprep.subr.bf16.mxu0 0
  %64 = vmatpush1.bf16.msra.mxu0 %v44
  %65 = vmatprep.subr.bf16.mxu0 0
  %66 = vmatpush1.bf16.msra.mxu0 %v43
  %67 = vmatprep.subr.bf16.mxu0 0
  %68 = vmatpush2.bf16.msra.mxu0 0
  %69 = vmatprep.subr.bf16.mxu0 0
  %70 = vmatpush2.bf16.msra.mxu0 0
  %71 = vmatprep.subr.bf16.mxu0 0
  %72 = vmatpush2.bf16.msra.mxu0 0
  %73 = vmatprep.subr.bf16.mxu0 0
  %74 = vmatpush2.bf16.msra.mxu0 0
  %75 = vmatprep.subr.bf16.mxu0 0
  %76 = vmatpush2.bf16.msra.mxu0 0
  %77 = vmatprep.subr.bf16.mxu0 0
  %78 = vmatpush2.bf16.msra.mxu0 0
  %79 = vmatprep.subr.bf16.mxu0 0
  %80 = vmatpush2.bf16.msra.mxu0 0
  %81 = vmatprep.subr.bf16.mxu0 0
  %82 = vmatpush2.bf16.msra.mxu0 0
  %83 = vmatprep.mubr.bf16.mxu0 0
  %84 = vmatmul.mubr.bf16.gmra.mxu0 %v49
  %v85 = vpop.f32.mrf.mxu0
  %v86 = vadd.f32 0.0, %v85
  %v87 = vpop.f32.mrf.mxu0
  %v88 = vpop.f32.mrf.mxu0
  %v89 = vadd.f32 0.0, %v88
  %v90 = vpop.f32.mrf.mxu0
  %91 = vdwg.mxu0
  %v92 = vadd.f32 %v22, %v86
  %v93 = vadd.f32 %v23, %v89
  %vm94 = vcmask 523264
  %95 = vst.msk [vmem:[#allocation2] sm:$0xff] %vm94, %v92
  %96 = vst.msk [vmem:[#allocation2 + $0x8] sm:$0xff] %vm94, %v93
  // Predicated region
  $region18: #{closed_call.24} parent=0 // pred_check
    %p97 = pneg %p15
  $region19: #{closed_call.24} parent=0 // pred_check_branch
    %99 = sbr.rel (%p97) target = $region21
  $region20: #{closed_call.24} parent=0 // pred_region
    %v100 = vld [vmem:[#allocation2] sm:$0xff]
    %v101 = vld [vmem:[#allocation2 + $0x8] sm:$0xff]
    %v102 = vld [vmem:[%s2] sm:$0x1]
    %v104 = vlaneseq
    %v105 = vshrl.u32 %v104, 7
    %v106 = vsub.s32 0, %v105
    %v107 = vrot.slane %v102, %v106
    %v109 = vadd.f32 %v100, %v107
    %v110 = vadd.f32 %v101, %v107
    %v111 = vmul.f32 %v109, 0.5
    %v112 = vmul.f32 %v110, 0.5
    %v113 = vmul.f32 %v109, 0.044715
    %v114 = vmul.f32 %v110, 0.044715
    %v115 = vmul.f32 %v113, %v109
    %v116 = vmul.f32 %v114, %v110
    %v117 = vmul.f32 %v115, %v109
    %v118 = vmul.f32 %v116, %v110
    %v119 = vadd.f32 %v109, %v117
    %v120 = vadd.f32 %v110, %v118
    %v121 = vmul.f32 %v119, 0.7978846
    %v122 = vmul.f32 %v120, 0.7978846
    %v123 = vtanh.pop %v121
    %v124 = vtanh.pop %v122
    %v125 = vadd.f32 %v123, 1.0
    %v126 = vadd.f32 %v124, 1.0
    %v127 = vmul.f32 %v111, %v125
    %v128 = vmul.f32 %v112, %v126
    %v129 = vpack.c.bf16 %v128, %v127
    %v131 = vunpack.c.l.b16 %v129
    %v132 = vunpack.c.h.b16 %v129
    %v133 = vpack.c.b16 %v131, %v131
    %v134 = vpack.c.b16 %v132, %v132
    %vm137 = vcmask 519168
    %138 = vst.msk [vmem:[%s3] sm:$0xf] %vm137, %v133
    %139 = vst.msk [vmem:[%s3 + $0x4] sm:$0xf] %vm137, %v134
  $region21: #{closed_call.24} parent=0 // pred_fallthru
    _
  // Predicated region
  $region22: #{closed_call.24} parent=0 // pred_check
    _
  $region23: #{closed_call.24} parent=0 // pred_check_branch
    %141 = sbr.rel (0) target = $region25
  $region24: #{closed_call.24} parent=0 // pred_region
    _
  $region25: #{closed_call.24} parent=0 // pred_fallthru
    _
  // Predicated region
  $region26: #{closed_call.24} parent=0 // pred_check
    _
  $region27: #{closed_call.24} parent=0 // pred_check_branch
    %143 = sbr.rel (0) target = $region29
  $region28: #{closed_call.24} parent=0 // pred_region
    _
  $region29: #{closed_call.24} parent=0 // pred_fallthru
    _

// kernel: nlg_bert_forward.7
$region0: #{nlg_bert_forward.7}
  #allocation0 [shape = 'u32[]', space=smem, size = 0x4, offset = 0x4, fixed_abs, tag = 'smem constant byte address 0x4 - core index']
  #allocation1 [shape = 'u32[144,128]{1,0:T(1,128)}', space=vmem, size = 0x12000, scoped, tag = 'internal scratch']
  %s0 = inlined_call_operand.vmem [shape: f32[16,32], index: 0, kind: input, shape index: {}]
  %s1 = inlined_call_operand.vmem [shape: f32[1,32], index: 1, kind: input, shape index: {}]
  %s2 = inlined_call_operand.vmem [shape: f32[1,32], index: 2, kind: input, shape index: {}]
  %s3 = inlined_call_operand.vmem [shape: bf16[16,32], index: 3, kind: output, shape index: {}]
  %s4 = sld [smem:[#allocation0]]
  $region22: #{nlg_bert_forward.7} parent=0
    _
  %s6 = ssub.s32 1, %s4
  %s7 = scalar_select 0, %s6, %s4
  // Predicated region
  $region2: #{nlg_bert_forward.7} parent=0 // pred_check
    _
  $region3: #{nlg_bert_forward.7} parent=0 // pred_check_branch
    %9 = sbr.rel (0) target = $region5
  $region4: #{nlg_bert_forward.7} parent=0 // pred_region
    _
  $region5: #{nlg_bert_forward.7} parent=0 // pred_fallthru
    _
  // Predicated region
  $region6: #{nlg_bert_forward.7} parent=0 // pred_check
    _
  $region7: #{nlg_bert_forward.7} parent=0 // pred_check_branch
    %11 = sbr.rel (0) target = $region9
  $region8: #{nlg_bert_forward.7} parent=0 // pred_region
    _
  $region9: #{nlg_bert_forward.7} parent=0 // pred_fallthru
    _
  // Predicated region
  $region10: #{nlg_bert_forward.7} parent=0 // pred_check
    _
  $region11: #{nlg_bert_forward.7} parent=0 // pred_check_branch
    %13 = sbr.rel (0) target = $region13
  $region12: #{nlg_bert_forward.7} parent=0 // pred_region
    _
  $region13: #{nlg_bert_forward.7} parent=0 // pred_fallthru
    _
  %v14 = vld [vmem:[%s0] sm:$0xff]
  %v15 = vld [vmem:[%s0 + $0x8] sm:$0xff]
  %vm16 = vcmask 261120
  %v17 = vsel %vm16, %v14, 0.0
  %18 = vadd.xlane.f32.xlu0 %v17
  %v19 = vpop.xlane.xlu0 %18
  %v20 = vsel %vm16, %v15, 0.0
  %21 = vadd.xlane.f32.xlu0 %v20
  %v22 = vpop.xlane.xlu0 %21
  %v23 = vrcp.pop 32.0
  %v24 = vmul.f32 %v19, %v23
  %v25 = vmul.f32 %v22, %v23
  %v26 = vsub.f32 %v14, %v24
  %v27 = vsub.f32 %v15, %v25
  %v28 = vmul.f32 %v26, %v26
  %v29 = vmul.f32 %v27, %v27
  %v30 = vsel %vm16, %v28, 0.0
  %31 = vadd.xlane.f32.xlu0 %v30
  %v32 = vpop.xlane.xlu0 %31
  %v33 = vsel %vm16, %v29, 0.0
  %34 = vadd.xlane.f32.xlu0 %v33
  %v35 = vpop.xlane.xlu0 %34
  %v36 = vmul.f32 %v32, %v23
  %v37 = vmul.f32 %v35, %v23
  %v38 = vadd.f32 %v36, 1e-12
  %v39 = vadd.f32 %v37, 1e-12
  %v40 = vrsqrt.pop %v38
  %v41 = vrsqrt.pop %v39
  %v42 = vmul.f32 %v26, %v40
  %v43 = vmul.f32 %v27, %v41
  %v44 = vld [vmem:[%s1] sm:$0x1]
  %v46 = vlaneseq
  %v47 = vshrl.u32 %v46, 7
  %v48 = vsub.s32 0, %v47
  %v49 = vrot.slane %v44, %v48
  %v51 = vmul.f32 %v42, %v49
  %v52 = vmul.f32 %v43, %v49
  %v53 = vld [vmem:[%s2] sm:$0x1]
  %v55 = vlaneseq
  %v56 = vshrl.u32 %v55, 7
  %v57 = vsub.s32 0, %v56
  %v58 = vrot.slane %v53, %v57
  %v60 = vadd.f32 %v51, %v58
  %v61 = vadd.f32 %v52, %v58
  %v62 = vpack.c.bf16 %v61, %v60
  %v64 = vunpack.c.l.b16 %v62
  %v65 = vunpack.c.h.b16 %v62
  %v66 = vpack.c.b16 %v64, %v64
  %v67 = vpack.c.b16 %v65, %v65
  %vm70 = vcmask 257024
  %71 = vst.msk [vmem:[%s3] sm:$0xf] %vm70, %v66
  %72 = vst.msk [vmem:[%s3 + $0x4] sm:$0xf] %vm70, %v67
  // Predicated region
  $region14: #{nlg_bert_forward.7} parent=0 // pred_check
    _
  $region15: #{nlg_bert_forward.7} parent=0 // pred_check_branch
    %74 = sbr.rel (0) target = $region17
  $region16: #{nlg_bert_forward.7} parent=0 // pred_region
    _
  $region17: #{nlg_bert_forward.7} parent=0 // pred_fallthru
    _
  // Predicated region
  $region18: #{nlg_bert_forward.7} parent=0 // pred_check
    _
  $region19: #{nlg_bert_forward.7} parent=0 // pred_check_branch
    %76 = sbr.rel (0) target = $region21
  $region20: #{nlg_bert_forward.7} parent=0 // pred_region
    _
  $region21: #{nlg_bert_forward.7} parent=0 // pred_fallthru
    _

// kernel: closed_call.25
$region0: #{closed_call.25}
  #allocation0 [shape = 'u32[]', space=smem, size = 0x4, offset = 0x4, fixed_abs, tag = 'smem constant byte address 0x4 - core index']
  #allocation1 [shape = 'u32[144,128]{1,0:T(1,128)}', space=vmem, size = 0x12000, scoped, tag = 'internal scratch']
  #allocation2 [shape = 'f32[16,32]{1,0:T(8,128)}', space=vmem, size = 0x2000, scoped, tag = 'scratch operand']
  %s0 = inlined_call_operand.vmem [shape: bf16[16,64], index: 0, kind: input, shape index: {}]
  %s1 = inlined_call_operand.vmem [shape: bf16[64,32], index: 1, kind: input, shape index: {}]
  %s2 = inlined_call_operand.vmem [shape: f32[1,32], index: 2, kind: input, shape index: {}]
  %s3 = inlined_call_operand.vmem [shape: bf16[16,32], index: 3, kind: input, shape index: {}]
  %s4 = inlined_call_operand.vmem [shape: f32[1,32], index: 4, kind: input, shape index: {}]
  %s5 = inlined_call_operand.vmem [shape: f32[1,32], index: 5, kind: input, shape index: {}]
  %s6 = inlined_call_operand.vmem [shape: bf16[16,32], index: 6, kind: output, shape index: {}]
  %s7 = sld [smem:[#allocation0]]
  $region42: #{closed_call.25} parent=0
    _
  %s9 = ssub.s32 1, %s7
  %s10 = scalar_select 0, %s9, %s7
  // Predicated region
  $region2: #{closed_call.25} parent=0 // pred_check
    _
  $region3: #{closed_call.25} parent=0 // pred_check_branch
    %12 = sbr.rel (0) target = $region5
  $region4: #{closed_call.25} parent=0 // pred_region
    _
  $region5: #{closed_call.25} parent=0 // pred_fallthru
    _
  // Predicated region
  $region6: #{closed_call.25} parent=0 // pred_check
    _
  $region7: #{closed_call.25} parent=0 // pred_check_branch
    %14 = sbr.rel (0) target = $region9
  $region8: #{closed_call.25} parent=0 // pred_region
    _
  $region9: #{closed_call.25} parent=0 // pred_fallthru
    _
  // Predicated region
  $region10: #{closed_call.25} parent=0 // pred_check
    _
  $region11: #{closed_call.25} parent=0 // pred_check_branch
    %16 = sbr.rel (0) target = $region13
  $region12: #{closed_call.25} parent=0 // pred_region
    _
  $region13: #{closed_call.25} parent=0 // pred_fallthru
    _
  // Predicated region
  $region14: #{closed_call.25} parent=0 // pred_check
    _
  $region15: #{closed_call.25} parent=0 // pred_check_branch
    %18 = sbr.rel (0) target = $region17
  $region16: #{closed_call.25} parent=0 // pred_region
    _
  $region17: #{closed_call.25} parent=0 // pred_fallthru
    _
  // Predicated region
  $region18: #{closed_call.25} parent=0 // pred_check
    _
  $region19: #{closed_call.25} parent=0 // pred_check_branch
    %20 = sbr.rel (0) target = $region21
  $region20: #{closed_call.25} parent=0 // pred_region
    _
  $region21: #{closed_call.25} parent=0 // pred_fallthru
    _
  // Predicated region
  $region22: #{closed_call.25} parent=0 // pred_check
    _
  $region23: #{closed_call.25} parent=0 // pred_check_branch
    %22 = sbr.rel (0) target = $region25
  $region24: #{closed_call.25} parent=0 // pred_region
    _
  $region25: #{closed_call.25} parent=0 // pred_fallthru
    _
  %p24 = scmp.eq.s32.totalorder 0, 0
  // Predicated region
  $region26: #{closed_call.25} parent=0 // pred_check
    %p25 = pneg %p24
  $region27: #{closed_call.25} parent=0 // pred_check_branch
    %27 = sbr.rel (%p25) target = $region29
  $region28: #{closed_call.25} parent=0 // pred_region
    %vm28 = vcmask 261120
    %29 = vst.msk [vmem:[#allocation2] sm:$0xff] %vm28, 0.0
    %30 = vst.msk [vmem:[#allocation2 + $0x8] sm:$0xff] %vm28, 0.0
  $region29: #{closed_call.25} parent=0 // pred_fallthru
    _
  %v31 = vld [vmem:[#allocation2] sm:$0xff]
  %v32 = vld [vmem:[#allocation2 + $0x8] sm:$0xff]
  %v33 = vld [vmem:[%s0] sm:$0xf]
  %v34 = vld [vmem:[%s0 + $0x4] sm:$0xf]
  %v35 = vld [vmem:[%s1] sm:$0xf]
  %v36 = vld [vmem:[%s1 + $0x4] sm:$0xf]
  %v37 = vld [vmem:[%s1 + $0x8] sm:$0xf]
  %v38 = vld [vmem:[%s1 + $0xc] sm:$0xf]
  %v39 = vld [vmem:[%s1 + $0x10] sm:$0xf]
  %v40 = vld [vmem:[%s1 + $0x14] sm:$0xf]
  %v41 = vld [vmem:[%s1 + $0x18] sm:$0xf]
  %v42 = vld [vmem:[%s1 + $0x1c] sm:$0xf]
  %v45 = vunpack.c.l.b16 %v33
  %v46 = vunpack.c.l.b16 %v34
  %v47 = vpack.c.b16 %v46, %v45
  %v56 = vunpack.c.l.b16 %v35
  %v57 = vunpack.c.l.b16 %v36
  %v58 = vunpack.c.l.b16 %v37
  %v59 = vunpack.c.l.b16 %v38
  %v60 = vunpack.c.l.b16 %v39
  %v61 = vunpack.c.l.b16 %v40
  %v62 = vunpack.c.l.b16 %v41
  %v63 = vunpack.c.l.b16 %v42
  %v64 = vpack.c.b16 %v57, %v56
  %v65 = vpack.c.b16 %v59, %v58
  %v66 = vpack.c.b16 %v61, %v60
  %v67 = vpack.c.b16 %v63, %v62
  %vm72 = vcmask 523264
  %v74 = vsel %vm72, %v47, 0
  %76 = vmatprep.subr.bf16.mxu0 0
  %77 = vmatpush1.bf16.msra.mxu0 0
  %78 = vmatprep.subr.bf16.mxu0 0
  %79 = vmatpush1.bf16.msra.mxu0 0
  %80 = vmatprep.subr.bf16.mxu0 0
  %81 = vmatpush1.bf16.msra.mxu0 0
  %82 = vmatprep.subr.bf16.mxu0 0
  %83 = vmatpush1.bf16.msra.mxu0 0
  %84 = vmatprep.subr.bf16.mxu0 0
  %85 = vmatpush1.bf16.msra.mxu0 %v67
  %86 = vmatprep.subr.bf16.mxu0 0
  %87 = vmatpush1.bf16.msra.mxu0 %v66
  %88 = vmatprep.subr.bf16.mxu0 0
  %89 = vmatpush1.bf16.msra.mxu0 %v65
  %90 = vmatprep.subr.bf16.mxu0 0
  %91 = vmatpush1.bf16.msra.mxu0 %v64
  %92 = vmatprep.subr.bf16.mxu0 0
  %93 = vmatpush2.bf16.msra.mxu0 0
  %94 = vmatprep.subr.bf16.mxu0 0
  %95 = vmatpush2.bf16.msra.mxu0 0
  %96 = vmatprep.subr.bf16.mxu0 0
  %97 = vmatpush2.bf16.msra.mxu0 0
  %98 = vmatprep.subr.bf16.mxu0 0
  %99 = vmatpush2.bf16.msra.mxu0 0
  %100 = vmatprep.subr.bf16.mxu0 0
  %101 = vmatpush2.bf16.msra.mxu0 0
  %102 = vmatprep.subr.bf16.mxu0 0
  %103 = vmatpush2.bf16.msra.mxu0 0
  %104 = vmatprep.subr.bf16.mxu0 0
  %105 = vmatpush2.bf16.msra.mxu0 0
  %106 = vmatprep.subr.bf16.mxu0 0
  %107 = vmatpush2.bf16.msra.mxu0 0
  %108 = vmatprep.mubr.bf16.mxu0 0
  %109 = vmatmul.mubr.bf16.gmra.mxu0 %v74
  %v110 = vpop.f32.mrf.mxu0
  %v111 = vadd.f32 0.0, %v110
  %v112 = vpop.f32.mrf.mxu0
  %v113 = vpop.f32.mrf.mxu0
  %v114 = vadd.f32 0.0, %v113
  %v115 = vpop.f32.mrf.mxu0
  %116 = vdwg.mxu0
  %v117 = vadd.f32 %v31, %v111
  %v118 = vadd.f32 %v32, %v114
  %vm119 = vcmask 261120
  %120 = vst.msk [vmem:[#allocation2] sm:$0xff] %vm119, %v117
  %121 = vst.msk [vmem:[#allocation2 + $0x8] sm:$0xff] %vm119, %v118
  // Predicated region
  $region30: #{closed_call.25} parent=0 // pred_check
    %p122 = pneg %p24
  $region31: #{closed_call.25} parent=0 // pred_check_branch
    %124 = sbr.rel (%p122) target = $region33
  $region32: #{closed_call.25} parent=0 // pred_region
    %v125 = vld [vmem:[#allocation2] sm:$0xff]
    %v126 = vld [vmem:[#allocation2 + $0x8] sm:$0xff]
    %v127 = vld [vmem:[%s2] sm:$0x1]
    %v129 = vlaneseq
    %v130 = vshrl.u32 %v129, 7
    %v131 = vsub.s32 0, %v130
    %v132 = vrot.slane %v127, %v131
    %v134 = vadd.f32 %v125, %v132
    %v135 = vadd.f32 %v126, %v132
    %v136 = vld [vmem:[%s3] sm:$0xf]
    %v137 = vld [vmem:[%s3 + $0x4] sm:$0xf]
    %v138 = vunpack.c.l.bf16 %v136
    %v139 = vunpack.c.l.bf16 %v137
    %v140 = vadd.f32 %v134, %v138
    %v141 = vadd.f32 %v135, %v139
    %v142 = vsel %vm119, %v140, 0.0
    %143 = vadd.xlane.f32.xlu0 %v142
    %v144 = vpop.xlane.xlu0 %143
    %v145 = vsel %vm119, %v141, 0.0
    %146 = vadd.xlane.f32.xlu0 %v145
    %v147 = vpop.xlane.xlu0 %146
    %v148 = vrcp.pop 32.0
    %v149 = vmul.f32 %v144, %v148
    %v150 = vmul.f32 %v147, %v148
    %v151 = vsub.f32 %v140, %v149
    %v152 = vsub.f32 %v141, %v150
    %v153 = vmul.f32 %v151, %v151
    %v154 = vmul.f32 %v152, %v152
    %v155 = vsel %vm119, %v153, 0.0
    %156 = vadd.xlane.f32.xlu0 %v155
    %v157 = vpop.xlane.xlu0 %156
    %v158 = vsel %vm119, %v154, 0.0
    %159 = vadd.xlane.f32.xlu0 %v158
    %v160 = vpop.xlane.xlu0 %159
    %v161 = vmul.f32 %v157, %v148
    %v162 = vmul.f32 %v160, %v148
    %v163 = vadd.f32 %v161, 1e-05
    %v164 = vadd.f32 %v162, 1e-05
    %v165 = vrsqrt.pop %v163
    %v166 = vrsqrt.pop %v164
    %v167 = vmul.f32 %v151, %v165
    %v168 = vmul.f32 %v152, %v166
    %v169 = vld [vmem:[%s4] sm:$0x1]
    %v171 = vlaneseq
    %v172 = vshrl.u32 %v171, 7
    %v173 = vsub.s32 0, %v172
    %v174 = vrot.slane %v169, %v173
    %v176 = vmul.f32 %v167, %v174
    %v177 = vmul.f32 %v168, %v174
    %v178 = vld [vmem:[%s5] sm:$0x1]
    %v180 = vlaneseq
    %v181 = vshrl.u32 %v180, 7
    %v182 = vsub.s32 0, %v181
    %v183 = vrot.slane %v178, %v182
    %v185 = vadd.f32 %v176, %v183
    %v186 = vadd.f32 %v177, %v183
    %v187 = vpack.c.bf16 %v186, %v185
    %v189 = vunpack.c.l.b16 %v187
    %v190 = vunpack.c.h.b16 %v187
    %v191 = vpack.c.b16 %v189, %v189
    %v192 = vpack.c.b16 %v190, %v190
    %vm195 = vcmask 257024
    %196 = vst.msk [vmem:[%s6] sm:$0xf] %vm195, %v191
    %197 = vst.msk [vmem:[%s6 + $0x4] sm:$0xf] %vm195, %v192
  $region33: #{closed_call.25} parent=0 // pred_fallthru
    _
  // Predicated region
  $region34: #{closed_call.25} parent=0 // pred_check
    _
  $region35: #{closed_call.25} parent=0 // pred_check_branch
    %199 = sbr.rel (0) target = $region37
  $region36: #{closed_call.25} parent=0 // pred_region
    _
  $region37: #{closed_call.25} parent=0 // pred_fallthru
    _
  // Predicated region
  $region38: #{closed_call.25} parent=0 // pred_check
    _
  $region39: #{closed_call.25} parent=0 // pred_check_branch
    %201 = sbr.rel (0) target = $region41
  $region40: #{closed_call.25} parent=0 // pred_region
    _
  $region41: #{closed_call.25} parent=0 // pred_fallthru
    _

// kernel: closed_call.23
$region0: #{closed_call.23}
  #allocation0 [shape = 'u32[]', space=smem, size = 0x4, offset = 0x4, fixed_abs, tag = 'smem constant byte address 0x4 - core index']
  #allocation1 [shape = 'u32[144,128]{1,0:T(1,128)}', space=vmem, size = 0x12000, scoped, tag = 'internal scratch']
  #allocation2 [shape = 'bf16[8,32]{1,0:T(8,128)(2,1)}', space=vmem, size = 0x800, scoped, tag = 'scratch operand']
  %s0 = inlined_call_operand.vmem [shape: bf16[2,8,32], index: 0, kind: input, shape index: {}, may-alias: {0,1}]
  %s1 = inlined_call_operand.vmem [shape: bf16[2,8,32], index: 1, kind: input, shape index: {}, may-alias: {0,1}]
  %s2 = inlined_call_operand.vmem [shape: bf16[32,32], index: 2, kind: input, shape index: {}]
  %s3 = inlined_call_operand.vmem [shape: f32[1,32], index: 3, kind: input, shape index: {}]
  %s4 = inlined_call_operand.vmem [shape: bf16[32,64], index: 4, kind: input, shape index: {}]
  %s5 = inlined_call_operand.vmem [shape: f32[1,64], index: 5, kind: input, shape index: {}]
  %s6 = inlined_call_operand.vmem [shape: bf16[32,32], index: 6, kind: input, shape index: {}]
  %s7 = inlined_call_operand.vmem [shape: f32[1,32], index: 7, kind: input, shape index: {}]
  %s8 = inlined_call_operand.vmem [shape: f32[1,32], index: 8, kind: input, shape index: {}]
  %s9 = inlined_call_operand.vmem [shape: f32[1,32], index: 9, kind: input, shape index: {}]
  %s10 = inlined_call_operand.vmem [shape: bf16[2,8,32], index: 10, kind: output, shape index: {}]
  %s11 = sld [smem:[#allocation0]]
  $region73: #{closed_call.23} parent=0
    _
  %s13 = ssub.s32 1, %s11
  %s14 = scalar_select 0, %s13, %s11
  loop: start=0, step=1, limit=4
  $region2: #{closed_call.23} parent=0 // loop_pre_header
    _
  $region3: #{closed_call.23} parent=0 // loop_header
    %s16 = sphi 0, %s20
    %p17 = scmp.ge.s32.totalorder %s16, 4
    %s26 = sphi 0, %s28
    %s29 = sphi 0, %s26
    %s30 = sphi 0, %s29
    %s46 = sphi 0, %s30
    %s52 = sphi 0, %s54
    %s55 = sphi 0, %s52
    %s56 = sphi 0, %s55
    %s72 = sphi 0, %s56
    %s76 = sphi 0, %s76
    %s78 = sphi 0, %s76
    %s79 = sphi 0, %s78
    %s93 = sphi 0, %s79
    %s97 = sphi 0, %s97
    %s99 = sphi 0, %s97
    %s100 = sphi 0, %s99
    %s114 = sphi 0, %s100
    %s118 = sphi 0, %s118
    %s120 = sphi 0, %s118
    %s121 = sphi 0, %s120
    %s135 = sphi 0, %s121
    %s139 = sphi 0, %s139
    %s141 = sphi 0, %s139
    %s142 = sphi 0, %s141
    %s156 = sphi 0, %s142
    %s160 = sphi 0, %s160
    %s162 = sphi 0, %s160
    %s163 = sphi 0, %s162
    %s177 = sphi 0, %s163
    %s181 = sphi 0, %s181
    %s183 = sphi 0, %s181
    %s184 = sphi 0, %s183
    %s198 = sphi 0, %s184
    %s202 = sphi 0, %s202
    %s204 = sphi 0, %s202
    %s205 = sphi 0, %s204
    %s219 = sphi 0, %s205
    %s223 = sphi 0, %s223
    %s225 = sphi 0, %s223
    %s226 = sphi 0, %s225
    %s240 = sphi 0, %s226
    %s246 = sphi 0, %s248
    %s249 = sphi 0, %s246
    %s250 = sphi 0, %s249
    %s266 = sphi 0, %s250
  $region4: #{closed_call.23} parent=0 // loop_header_branch
    %19 = sbr.rel (%p17) target = $region8
  $region5: #{closed_call.23} parent=0 // loop_body
    %s21 = ssub.s32 %s16, 1
    %s22 = ssub.s32 %s16, 2
    %s23 = sadd.s32 %s16, 1
    %s24 = ssub.s32 %s16, %s23
    %p25 = scmp.eq.s32.totalorder %s24, 0
    %s27 = sadd.s32 %s26, 1
    %s28 = scalar_select %p25, %s26, %s27
    %p31 = pneg %p25
    %p32 = scmp.eq.s32.totalorder %s16, 1
    %p33 = por %p31, %p32
    %p34 = scmp.ne.s32.totalorder %s26, %s29
    %p35 = scmp.eq.s32.totalorder %s16, 0
    %p36 = por %p34, %p35
    %p37 = scmp.ne.s32.totalorder %s26, %s29
    %p38 = scmp.eq.s32.totalorder %s21, 1
    %p39 = por %p37, %p38
    %p40 = scmp.ne.s32.totalorder %s29, %s30
    %p41 = scmp.eq.s32.totalorder %s21, 0
    %p42 = por %p40, %p41
    %p43 = scmp.ne.s32.totalorder %s29, %s30
    %p44 = scmp.eq.s32.totalorder %s22, 1
    %p45 = por %p43, %p44
    %p47 = scmp.ne.s32.totalorder %s30, %s46
    %p48 = scmp.eq.s32.totalorder %s22, 0
    %p49 = por %p47, %p48
    %s50 = ssub.s32 %s16, %s23
    %p51 = scmp.eq.s32.totalorder %s50, 0
    %s53 = sadd.s32 %s52, 1
    %s54 = scalar_select %p51, %s52, %s53
    %p57 = pneg %p51
    %p58 = scmp.eq.s32.totalorder %s16, 1
    %p59 = por %p57, %p58
    %p60 = scmp.ne.s32.totalorder %s52, %s55
    %p61 = scmp.eq.s32.totalorder %s16, 0
    %p62 = por %p60, %p61
    %p63 = scmp.ne.s32.totalorder %s52, %s55
    %p64 = scmp.eq.s32.totalorder %s21, 1
    %p65 = por %p63, %p64
    %p66 = scmp.ne.s32.totalorder %s55, %s56
    %p67 = scmp.eq.s32.totalorder %s21, 0
    %p68 = por %p66, %p67
    %p69 = scmp.ne.s32.totalorder %s55, %s56
    %p70 = scmp.eq.s32.totalorder %s22, 1
    %p71 = por %p69, %p70
    %p73 = scmp.ne.s32.totalorder %s56, %s72
    %p74 = scmp.eq.s32.totalorder %s22, 0
    %p75 = por %p73, %p74
    %s77 = sadd.s32 %s76, 1
    %p80 = scmp.eq.s32.totalorder %s16, 1
    %p81 = scmp.ne.s32.totalorder %s76, %s78
    %p82 = scmp.eq.s32.totalorder %s16, 0
    %p83 = por %p81, %p82
    %p84 = scmp.ne.s32.totalorder %s76, %s78
    %p85 = scmp.eq.s32.totalorder %s21, 1
    %p86 = por %p84, %p85
    %p87 = scmp.ne.s32.totalorder %s78, %s79
    %p88 = scmp.eq.s32.totalorder %s21, 0
    %p89 = por %p87, %p88
    %p90 = scmp.ne.s32.totalorder %s78, %s79
    %p91 = scmp.eq.s32.totalorder %s22, 1
    %p92 = por %p90, %p91
    %p94 = scmp.ne.s32.totalorder %s79, %s93
    %p95 = scmp.eq.s32.totalorder %s22, 0
    %p96 = por %p94, %p95
    %s98 = sadd.s32 %s97, 1
    %p101 = scmp.eq.s32.totalorder %s16, 1
    %p102 = scmp.ne.s32.totalorder %s97, %s99
    %p103 = scmp.eq.s32.totalorder %s16, 0
    %p104 = por %p102, %p103
    %p105 = scmp.ne.s32.totalorder %s97, %s99
    %p106 = scmp.eq.s32.totalorder %s21, 1
    %p107 = por %p105, %p106
    %p108 = scmp.ne.s32.totalorder %s99, %s100
    %p109 = scmp.eq.s32.totalorder %s21, 0
    %p110 = por %p108, %p109
    %p111 = scmp.ne.s32.totalorder %s99, %s100
    %p112 = scmp.eq.s32.totalorder %s22, 1
    %p113 = por %p111, %p112
    %p115 = scmp.ne.s32.totalorder %s100, %s114
    %p116 = scmp.eq.s32.totalorder %s22, 0
    %p117 = por %p115, %p116
    %s119 = sadd.s32 %s118, 1
    %p122 = scmp.eq.s32.totalorder %s16, 1
    %p123 = scmp.ne.s32.totalorder %s118, %s120
    %p124 = scmp.eq.s32.totalorder %s16, 0
    %p125 = por %p123, %p124
    %p126 = scmp.ne.s32.totalorder %s118, %s120
    %p127 = scmp.eq.s32.totalorder %s21, 1
    %p128 = por %p126, %p127
    %p129 = scmp.ne.s32.totalorder %s120, %s121
    %p130 = scmp.eq.s32.totalorder %s21, 0
    %p131 = por %p129, %p130
    %p132 = scmp.ne.s32.totalorder %s120, %s121
    %p133 = scmp.eq.s32.totalorder %s22, 1
    %p134 = por %p132, %p133
    %p136 = scmp.ne.s32.totalorder %s121, %s135
    %p137 = scmp.eq.s32.totalorder %s22, 0
    %p138 = por %p136, %p137
    %s140 = sadd.s32 %s139, 1
    %p143 = scmp.eq.s32.totalorder %s16, 1
    %p144 = scmp.ne.s32.totalorder %s139, %s141
    %p145 = scmp.eq.s32.totalorder %s16, 0
    %p146 = por %p144, %p145
    %p147 = scmp.ne.s32.totalorder %s139, %s141
    %p148 = scmp.eq.s32.totalorder %s21, 1
    %p149 = por %p147, %p148
    %p150 = scmp.ne.s32.totalorder %s141, %s142
    %p151 = scmp.eq.s32.totalorder %s21, 0
    %p152 = por %p150, %p151
    %p153 = scmp.ne.s32.totalorder %s141, %s142
    %p154 = scmp.eq.s32.totalorder %s22, 1
    %p155 = por %p153, %p154
    %p157 = scmp.ne.s32.totalorder %s142, %s156
    %p158 = scmp.eq.s32.totalorder %s22, 0
    %p159 = por %p157, %p158
    %s161 = sadd.s32 %s160, 1
    %p164 = scmp.eq.s32.totalorder %s16, 1
    %p165 = scmp.ne.s32.totalorder %s160, %s162
    %p166 = scmp.eq.s32.totalorder %s16, 0
    %p167 = por %p165, %p166
    %p168 = scmp.ne.s32.totalorder %s160, %s162
    %p169 = scmp.eq.s32.totalorder %s21, 1
    %p170 = por %p168, %p169
    %p171 = scmp.ne.s32.totalorder %s162, %s163
    %p172 = scmp.eq.s32.totalorder %s21, 0
    %p173 = por %p171, %p172
    %p174 = scmp.ne.s32.totalorder %s162, %s163
    %p175 = scmp.eq.s32.totalorder %s22, 1
    %p176 = por %p174, %p175
    %p178 = scmp.ne.s32.totalorder %s163, %s177
    %p179 = scmp.eq.s32.totalorder %s22, 0
    %p180 = por %p178, %p179
    %s182 = sadd.s32 %s181, 1
    %p185 = scmp.eq.s32.totalorder %s16, 1
    %p186 = scmp.ne.s32.totalorder %s181, %s183
    %p187 = scmp.eq.s32.totalorder %s16, 0
    %p188 = por %p186, %p187
    %p189 = scmp.ne.s32.totalorder %s181, %s183
    %p190 = scmp.eq.s32.totalorder %s21, 1
    %p191 = por %p189, %p190
    %p192 = scmp.ne.s32.totalorder %s183, %s184
    %p193 = scmp.eq.s32.totalorder %s21, 0
    %p194 = por %p192, %p193
    %p195 = scmp.ne.s32.totalorder %s183, %s184
    %p196 = scmp.eq.s32.totalorder %s22, 1
    %p197 = por %p195, %p196
    %p199 = scmp.ne.s32.totalorder %s184, %s198
    %p200 = scmp.eq.s32.totalorder %s22, 0
    %p201 = por %p199, %p200
    %s203 = sadd.s32 %s202, 1
    %p206 = scmp.eq.s32.totalorder %s16, 1
    %p207 = scmp.ne.s32.totalorder %s202, %s204
    %p208 = scmp.eq.s32.totalorder %s16, 0
    %p209 = por %p207, %p208
    %p210 = scmp.ne.s32.totalorder %s202, %s204
    %p211 = scmp.eq.s32.totalorder %s21, 1
    %p212 = por %p210, %p211
    %p213 = scmp.ne.s32.totalorder %s204, %s205
    %p214 = scmp.eq.s32.totalorder %s21, 0
    %p215 = por %p213, %p214
    %p216 = scmp.ne.s32.totalorder %s204, %s205
    %p217 = scmp.eq.s32.totalorder %s22, 1
    %p218 = por %p216, %p217
    %p220 = scmp.ne.s32.totalorder %s205, %s219
    %p221 = scmp.eq.s32.totalorder %s22, 0
    %p222 = por %p220, %p221
    %s224 = sadd.s32 %s223, 1
    %p227 = scmp.eq.s32.totalorder %s16, 1
    %p228 = scmp.ne.s32.totalorder %s223, %s225
    %p229 = scmp.eq.s32.totalorder %s16, 0
    %p230 = por %p228, %p229
    %p231 = scmp.ne.s32.totalorder %s223, %s225
    %p232 = scmp.eq.s32.totalorder %s21, 1
    %p233 = por %p231, %p232
    %p234 = scmp.ne.s32.totalorder %s225, %s226
    %p235 = scmp.eq.s32.totalorder %s21, 0
    %p236 = por %p234, %p235
    %p237 = scmp.ne.s32.totalorder %s225, %s226
    %p238 = scmp.eq.s32.totalorder %s22, 1
    %p239 = por %p237, %p238
    %p241 = scmp.ne.s32.totalorder %s226, %s240
    %p242 = scmp.eq.s32.totalorder %s22, 0
    %p243 = por %p241, %p242
    %s244 = ssub.s32 %s16, %s23
    %p245 = scmp.eq.s32.totalorder %s244, 0
    %s247 = sadd.s32 %s246, 1
    %s248 = scalar_select %p245, %s246, %s247
    %p251 = pneg %p245
    %p252 = scmp.eq.s32.totalorder %s16, 1
    %p253 = por %p251, %p252
    %p254 = scmp.ne.s32.totalorder %s246, %s249
    %p255 = scmp.eq.s32.totalorder %s16, 0
    %p256 = por %p254, %p255
    %p257 = scmp.ne.s32.totalorder %s246, %s249
    %p258 = scmp.eq.s32.totalorder %s21, 1
    %p259 = por %p257, %p258
    %p260 = scmp.ne.s32.totalorder %s249, %s250
    %p261 = scmp.eq.s32.totalorder %s21, 0
    %p262 = por %p260, %p261
    %p263 = scmp.ne.s32.totalorder %s249, %s250
    %p264 = scmp.eq.s32.totalorder %s22, 1
    %p265 = por %p263, %p264
    %p267 = scmp.ne.s32.totalorder %s250, %s266
    %p268 = scmp.eq.s32.totalorder %s22, 0
    %p269 = por %p267, %p268
    %p270 = scmp.le.s32.totalorder 1, %s16
    %p271 = scmp.lt.s32.totalorder %s16, 3
    %p272 = pnand %p270, %p271
    %p273 = pneg %p272
    // Predicated region
    $region9: #{closed_call.23} parent=5 // pred_check
      _
    $region10: #{closed_call.23} parent=5 // pred_check_branch
      %275 = sbr.rel (%p272) target = $region12
    $region11: #{closed_call.23} parent=5 // pred_region
      %s276 = ssub.s32 %s16, 1
      // Predicated region
      $region13: #{closed_call.23} parent=11 // pred_check
        %p277 = pneg %p89
      $region14: #{closed_call.23} parent=11 // pred_check_branch
        %279 = sbr.rel (%p277) target = $region16
      $region15: #{closed_call.23} parent=11 // pred_region
        _
      $region16: #{closed_call.23} parent=11 // pred_fallthru
        _
      // Predicated region
      $region17: #{closed_call.23} parent=11 // pred_check
        %p280 = pneg %p110
      $region18: #{closed_call.23} parent=11 // pred_check_branch
        %282 = sbr.rel (%p280) target = $region20
      $region19: #{closed_call.23} parent=11 // pred_region
        _
      $region20: #{closed_call.23} parent=11 // pred_fallthru
        _
      // Predicated region
      $region21: #{closed_call.23} parent=11 // pred_check
        %p283 = pneg %p131
      $region22: #{closed_call.23} parent=11 // pred_check_branch
        %285 = sbr.rel (%p283) target = $region24
      $region23: #{closed_call.23} parent=11 // pred_region
        _
      $region24: #{closed_call.23} parent=11 // pred_fallthru
        _
      // Predicated region
      $region25: #{closed_call.23} parent=11 // pred_check
        %p286 = pneg %p152
      $region26: #{closed_call.23} parent=11 // pred_check_branch
        %288 = sbr.rel (%p286) target = $region28
      $region27: #{closed_call.23} parent=11 // pred_region
        _
      $region28: #{closed_call.23} parent=11 // pred_fallthru
        _
      // Predicated region
      $region29: #{closed_call.23} parent=11 // pred_check
        %p289 = pneg %p173
      $region30: #{closed_call.23} parent=11 // pred_check_branch
        %291 = sbr.rel (%p289) target = $region32
      $region31: #{closed_call.23} parent=11 // pred_region
        _
      $region32: #{closed_call.23} parent=11 // pred_fallthru
        _
      // Predicated region
      $region33: #{closed_call.23} parent=11 // pred_check
        %p292 = pneg %p194
      $region34: #{closed_call.23} parent=11 // pred_check_branch
        %294 = sbr.rel (%p292) target = $region36
      $region35: #{closed_call.23} parent=11 // pred_region
        _
      $region36: #{closed_call.23} parent=11 // pred_fallthru
        _
      // Predicated region
      $region37: #{closed_call.23} parent=11 // pred_check
        %p295 = pneg %p215
      $region38: #{closed_call.23} parent=11 // pred_check_branch
        %297 = sbr.rel (%p295) target = $region40
      $region39: #{closed_call.23} parent=11 // pred_region
        _
      $region40: #{closed_call.23} parent=11 // pred_fallthru
        _
      // Predicated region
      $region41: #{closed_call.23} parent=11 // pred_check
        %p298 = pneg %p236
      $region42: #{closed_call.23} parent=11 // pred_check_branch
        %300 = sbr.rel (%p298) target = $region44
      $region43: #{closed_call.23} parent=11 // pred_region
        _
      $region44: #{closed_call.23} parent=11 // pred_fallthru
        _
    $region12: #{closed_call.23} parent=5 // pred_fallthru
      _
    %p301 = scmp.lt.s32.totalorder %s16, 2
    // Predicated region
    $region45: #{closed_call.23} parent=5 // pred_check
      %p302 = pneg %p301
    $region46: #{closed_call.23} parent=5 // pred_check_branch
      %304 = sbr.rel (%p302) target = $region48
    $region47: #{closed_call.23} parent=5 // pred_region
      // Predicated region
      $region49: #{closed_call.23} parent=47 // pred_check
        %p305 = pneg %p36
      $region50: #{closed_call.23} parent=47 // pred_check_branch
        %307 = sbr.rel (%p305) target = $region52
      $region51: #{closed_call.23} parent=47 // pred_region
        %p308 = scmp.lt.s32.totalorder %s16, 1
        %s309 = scalar_select %p308, %s16, 1
        %s310 = smul.addr %s309, 4
        %s311 = scalar_lea.vmem %s0, %s310
      $region52: #{closed_call.23} parent=47 // pred_fallthru
        _
      // Predicated region
      $region53: #{closed_call.23} parent=47 // pred_check
        %p312 = pneg %p62
      $region54: #{closed_call.23} parent=47 // pred_check_branch
        %314 = sbr.rel (%p312) target = $region56
      $region55: #{closed_call.23} parent=47 // pred_region
        %p315 = scmp.lt.s32.totalorder %s16, 1
        %s316 = scalar_select %p315, %s16, 1
        %s317 = smul.addr %s316, 4
        %s318 = scalar_lea.vmem %s1, %s317
      $region56: #{closed_call.23} parent=47 // pred_fallthru
        _
    $region48: #{closed_call.23} parent=5 // pred_fallthru
      _
    %p319 = scmp.le.s32.totalorder 1, %s16
    %p320 = scmp.lt.s32.totalorder %s16, 3
    %p321 = pnand %p319, %p320
    %p322 = pneg %p321
    // Predicated region
    $region57: #{closed_call.23} parent=5 // pred_check
      _
    $region58: #{closed_call.23} parent=5 // pred_check_branch
      %324 = sbr.rel (%p321) target = $region60
    $region59: #{closed_call.23} parent=5 // pred_region
      %s325 = ssub.s32 %s16, 1
      %p326 = scmp.lt.s32.totalorder %s21, 1
      %s327 = scalar_select %p326, %s21, 1
      %s328 = smul.addr %s327, 4
      %s329 = scalar_lea.vmem %s0, %s328
      %p330 = pneg %p42
      %p331 = pneg %p39
      %p332 = scmp.lt.s32.totalorder %s21, 1
      %s333 = scalar_select %p332, %s21, 1
      %s334 = smul.addr %s333, 4
      %s335 = scalar_lea.vmem %s1, %s334
      %p336 = pneg %p68
      %p337 = pneg %p65
      %p338 = pneg %p89
      %p339 = pneg %p86
      %p340 = pneg %p110
      %p341 = pneg %p107
      %p342 = pneg %p131
      %p343 = pneg %p128
      %p344 = pneg %p152
      %p345 = pneg %p149
      %p346 = pneg %p173
      %p347 = pneg %p170
      %p348 = pneg %p194
      %p349 = pneg %p191
      %p350 = pneg %p215
      %p351 = pneg %p212
      %p352 = pneg %p236
      %p353 = pneg %p233
      %p354 = pneg %p262
      %p355 = pneg %p259
      %p356 = scmp.lt.s32.totalorder %s21, 1
      %s357 = scalar_select %p356, %s21, 1
      %s358 = smul.addr %s357, 4
      %s359 = scalar_lea.vmem %s10, %s358
      %p360 = scmp.lt.s32.totalorder %s21, 1
      %s361 = scalar_select %p360, %s21, 1
      %s362 = smul.addr %s361, 4
      %s363 = scalar_lea.vmem %s0, %s362
      %p364 = scmp.lt.s32.totalorder %s21, 1
      %s365 = scalar_select %p364, %s21, 1
      %s366 = smul.addr %s365, 4
      %s367 = scalar_lea.vmem %s1, %s366
      %p368 = scmp.lt.s32.totalorder %s21, 1
      %s369 = scalar_select %p368, %s21, 1
      %s370 = smul.addr %s369, 4
      %s371 = scalar_lea.vmem %s10, %s370
      %v373 = vld [vmem:[%s363] sm:$0xf]
      %v374 = vld [vmem:[%s367] sm:$0xf]
      %v375 = vld [vmem:[%s2] sm:$0xf]
      %v376 = vld [vmem:[%s2 + $0x4] sm:$0xf]
      %v377 = vld [vmem:[%s2 + $0x8] sm:$0xf]
      %v378 = vld [vmem:[%s2 + $0xc] sm:$0xf]
      %v379 = vld [vmem:[%s3] sm:$0x1]
      %v381 = vlaneseq
      %v382 = vshrl.u32 %v381, 7
      %v383 = vsub.s32 0, %v382
      %v384 = vrot.slane %v379, %v383
      %v390 = vunpack.c.l.b16 %v375
      %v391 = vunpack.c.l.b16 %v376
      %v392 = vunpack.c.l.b16 %v377
      %v393 = vunpack.c.l.b16 %v378
      %v394 = vpack.c.b16 %v391, %v390
      %v395 = vpack.c.b16 %v393, %v392
      %vm398 = vcmask 261120
      %v400 = vsel %vm398, %v373, 0
      %402 = vmatprep.subr.bf16.mxu0 0
      %403 = vmatpush1.bf16.msra.mxu0 0
      %404 = vmatprep.subr.bf16.mxu0 0
      %405 = vmatpush1.bf16.msra.mxu0 0
      %406 = vmatprep.subr.bf16.mxu0 0
      %407 = vmatpush1.bf16.msra.mxu0 0
      %408 = vmatprep.subr.bf16.mxu0 0
      %409 = vmatpush1.bf16.msra.mxu0 0
      %410 = vmatprep.subr.bf16.mxu0 0
      %411 = vmatpush1.bf16.msra.mxu0 0
      %412 = vmatprep.subr.bf16.mxu0 0
      %413 = vmatpush1.bf16.msra.mxu0 0
      %414 = vmatprep.subr.bf16.mxu0 0
      %415 = vmatpush1.bf16.msra.mxu0 %v395
      %416 = vmatprep.subr.bf16.mxu0 0
      %417 = vmatpush1.bf16.msra.mxu0 %v394
      %418 = vmatprep.subr.bf16.mxu0 0
      %419 = vmatpush2.bf16.msra.mxu0 0
      %420 = vmatprep.subr.bf16.mxu0 0
      %421 = vmatpush2.bf16.msra.mxu0 0
      %422 = vmatprep.subr.bf16.mxu0 0
      %423 = vmatpush2.bf16.msra.mxu0 0
      %424 = vmatprep.subr.bf16.mxu0 0
      %425 = vmatpush2.bf16.msra.mxu0 0
      %426 = vmatprep.subr.bf16.mxu0 0
      %427 = vmatpush2.bf16.msra.mxu0 0
      %428 = vmatprep.subr.bf16.mxu0 0
      %429 = vmatpush2.bf16.msra.mxu0 0
      %430 = vmatprep.subr.bf16.mxu0 0
      %431 = vmatpush2.bf16.msra.mxu0 0
      %432 = vmatprep.subr.bf16.mxu0 0
      %433 = vmatpush2.bf16.msra.mxu0 0
      %434 = vmatprep.mubr.bf16.mxu0 0
      %435 = vmatmul.mubr.bf16.gmra.mxu0 %v400
      %v436 = vpop.f32.mrf.mxu0
      %v437 = vadd.f32 %v384, %v436
      %v438 = vpop.f32.mrf.mxu0
      %v439 = vpop.f32.mrf.mxu0
      %v440 = vpop.f32.mrf.mxu0
      %441 = vdwg.mxu0
      %v442 = vmul.f32 %v437, 0.35355338
      %v443 = vld [vmem:[%s4] sm:$0xf]
      %v444 = vld [vmem:[%s4 + $0x4] sm:$0xf]
      %v445 = vld [vmem:[%s4 + $0x8] sm:$0xf]
      %v446 = vld [vmem:[%s4 + $0xc] sm:$0xf]
      %v447 = vld [vmem:[%s5] sm:$0x1]
      %v449 = vlaneseq
      %v450 = vshrl.u32 %v449, 7
      %v451 = vsub.s32 0, %v450
      %v452 = vrot.slane %v447, %v451
      %v458 = vunpack.c.l.b16 %v443
      %v459 = vunpack.c.l.b16 %v444
      %v460 = vunpack.c.l.b16 %v445
      %v461 = vunpack.c.l.b16 %v446
      %v462 = vpack.c.b16 %v459, %v458
      %v463 = vpack.c.b16 %v461, %v460
      %v467 = vsel %vm398, %v374, 0
      %469 = vmatprep.subr.bf16.mxu0 0
      %470 = vmatpush1.bf16.msra.mxu0 0
      %471 = vmatprep.subr.bf16.mxu0 0
      %472 = vmatpush1.bf16.msra.mxu0 0
      %473 = vmatprep.subr.bf16.mxu0 0
      %474 = vmatpush1.bf16.msra.mxu0 0
      %475 = vmatprep.subr.bf16.mxu0 0
      %476 = vmatpush1.bf16.msra.mxu0 0
      %477 = vmatprep.subr.bf16.mxu0 0
      %478 = vmatpush1.bf16.msra.mxu0 0
      %479 = vmatprep.subr.bf16.mxu0 0
      %480 = vmatpush1.bf16.msra.mxu0 0
      %481 = vmatprep.subr.bf16.mxu0 0
      %482 = vmatpush1.bf16.msra.mxu0 %v463
      %483 = vmatprep.subr.bf16.mxu0 0
      %484 = vmatpush1.bf16.msra.mxu0 %v462
      %485 = vmatprep.subr.bf16.mxu0 0
      %486 = vmatpush2.bf16.msra.mxu0 0
      %487 = vmatprep.subr.bf16.mxu0 0
      %488 = vmatpush2.bf16.msra.mxu0 0
      %489 = vmatprep.subr.bf16.mxu0 0
      %490 = vmatpush2.bf16.msra.mxu0 0
      %491 = vmatprep.subr.bf16.mxu0 0
      %492 = vmatpush2.bf16.msra.mxu0 0
      %493 = vmatprep.subr.bf16.mxu0 0
      %494 = vmatpush2.bf16.msra.mxu0 0
      %495 = vmatprep.subr.bf16.mxu0 0
      %496 = vmatpush2.bf16.msra.mxu0 0
      %497 = vmatprep.subr.bf16.mxu0 0
      %498 = vmatpush2.bf16.msra.mxu0 0
      %499 = vmatprep.subr.bf16.mxu0 0
      %500 = vmatpush2.bf16.msra.mxu0 0
      %501 = vmatprep.mubr.bf16.mxu0 0
      %502 = vmatmul.mubr.bf16.gmra.mxu0 %v467
      %v503 = vpop.f32.mrf.mxu0
      %v504 = vadd.f32 %v452, %v503
      %v505 = vpop.f32.mrf.mxu0
      %v506 = vpop.f32.mrf.mxu0
      %v507 = vpop.f32.mrf.mxu0
      %508 = vdwg.mxu0
      %v509 = vpack.c.bf16 %v442, %v442
      %v510 = vpack.c.bf16 %v504, %v504
      %vm511 = vcmask 64512
      %v513 = vsel %vm511, %v509, 0
      %v516 = vsel %vm511, %v510, 0
      %518 = vmatprep.subr.bf16.mxu0 0
      %519 = vmatpush1.bf16.xpose.msra.mxu0 0
      %520 = vmatprep.subr.bf16.mxu0 0
      %521 = vmatpush1.bf16.xpose.msra.mxu0 0
      %522 = vmatprep.subr.bf16.mxu0 0
      %523 = vmatpush1.bf16.xpose.msra.mxu0 0
      %524 = vmatprep.subr.bf16.mxu0 0
      %525 = vmatpush1.bf16.xpose.msra.mxu0 0
      %526 = vmatprep.subr.bf16.mxu0 0
      %527 = vmatpush1.bf16.xpose.msra.mxu0 0
      %528 = vmatprep.subr.bf16.mxu0 0
      %529 = vmatpush1.bf16.xpose.msra.mxu0 0
      %530 = vmatprep.subr.bf16.mxu0 0
      %531 = vmatpush1.bf16.xpose.msra.mxu0 0
      %532 = vmatprep.subr.bf16.mxu0 0
      %533 = vmatpush1.bf16.xpose.msra.mxu0 %v516
      %534 = vmatprep.subr.bf16.mxu0 0
      %535 = vmatpush2.bf16.xpose.msra.mxu0 0
      %536 = vmatprep.subr.bf16.mxu0 0
      %537 = vmatpush2.bf16.xpose.msra.mxu0 0
      %538 = vmatprep.subr.bf16.mxu0 0
      %539 = vmatpush2.bf16.xpose.msra.mxu0 0
      %540 = vmatprep.subr.bf16.mxu0 0
      %541 = vmatpush2.bf16.xpose.msra.mxu0 0
      %542 = vmatprep.subr.bf16.mxu0 0
      %543 = vmatpush2.bf16.xpose.msra.mxu0 0
      %544 = vmatprep.subr.bf16.mxu0 0
      %545 = vmatpush2.bf16.xpose.msra.mxu0 0
      %546 = vmatprep.subr.bf16.mxu0 0
      %547 = vmatpush2.bf16.xpose.msra.mxu0 0
      %548 = vmatprep.subr.bf16.mxu0 0
      %549 = vmatpush2.bf16.xpose.msra.mxu0 0
      %550 = vmatprep.mubr.bf16.mxu0 0
      %551 = vmatmul.mubr.bf16.gmra.mxu0 %v513
      %v552 = vpop.f32.mrf.mxu0
      %v553 = vadd.f32 0.0, %v552
      %v554 = vpop.f32.mrf.mxu0
      %v555 = vpop.f32.mrf.mxu0
      %v556 = vpop.f32.mrf.mxu0
      %557 = vdwg.mxu0
      %v558 = vsel %vm511, %v553, -inf
      %559 = vmax.xlane.f32.xlu0 %v558
      %v560 = vpop.xlane.xlu0 %559
      %v561 = vsub.f32 %v553, %v560
      %v562 = vmul.f32 %v561, 1.442695
      %v563 = vpow.pop %v562
      %v564 = vsel %vm511, %v563, 0.0
      %565 = vadd.xlane.f32.xlu0 %v564
      %v566 = vpop.xlane.xlu0 %565
      %v567 = vrcp.pop %v566
      %v568 = vmul.f32 %v563, %v567
      %v569 = vpack.c.bf16 %v568, %v568
      %571 = vrot.lane.b32.xlu0 %v510, 96
      %v572 = vpop.permute.xlu0 %571
      %v574 = vsel %vm511, %v569, 0
      %vm576 = vcmask 1043456
      %v578 = vsel %vm576, %v572, 0
      %580 = vmatprep.subr.bf16.mxu0 0
      %581 = vmatpush1.bf16.msra.mxu0 0
      %582 = vmatprep.subr.bf16.mxu0 0
      %583 = vmatpush1.bf16.msra.mxu0 0
      %584 = vmatprep.subr.bf16.mxu0 0
      %585 = vmatpush1.bf16.msra.mxu0 0
      %586 = vmatprep.subr.bf16.mxu0 0
      %587 = vmatpush1.bf16.msra.mxu0 0
      %588 = vmatprep.subr.bf16.mxu0 0
      %589 = vmatpush1.bf16.msra.mxu0 0
      %590 = vmatprep.subr.bf16.mxu0 0
      %591 = vmatpush1.bf16.msra.mxu0 0
      %592 = vmatprep.subr.bf16.mxu0 0
      %593 = vmatpush1.bf16.msra.mxu0 0
      %594 = vmatprep.subr.bf16.mxu0 0
      %595 = vmatpush1.bf16.msra.mxu0 %v578
      %596 = vmatprep.subr.bf16.mxu0 0
      %597 = vmatpush2.bf16.msra.mxu0 0
      %598 = vmatprep.subr.bf16.mxu0 0
      %599 = vmatpush2.bf16.msra.mxu0 0
      %600 = vmatprep.subr.bf16.mxu0 0
      %601 = vmatpush2.bf16.msra.mxu0 0
      %602 = vmatprep.subr.bf16.mxu0 0
      %603 = vmatpush2.bf16.msra.mxu0 0
      %604 = vmatprep.subr.bf16.mxu0 0
      %605 = vmatpush2.bf16.msra.mxu0 0
      %606 = vmatprep.subr.bf16.mxu0 0
      %607 = vmatpush2.bf16.msra.mxu0 0
      %608 = vmatprep.subr.bf16.mxu0 0
      %609 = vmatpush2.bf16.msra.mxu0 0
      %610 = vmatprep.subr.bf16.mxu0 0
      %611 = vmatpush2.bf16.msra.mxu0 0
      %612 = vmatprep.mubr.bf16.mxu0 0
      %613 = vmatmul.mubr.bf16.gmra.mxu0 %v574
      %v614 = vpop.f32.mrf.mxu0
      %v615 = vadd.f32 0.0, %v614
      %v616 = vpop.f32.mrf.mxu0
      %v617 = vpop.f32.mrf.mxu0
      %v618 = vpop.f32.mrf.mxu0
      %619 = vdwg.mxu0
      %v620 = vpack.c.bf16 %v615, %v615
      %vm621 = vcmask 60416
      %622 = vst.msk [vmem:[#allocation2] sm:$0xf] %vm621, %v620
      %624 = vrot.lane.b32.xlu0 %v509, 120
      %v625 = vpop.permute.xlu0 %624
      %626 = vrot.lane.b32.xlu0 %v510, 120
      %v627 = vpop.permute.xlu0 %626
      %v629 = vsel %vm511, %v625, 0
      %v632 = vsel %vm511, %v627, 0
      %634 = vmatprep.subr.bf16.mxu0 0
      %635 = vmatpush1.bf16.xpose.msra.mxu0 0
      %636 = vmatprep.subr.bf16.mxu0 0
      %637 = vmatpush1.bf16.xpose.msra.mxu0 0
      %638 = vmatprep.subr.bf16.mxu0 0
      %639 = vmatpush1.bf16.xpose.msra.mxu0 0
      %640 = vmatprep.subr.bf16.mxu0 0
      %641 = vmatpush1.bf16.xpose.msra.mxu0 0
      %642 = vmatprep.subr.bf16.mxu0 0
      %643 = vmatpush1.bf16.xpose.msra.mxu0 0
      %644 = vmatprep.subr.bf16.mxu0 0
      %645 = vmatpush1.bf16.xpose.msra.mxu0 0
      %646 = vmatprep.subr.bf16.mxu0 0
      %647 = vmatpush1.bf16.xpose.msra.mxu0 0
      %648 = vmatprep.subr.bf16.mxu0 0
      %649 = vmatpush1.bf16.xpose.msra.mxu0 %v632
      %650 = vmatprep.subr.bf16.mxu0 0
      %651 = vmatpush2.bf16.xpose.msra.mxu0 0
      %652 = vmatprep.subr.bf16.mxu0 0
      %653 = vmatpush2.bf16.xpose.msra.mxu0 0
      %654 = vmatprep.subr.bf16.mxu0 0
      %655 = vmatpush2.bf16.xpose.msra.mxu0 0
      %656 = vmatprep.subr.bf16.mxu0 0
      %657 = vmatpush2.bf16.xpose.msra.mxu0 0
      %658 = vmatprep.subr.bf16.mxu0 0
      %659 = vmatpush2.bf16.xpose.msra.mxu0 0
      %660 = vmatprep.subr.bf16.mxu0 0
      %661 = vmatpush2.bf16.xpose.msra.mxu0 0
      %662 = vmatprep.subr.bf16.mxu0 0
      %663 = vmatpush2.bf16.xpose.msra.mxu0 0
      %664 = vmatprep.subr.bf16.mxu0 0
      %665 = vmatpush2.bf16.xpose.msra.mxu0 0
      %666 = vmatprep.mubr.bf16.mxu0 0
      %667 = vmatmul.mubr.bf16.gmra.mxu0 %v629
      %v668 = vpop.f32.mrf.mxu0
      %v669 = vadd.f32 0.0, %v668
      %v670 = vpop.f32.mrf.mxu0
      %v671 = vpop.f32.mrf.mxu0
      %v672 = vpop.f32.mrf.mxu0
      %673 = vdwg.mxu0
      %v674 = vsel %vm511, %v669, -inf
      %675 = vmax.xlane.f32.xlu0 %v674
      %v676 = vpop.xlane.xlu0 %675
      %v677 = vsub.f32 %v669, %v676
      %v678 = vmul.f32 %v677, 1.442695
      %v679 = vpow.pop %v678
      %v680 = vsel %vm511, %v679, 0.0
      %681 = vadd.xlane.f32.xlu0 %v680
      %v682 = vpop.xlane.xlu0 %681
      %v683 = vrcp.pop %v682
      %v684 = vmul.f32 %v679, %v683
      %v685 = vpack.c.bf16 %v684, %v684
      %686 = vrot.lane.b32.xlu0 %v510, 88
      %v687 = vpop.permute.xlu0 %686
      %v689 = vsel %vm511, %v685, 0
      %v692 = vsel %vm576, %v687, 0
      %694 = vmatprep.subr.bf16.mxu0 0
      %695 = vmatpush1.bf16.msra.mxu0 0
      %696 = vmatprep.subr.bf16.mxu0 0
      %697 = vmatpush1.bf16.msra.mxu0 0
      %698 = vmatprep.subr.bf16.mxu0 0
      %699 = vmatpush1.bf16.msra.mxu0 0
      %700 = vmatprep.subr.bf16.mxu0 0
      %701 = vmatpush1.bf16.msra.mxu0 0
      %702 = vmatprep.subr.bf16.mxu0 0
      %703 = vmatpush1.bf16.msra.mxu0 0
      %704 = vmatprep.subr.bf16.mxu0 0
      %705 = vmatpush1.bf16.msra.mxu0 0
      %706 = vmatprep.subr.bf16.mxu0 0
      %707 = vmatpush1.bf16.msra.mxu0 0
      %708 = vmatprep.subr.bf16.mxu0 0
      %709 = vmatpush1.bf16.msra.mxu0 %v692
      %710 = vmatprep.subr.bf16.mxu0 0
      %711 = vmatpush2.bf16.msra.mxu0 0
      %712 = vmatprep.subr.bf16.mxu0 0
      %713 = vmatpush2.bf16.msra.mxu0 0
      %714 = vmatprep.subr.bf16.mxu0 0
      %715 = vmatpush2.bf16.msra.mxu0 0
      %716 = vmatprep.subr.bf16.mxu0 0
      %717 = vmatpush2.bf16.msra.mxu0 0
      %718 = vmatprep.subr.bf16.mxu0 0
      %719 = vmatpush2.bf16.msra.mxu0 0
      %720 = vmatprep.subr.bf16.mxu0 0
      %721 = vmatpush2.bf16.msra.mxu0 0
      %722 = vmatprep.subr.bf16.mxu0 0
      %723 = vmatpush2.bf16.msra.mxu0 0
      %724 = vmatprep.subr.bf16.mxu0 0
      %725 = vmatpush2.bf16.msra.mxu0 0
      %726 = vmatprep.mubr.bf16.mxu0 0
      %727 = vmatmul.mubr.bf16.gmra.mxu0 %v689
      %v728 = vpop.f32.mrf.mxu0
      %v729 = vadd.f32 0.0, %v728
      %v730 = vpop.f32.mrf.mxu0
      %v731 = vpop.f32.mrf.mxu0
      %v732 = vpop.f32.mrf.mxu0
      %733 = vdwg.mxu0
      %v734 = vpack.c.bf16 %v729, %v729
      %v736 = vunpack.c.l.b16 %v734
      %v737 = vpack.c.b16 %v736, %v736
      %738 = vrot.lane.b32.xlu0 %v737, 8
      %v739 = vpop.permute.xlu0 %738
      %vm741 = vcmask 126016
      %742 = vst.msk [vmem:[#allocation2] sm:$0xf] %vm741, %v739
      %743 = vrot.lane.b32.xlu0 %v509, 112
      %v744 = vpop.permute.xlu0 %743
      %745 = vrot.lane.b32.xlu0 %v510, 112
      %v746 = vpop.permute.xlu0 %745
      %v748 = vsel %vm511, %v744, 0
      %v751 = vsel %vm511, %v746, 0
      %753 = vmatprep.subr.bf16.mxu0 0
      %754 = vmatpush1.bf16.xpose.msra.mxu0 0
      %755 = vmatprep.subr.bf16.mxu0 0
      %756 = vmatpush1.bf16.xpose.msra.mxu0 0
      %757 = vmatprep.subr.bf16.mxu0 0
      %758 = vmatpush1.bf16.xpose.msra.mxu0 0
      %759 = vmatprep.subr.bf16.mxu0 0
      %760 = vmatpush1.bf16.xpose.msra.mxu0 0
      %761 = vmatprep.subr.bf16.mxu0 0
      %762 = vmatpush1.bf16.xpose.msra.mxu0 0
      %763 = vmatprep.subr.bf16.mxu0 0
      %764 = vmatpush1.bf16.xpose.msra.mxu0 0
      %765 = vmatprep.subr.bf16.mxu0 0
      %766 = vmatpush1.bf16.xpose.msra.mxu0 0
      %767 = vmatprep.subr.bf16.mxu0 0
      %768 = vmatpush1.bf16.xpose.msra.mxu0 %v751
      %769 = vmatprep.subr.bf16.mxu0 0
      %770 = vmatpush2.bf16.xpose.msra.mxu0 0
      %771 = vmatprep.subr.bf16.mxu0 0
      %772 = vmatpush2.bf16.xpose.msra.mxu0 0
      %773 = vmatprep.subr.bf16.mxu0 0
      %774 = vmatpush2.bf16.xpose.msra.mxu0 0
      %775 = vmatprep.subr.bf16.mxu0 0
      %776 = vmatpush2.bf16.xpose.msra.mxu0 0
      %777 = vmatprep.subr.bf16.mxu0 0
      %778 = vmatpush2.bf16.xpose.msra.mxu0 0
      %779 = vmatprep.subr.bf16.mxu0 0
      %780 = vmatpush2.bf16.xpose.msra.mxu0 0
      %781 = vmatprep.subr.bf16.mxu0 0
      %782 = vmatpush2.bf16.xpose.msra.mxu0 0
      %783 = vmatprep.subr.bf16.mxu0 0
      %784 = vmatpush2.bf16.xpose.msra.mxu0 0
      %785 = vmatprep.mubr.bf16.mxu0 0
      %786 = vmatmul.mubr.bf16.gmra.mxu0 %v748
      %v787 = vpop.f32.mrf.mxu0
      %v788 = vadd.f32 0.0, %v787
      %v789 = vpop.f32.mrf.mxu0
      %v790 = vpop.f32.mrf.mxu0
      %v791 = vpop.f32.mrf.mxu0
      %792 = vdwg.mxu0
      %v793 = vsel %vm511, %v788, -inf
      %794 = vmax.xlane.f32.xlu0 %v793
      %v795 = vpop.xlane.xlu0 %794
      %v796 = vsub.f32 %v788, %v795
      %v797 = vmul.f32 %v796, 1.442695
      %v798 = vpow.pop %v797
      %v799 = vsel %vm511, %v798, 0.0
      %800 = vadd.xlane.f32.xlu0 %v799
      %v801 = vpop.xlane.xlu0 %800
      %v802 = vrcp.pop %v801
      %v803 = vmul.f32 %v798, %v802
      %v804 = vpack.c.bf16 %v803, %v803
      %805 = vrot.lane.b32.xlu0 %v510, 80
      %v806 = vpop.permute.xlu0 %805
      %v808 = vsel %vm511, %v804, 0
      %v811 = vsel %vm576, %v806, 0
      %813 = vmatprep.subr.bf16.mxu0 0
      %814 = vmatpush1.bf16.msra.mxu0 0
      %815 = vmatprep.subr.bf16.mxu0 0
      %816 = vmatpush1.bf16.msra.mxu0 0
      %817 = vmatprep.subr.bf16.mxu0 0
      %818 = vmatpush1.bf16.msra.mxu0 0
      %819 = vmatprep.subr.bf16.mxu0 0
      %820 = vmatpush1.bf16.msra.mxu0 0
      %821 = vmatprep.subr.bf16.mxu0 0
      %822 = vmatpush1.bf16.msra.mxu0 0
      %823 = vmatprep.subr.bf16.mxu0 0
      %824 = vmatpush1.bf16.msra.mxu0 0
      %825 = vmatprep.subr.bf16.mxu0 0
      %826 = vmatpush1.bf16.msra.mxu0 0
      %827 = vmatprep.subr.bf16.mxu0 0
      %828 = vmatpush1.bf16.msra.mxu0 %v811
      %829 = vmatprep.subr.bf16.mxu0 0
      %830 = vmatpush2.bf16.msra.mxu0 0
      %831 = vmatprep.subr.bf16.mxu0 0
      %832 = vmatpush2.bf16.msra.mxu0 0
      %833 = vmatprep.subr.bf16.mxu0 0
      %834 = vmatpush2.bf16.msra.mxu0 0
      %835 = vmatprep.subr.bf16.mxu0 0
      %836 = vmatpush2.bf16.msra.mxu0 0
      %837 = vmatprep.subr.bf16.mxu0 0
      %838 = vmatpush2.bf16.msra.mxu0 0
      %839 = vmatprep.subr.bf16.mxu0 0
      %840 = vmatpush2.bf16.msra.mxu0 0
      %841 = vmatprep.subr.bf16.mxu0 0
      %842 = vmatpush2.bf16.msra.mxu0 0
      %843 = vmatprep.subr.bf16.mxu0 0
      %844 = vmatpush2.bf16.msra.mxu0 0
      %845 = vmatprep.mubr.bf16.mxu0 0
      %846 = vmatmul.mubr.bf16.gmra.mxu0 %v808
      %v847 = vpop.f32.mrf.mxu0
      %v848 = vadd.f32 0.0, %v847
      %v849 = vpop.f32.mrf.mxu0
      %v850 = vpop.f32.mrf.mxu0
      %v851 = vpop.f32.mrf.mxu0
      %852 = vdwg.mxu0
      %v853 = vpack.c.bf16 %v848, %v848
      %v855 = vunpack.c.l.b16 %v853
      %v856 = vpack.c.b16 %v855, %v855
      %857 = vrot.lane.b32.xlu0 %v856, 16
      %v858 = vpop.permute.xlu0 %857
      %vm860 = vcmask 191616
      %861 = vst.msk [vmem:[#allocation2] sm:$0xf] %vm860, %v858
      %862 = vrot.lane.b32.xlu0 %v509, 104
      %v863 = vpop.permute.xlu0 %862
      %864 = vrot.lane.b32.xlu0 %v510, 104
      %v865 = vpop.permute.xlu0 %864
      %v867 = vsel %vm511, %v863, 0
      %v870 = vsel %vm511, %v865, 0
      %872 = vmatprep.subr.bf16.mxu0 0
      %873 = vmatpush1.bf16.xpose.msra.mxu0 0
      %874 = vmatprep.subr.bf16.mxu0 0
      %875 = vmatpush1.bf16.xpose.msra.mxu0 0
      %876 = vmatprep.subr.bf16.mxu0 0
      %877 = vmatpush1.bf16.xpose.msra.mxu0 0
      %878 = vmatprep.subr.bf16.mxu0 0
      %879 = vmatpush1.bf16.xpose.msra.mxu0 0
      %880 = vmatprep.subr.bf16.mxu0 0
      %881 = vmatpush1.bf16.xpose.msra.mxu0 0
      %882 = vmatprep.subr.bf16.mxu0 0
      %883 = vmatpush1.bf16.xpose.msra.mxu0 0
      %884 = vmatprep.subr.bf16.mxu0 0
      %885 = vmatpush1.bf16.xpose.msra.mxu0 0
      %886 = vmatprep.subr.bf16.mxu0 0
      %887 = vmatpush1.bf16.xpose.msra.mxu0 %v870
      %888 = vmatprep.subr.bf16.mxu0 0
      %889 = vmatpush2.bf16.xpose.msra.mxu0 0
      %890 = vmatprep.subr.bf16.mxu0 0
      %891 = vmatpush2.bf16.xpose.msra.mxu0 0
      %892 = vmatprep.subr.bf16.mxu0 0
      %893 = vmatpush2.bf16.xpose.msra.mxu0 0
      %894 = vmatprep.subr.bf16.mxu0 0
      %895 = vmatpush2.bf16.xpose.msra.mxu0 0
      %896 = vmatprep.subr.bf16.mxu0 0
      %897 = vmatpush2.bf16.xpose.msra.mxu0 0
      %898 = vmatprep.subr.bf16.mxu0 0
      %899 = vmatpush2.bf16.xpose.msra.mxu0 0
      %900 = vmatprep.subr.bf16.mxu0 0
      %901 = vmatpush2.bf16.xpose.msra.mxu0 0
      %902 = vmatprep.subr.bf16.mxu0 0
      %903 = vmatpush2.bf16.xpose.msra.mxu0 0
      %904 = vmatprep.mubr.bf16.mxu0 0
      %905 = vmatmul.mubr.bf16.gmra.mxu0 %v867
      %v906 = vpop.f32.mrf.mxu0
      %v907 = vadd.f32 0.0, %v906
      %v908 = vpop.f32.mrf.mxu0
      %v909 = vpop.f32.mrf.mxu0
      %v910 = vpop.f32.mrf.mxu0
      %911 = vdwg.mxu0
      %v912 = vsel %vm511, %v907, -inf
      %913 = vmax.xlane.f32.xlu0 %v912
      %v914 = vpop.xlane.xlu0 %913
      %v915 = vsub.f32 %v907, %v914
      %v916 = vmul.f32 %v915, 1.442695
      %v917 = vpow.pop %v916
      %v918 = vsel %vm511, %v917, 0.0
      %919 = vadd.xlane.f32.xlu0 %v918
      %v920 = vpop.xlane.xlu0 %919
      %v921 = vrcp.pop %v920
      %v922 = vmul.f32 %v917, %v921
      %v923 = vpack.c.bf16 %v922, %v922
      %924 = vrot.lane.b32.xlu0 %v510, 72
      %v925 = vpop.permute.xlu0 %924
      %v927 = vsel %vm511, %v923, 0
      %v930 = vsel %vm576, %v925, 0
      %932 = vmatprep.subr.bf16.mxu0 0
      %933 = vmatpush1.bf16.msra.mxu0 0
      %934 = vmatprep.subr.bf16.mxu0 0
      %935 = vmatpush1.bf16.msra.mxu0 0
      %936 = vmatprep.subr.bf16.mxu0 0
      %937 = vmatpush1.bf16.msra.mxu0 0
      %938 = vmatprep.subr.bf16.mxu0 0
      %939 = vmatpush1.bf16.msra.mxu0 0
      %940 = vmatprep.subr.bf16.mxu0 0
      %941 = vmatpush1.bf16.msra.mxu0 0
      %942 = vmatprep.subr.bf16.mxu0 0
      %943 = vmatpush1.bf16.msra.mxu0 0
      %944 = vmatprep.subr.bf16.mxu0 0
      %945 = vmatpush1.bf16.msra.mxu0 0
      %946 = vmatprep.subr.bf16.mxu0 0
      %947 = vmatpush1.bf16.msra.mxu0 %v930
      %948 = vmatprep.subr.bf16.mxu0 0
      %949 = vmatpush2.bf16.msra.mxu0 0
      %950 = vmatprep.subr.bf16.mxu0 0
      %951 = vmatpush2.bf16.msra.mxu0 0
      %952 = vmatprep.subr.bf16.mxu0 0
      %953 = vmatpush2.bf16.msra.mxu0 0
      %954 = vmatprep.subr.bf16.mxu0 0
      %955 = vmatpush2.bf16.msra.mxu0 0
      %956 = vmatprep.subr.bf16.mxu0 0
      %957 = vmatpush2.bf16.msra.mxu0 0
      %958 = vmatprep.subr.bf16.mxu0 0
      %959 = vmatpush2.bf16.msra.mxu0 0
      %960 = vmatprep.subr.bf16.mxu0 0
      %961 = vmatpush2.bf16.msra.mxu0 0
      %962 = vmatprep.subr.bf16.mxu0 0
      %963 = vmatpush2.bf16.msra.mxu0 0
      %964 = vmatprep.mubr.bf16.mxu0 0
      %965 = vmatmul.mubr.bf16.gmra.mxu0 %v927
      %v966 = vpop.f32.mrf.mxu0
      %v967 = vadd.f32 0.0, %v966
      %v968 = vpop.f32.mrf.mxu0
      %v969 = vpop.f32.mrf.mxu0
      %v970 = vpop.f32.mrf.mxu0
      %971 = vdwg.mxu0
      %v972 = vpack.c.bf16 %v967, %v967
      %v974 = vunpack.c.l.b16 %v972
      %v975 = vpack.c.b16 %v974, %v974
      %976 = vrot.lane.b32.xlu0 %v975, 24
      %v977 = vpop.permute.xlu0 %976
      %vm979 = vcmask 257216
      %980 = vst.msk [vmem:[#allocation2] sm:$0xf] %vm979, %v977
      %v981 = vld [vmem:[#allocation2] sm:$0xf]
      %v982 = vld [vmem:[%s6] sm:$0xf]
      %v983 = vld [vmem:[%s6 + $0x4] sm:$0xf]
      %v984 = vld [vmem:[%s6 + $0x8] sm:$0xf]
      %v985 = vld [vmem:[%s6 + $0xc] sm:$0xf]
      %v986 = vld [vmem:[%s7] sm:$0x1]
      %v988 = vlaneseq
      %v989 = vshrl.u32 %v988, 7
      %v990 = vsub.s32 0, %v989
      %v991 = vrot.slane %v986, %v990
      %v997 = vunpack.c.l.b16 %v982
      %v998 = vunpack.c.l.b16 %v983
      %v999 = vunpack.c.l.b16 %v984
      %v1000 = vunpack.c.l.b16 %v985
      %v1001 = vpack.c.b16 %v998, %v997
      %v1002 = vpack.c.b16 %v1000, %v999
      %v1006 = vsel %vm398, %v981, 0
      %1008 = vmatprep.subr.bf16.mxu0 0
      %1009 = vmatpush1.bf16.msra.mxu0 0
      %1010 = vmatprep.subr.bf16.mxu0 0
      %1011 = vmatpush1.bf16.msra.mxu0 0
      %1012 = vmatprep.subr.bf16.mxu0 0
      %1013 = vmatpush1.bf16.msra.mxu0 0
      %1014 = vmatprep.subr.bf16.mxu0 0
      %1015 = vmatpush1.bf16.msra.mxu0 0
      %1016 = vmatprep.subr.bf16.mxu0 0
      %1017 = vmatpush1.bf16.msra.mxu0 0
      %1018 = vmatprep.subr.bf16.mxu0 0
      %1019 = vmatpush1.bf16.msra.mxu0 0
      %1020 = vmatprep.subr.bf16.mxu0 0
      %1021 = vmatpush1.bf16.msra.mxu0 %v1002
      %1022 = vmatprep.subr.bf16.mxu0 0
      %1023 = vmatpush1.bf16.msra.mxu0 %v1001
      %1024 = vmatprep.subr.bf16.mxu0 0
      %1025 = vmatpush2.bf16.msra.mxu0 0
      %1026 = vmatprep.subr.bf16.mxu0 0
      %1027 = vmatpush2.bf16.msra.mxu0 0
      %1028 = vmatprep.subr.bf16.mxu0 0
      %1029 = vmatpush2.bf16.msra.mxu0 0
      %1030 = vmatprep.subr.bf16.mxu0 0
      %1031 = vmatpush2.bf16.msra.mxu0 0
      %1032 = vmatprep.subr.bf16.mxu0 0
      %1033 = vmatpush2.bf16.msra.mxu0 0
      %1034 = vmatprep.subr.bf16.mxu0 0
      %1035 = vmatpush2.bf16.msra.mxu0 0
      %1036 = vmatprep.subr.bf16.mxu0 0
      %1037 = vmatpush2.bf16.msra.mxu0 0
      %1038 = vmatprep.subr.bf16.mxu0 0
      %1039 = vmatpush2.bf16.msra.mxu0 0
      %1040 = vmatprep.mubr.bf16.mxu0 0
      %1041 = vmatmul.mubr.bf16.gmra.mxu0 %v1006
      %v1042 = vpop.f32.mrf.mxu0
      %v1043 = vadd.f32 %v991, %v1042
      %v1044 = vpop.f32.mrf.mxu0
      %v1045 = vpop.f32.mrf.mxu0
      %v1046 = vpop.f32.mrf.mxu0
      %1047 = vdwg.mxu0
      %v1048 = vld [vmem:[%s363] sm:$0xf]
      %v1049 = vunpack.c.l.bf16 %v1048
      %v1050 = vadd.f32 %v1049, %v1043
      %v1051 = vsel %vm398, %v1050, 0.0
      %1052 = vadd.xlane.f32.xlu0 %v1051
      %v1053 = vpop.xlane.xlu0 %1052
      %v1054 = vrcp.pop 32.0
      %v1055 = vmul.f32 %v1053, %v1054
      %v1056 = vsub.f32 %v1050, %v1055
      %v1057 = vmul.f32 %v1056, %v1056
      %v1058 = vsel %vm398, %v1057, 0.0
      %1059 = vadd.xlane.f32.xlu0 %v1058
      %v1060 = vpop.xlane.xlu0 %1059
      %v1061 = vmul.f32 %v1060, %v1054
      %v1062 = vadd.f32 %v1061, 1e-05
      %v1063 = vrsqrt.pop %v1062
      %v1064 = vmul.f32 %v1056, %v1063
      %v1065 = vld [vmem:[%s8] sm:$0x1]
      %v1067 = vlaneseq
      %v1068 = vshrl.u32 %v1067, 7
      %v1069 = vsub.s32 0, %v1068
      %v1070 = vrot.slane %v1065, %v1069
      %v1072 = vmul.f32 %v1064, %v1070
      %v1073 = vld [vmem:[%s9] sm:$0x1]
      %v1075 = vlaneseq
      %v1076 = vshrl.u32 %v1075, 7
      %v1077 = vsub.s32 0, %v1076
      %v1078 = vrot.slane %v1073, %v1077
      %v1080 = vadd.f32 %v1072, %v1078
      %v1081 = vpack.c.bf16 %v1080, %v1080
      %vm1082 = vcmask 257024
      %1083 = vst.msk [vmem:[%s371] sm:$0xf] %vm1082, %v1081
      %p1084 = scmp.lt.s32.totalorder %s21, 1
      %s1085 = scalar_select %p1084, %s21, 1
      %s1086 = smul.addr %s1085, 4
      %s1087 = scalar_lea.vmem %s10, %s1086
      // Predicated region
      $region61: #{closed_call.23} parent=59 // pred_check
        %p1088 = pneg %p259
      $region62: #{closed_call.23} parent=59 // pred_check_branch
        %1090 = sbr.rel (%p1088) target = $region64
      $region63: #{closed_call.23} parent=59 // pred_region
        _
      $region64: #{closed_call.23} parent=59 // pred_fallthru
        _
    $region60: #{closed_call.23} parent=5 // pred_fallthru
      _
    %p1091 = scmp.le.s32.totalorder 2, %s16
    // Predicated region
    $region65: #{closed_call.23} parent=5 // pred_check
      %p1092 = pneg %p1091
    $region66: #{closed_call.23} parent=5 // pred_check_branch
      %1094 = sbr.rel (%p1092) target = $region68
    $region67: #{closed_call.23} parent=5 // pred_region
      %s1095 = ssub.s32 %s16, 2
      // Predicated region
      $region69: #{closed_call.23} parent=67 // pred_check
        %p1096 = pneg %p265
      $region70: #{closed_call.23} parent=67 // pred_check_branch
        %1098 = sbr.rel (%p1096) target = $region72
      $region71: #{closed_call.23} parent=67 // pred_region
        %p1099 = scmp.lt.s32.totalorder %s22, 1
        %s1100 = scalar_select %p1099, %s22, 1
        %s1101 = smul.addr %s1100, 4
        %s1102 = scalar_lea.vmem %s10, %s1101
      $region72: #{closed_call.23} parent=67 // pred_fallthru
        _
    $region68: #{closed_call.23} parent=5 // pred_fallthru
      _
  $region6: #{closed_call.23} parent=0 // loop_footer
    %s20 = sadd.s32 1, %s16
  $region7: #{closed_call.23} parent=0 // loop_footer_branch
    %15 = sbr.rel target = $region3
  $region8: #{closed_call.23} parent=0 // loop_exit
    _

// kernel: nlg_bert_forward.13
$region0: #{nlg_bert_forward.13}
  #allocation0 [shape = 'u32[]', space=smem, size = 0x4, offset = 0x4, fixed_abs, tag = 'smem constant byte address 0x4 - core index']
  #allocation1 [shape = 'u32[144,128]{1,0:T(1,128)}', space=vmem, size = 0x12000, scoped, tag = 'internal scratch']
  #allocation2 [shape = 'f32[16,50]{1,0:T(8,128)}', space=vmem, size = 0x2000, scoped, tag = 'scratch operand']
  %s0 = inlined_call_operand.vmem [shape: bf16[16,32], index: 0, kind: input, shape index: {}]
  %s1 = inlined_call_operand.vmem [shape: bf16[32,50], index: 1, kind: input, shape index: {}]
  %s2 = inlined_call_operand.vmem [shape: f32[1,50], index: 2, kind: input, shape index: {}]
  %s3 = inlined_call_operand.hbm [shape: f32[16,50], index: 3, kind: output, shape index: {}]
  %s4 = sld [smem:[#allocation0]]
  $region30: #{nlg_bert_forward.13} parent=0
    _
  %s6 = ssub.s32 1, %s4
  %s7 = scalar_select 0, %s6, %s4
  $region1: #{nlg_bert_forward.13} parent=0
    #allocation3 [shape = 'u8[8192]{0}', space=vmem, size = 0x2000, scoped, tag = 'output window, operand 0, single buffered']
    #allocation4 [shape = 's32[1]{0}', space=sflag, size = 0x4, scoped, tag = 'scoped memory for nlg_bert_forward.13']
    %8 = vsyncpa [#allocation4], 0
    // Predicated region
    $region2: #{nlg_bert_forward.13} parent=1 // pred_check
      _
    $region3: #{nlg_bert_forward.13} parent=1 // pred_check_branch
      %10 = sbr.rel (0) target = $region5
    $region4: #{nlg_bert_forward.13} parent=1 // pred_region
      _
    $region5: #{nlg_bert_forward.13} parent=1 // pred_fallthru
      _
    // Predicated region
    $region6: #{nlg_bert_forward.13} parent=1 // pred_check
      _
    $region7: #{nlg_bert_forward.13} parent=1 // pred_check_branch
      %12 = sbr.rel (0) target = $region9
    $region8: #{nlg_bert_forward.13} parent=1 // pred_region
      _
    $region9: #{nlg_bert_forward.13} parent=1 // pred_fallthru
      _
    // Predicated region
    $region10: #{nlg_bert_forward.13} parent=1 // pred_check
      _
    $region11: #{nlg_bert_forward.13} parent=1 // pred_check_branch
      %14 = sbr.rel (0) target = $region13
    $region12: #{nlg_bert_forward.13} parent=1 // pred_region
      _
    $region13: #{nlg_bert_forward.13} parent=1 // pred_fallthru
      _
    %p16 = scmp.eq.s32.totalorder 0, 0
    // Predicated region
    $region14: #{nlg_bert_forward.13} parent=1 // pred_check
      %p17 = pneg %p16
    $region15: #{nlg_bert_forward.13} parent=1 // pred_check_branch
      %19 = sbr.rel (%p17) target = $region17
    $region16: #{nlg_bert_forward.13} parent=1 // pred_region
      %vm20 = vcmask 408576
      %21 = vst.msk [vmem:[#allocation2] sm:$0xff] %vm20, 0.0
      %22 = vst.msk [vmem:[#allocation2 + $0x8] sm:$0xff] %vm20, 0.0
    $region17: #{nlg_bert_forward.13} parent=1 // pred_fallthru
      _
    %v23 = vld [vmem:[#allocation2] sm:$0xff]
    %v24 = vld [vmem:[#allocation2 + $0x8] sm:$0xff]
    %v25 = vld [vmem:[%s0] sm:$0xf]
    %v26 = vld [vmem:[%s0 + $0x4] sm:$0xf]
    %v27 = vld [vmem:[%s1] sm:$0xf]
    %v28 = vld [vmem:[%s1 + $0x4] sm:$0xf]
    %v29 = vld [vmem:[%s1 + $0x8] sm:$0xf]
    %v30 = vld [vmem:[%s1 + $0xc] sm:$0xf]
    %v33 = vunpack.c.l.b16 %v25
    %v34 = vunpack.c.l.b16 %v26
    %v35 = vpack.c.b16 %v34, %v33
    %v40 = vunpack.c.l.b16 %v27
    %v41 = vunpack.c.l.b16 %v28
    %v42 = vunpack.c.l.b16 %v29
    %v43 = vunpack.c.l.b16 %v30
    %v44 = vpack.c.b16 %v41, %v40
    %v45 = vpack.c.b16 %v43, %v42
    %vm48 = vcmask 261120
    %v50 = vsel %vm48, %v35, 0
    %52 = vmatprep.subr.bf16.mxu0 0
    %53 = vmatpush1.bf16.msra.mxu0 0
    %54 = vmatprep.subr.bf16.mxu0 0
    %55 = vmatpush1.bf16.msra.mxu0 0
    %56 = vmatprep.subr.bf16.mxu0 0
    %57 = vmatpush1.bf16.msra.mxu0 0
    %58 = vmatprep.subr.bf16.mxu0 0
    %59 = vmatpush1.bf16.msra.mxu0 0
    %60 = vmatprep.subr.bf16.mxu0 0
    %61 = vmatpush1.bf16.msra.mxu0 0
    %62 = vmatprep.subr.bf16.mxu0 0
    %63 = vmatpush1.bf16.msra.mxu0 0
    %64 = vmatprep.subr.bf16.mxu0 0
    %65 = vmatpush1.bf16.msra.mxu0 %v45
    %66 = vmatprep.subr.bf16.mxu0 0
    %67 = vmatpush1.bf16.msra.mxu0 %v44
    %68 = vmatprep.subr.bf16.mxu0 0
    %69 = vmatpush2.bf16.msra.mxu0 0
    %70 = vmatprep.subr.bf16.mxu0 0
    %71 = vmatpush2.bf16.msra.mxu0 0
    %72 = vmatprep.subr.bf16.mxu0 0
    %73 = vmatpush2.bf16.msra.mxu0 0
    %74 = vmatprep.subr.bf16.mxu0 0
    %75 = vmatpush2.bf16.msra.mxu0 0
    %76 = vmatprep.subr.bf16.mxu0 0
    %77 = vmatpush2.bf16.msra.mxu0 0
    %78 = vmatprep.subr.bf16.mxu0 0
    %79 = vmatpush2.bf16.msra.mxu0 0
    %80 = vmatprep.subr.bf16.mxu0 0
    %81 = vmatpush2.bf16.msra.mxu0 0
    %82 = vmatprep.subr.bf16.mxu0 0
    %83 = vmatpush2.bf16.msra.mxu0 0
    %84 = vmatprep.mubr.bf16.mxu0 0
    %85 = vmatmul.mubr.bf16.gmra.mxu0 %v50
    %v86 = vpop.f32.mrf.mxu0
    %v87 = vadd.f32 0.0, %v86
    %v88 = vpop.f32.mrf.mxu0
    %v89 = vpop.f32.mrf.mxu0
    %v90 = vadd.f32 0.0, %v89
    %v91 = vpop.f32.mrf.mxu0
    %92 = vdwg.mxu0
    %v93 = vadd.f32 %v23, %v87
    %v94 = vadd.f32 %v24, %v90
    %vm95 = vcmask 408576
    %96 = vst.msk [vmem:[#allocation2] sm:$0xff] %vm95, %v93
    %97 = vst.msk [vmem:[#allocation2 + $0x8] sm:$0xff] %vm95, %v94
    // Predicated region
    $region18: #{nlg_bert_forward.13} parent=1 // pred_check
      %p98 = pneg %p16
    $region19: #{nlg_bert_forward.13} parent=1 // pred_check_branch
      %100 = sbr.rel (%p98) target = $region21
    $region20: #{nlg_bert_forward.13} parent=1 // pred_region
      %v101 = vld [vmem:[#allocation2] sm:$0xff]
      %v102 = vld [vmem:[#allocation2 + $0x8] sm:$0xff]
      %v103 = vld [vmem:[%s2] sm:$0x1]
      %v105 = vlaneseq
      %v106 = vshrl.u32 %v105, 7
      %v107 = vsub.s32 0, %v106
      %v108 = vrot.slane %v103, %v107
      %v110 = vadd.f32 %v101, %v108
      %v111 = vadd.f32 %v102, %v108
      %112 = vst.msk [vmem:[#allocation3] sm:$0xff] %vm95, %v110
      %113 = vst.msk [vmem:[#allocation3 + $0x8] sm:$0xff] %vm95, %v111
    $region21: #{nlg_bert_forward.13} parent=1 // pred_fallthru
      _
    // Predicated region
    $region22: #{nlg_bert_forward.13} parent=1 // pred_check
      _
    $region23: #{nlg_bert_forward.13} parent=1 // pred_check_branch
      %115 = sbr.rel (0) target = $region25
    $region24: #{nlg_bert_forward.13} parent=1 // pred_region
      %s117 = ssub.s32 256, 256
      %118 = vsyncadd [#allocation4], %s117
      %s119 = sshll.u32 [#allocation3], 4
      %s120 = int_to_ptr.vmem [resolvable:$true] %s119
      %125 = dma.vmem_to_hbm [thread:$0]  %s120, 256, %s3, [#allocation4], 128, 128, 8
    $region25: #{nlg_bert_forward.13} parent=1 // pred_fallthru
      _
    // Predicated region
    $region26: #{nlg_bert_forward.13} parent=1 // pred_check
      _
    $region27: #{nlg_bert_forward.13} parent=1 // pred_check_branch
      %127 = sbr.rel (0) target = $region29
    $region28: #{nlg_bert_forward.13} parent=1 // pred_region
      %128 = dma.done [#allocation4], 256
    $region29: #{nlg_bert_forward.13} parent=1 // pred_fallthru
      _
    %129 = vsyncpa [#allocation4], 1

// kernel: closed_call.19
$region0: #{closed_call.19}
  #allocation0 [shape = 'u32[]', space=smem, size = 0x4, offset = 0x4, fixed_abs, tag = 'smem constant byte address 0x4 - core index']
  #allocation1 [shape = 'u32[144,128]{1,0:T(1,128)}', space=vmem, size = 0x12000, scoped, tag = 'internal scratch']
  #allocation2 [shape = 'bf16[8,32]{1,0:T(8,128)(2,1)}', space=vmem, size = 0x800, scoped, tag = 'scratch operand']
  %s0 = inlined_call_operand.vmem [shape: bf16[2,8,32], index: 0, kind: input, shape index: {}, may-alias: {0,1}]
  %s1 = inlined_call_operand.vmem [shape: bf16[2,8,32], index: 1, kind: input, shape index: {}, may-alias: {0,1}]
  %s2 = inlined_call_operand.vmem [shape: bf16[32,32], index: 2, kind: input, shape index: {}]
  %s3 = inlined_call_operand.vmem [shape: f32[1,32], index: 3, kind: input, shape index: {}]
  %s4 = inlined_call_operand.vmem [shape: bf16[32,64], index: 4, kind: input, shape index: {}]
  %s5 = inlined_call_operand.vmem [shape: f32[1,64], index: 5, kind: input, shape index: {}]
  %s6 = inlined_call_operand.vmem [shape: bf16[32,32], index: 6, kind: input, shape index: {}]
  %s7 = inlined_call_operand.vmem [shape: f32[1,32], index: 7, kind: input, shape index: {}]
  %s8 = inlined_call_operand.vmem [shape: f32[1,32], index: 8, kind: input, shape index: {}]
  %s9 = inlined_call_operand.vmem [shape: f32[1,32], index: 9, kind: input, shape index: {}]
  %s10 = inlined_call_operand.vmem [shape: bf16[2,8,32], index: 10, kind: output, shape index: {}]
  %s11 = sld [smem:[#allocation0]]
  $region73: #{closed_call.19} parent=0
    _
  %s13 = ssub.s32 1, %s11
  %s14 = scalar_select 0, %s13, %s11
  loop: start=0, step=1, limit=4
  $region2: #{closed_call.19} parent=0 // loop_pre_header
    _
  $region3: #{closed_call.19} parent=0 // loop_header
    %s16 = sphi 0, %s20
    %p17 = scmp.ge.s32.totalorder %s16, 4
    %s26 = sphi 0, %s28
    %s29 = sphi 0, %s26
    %s30 = sphi 0, %s29
    %s46 = sphi 0, %s30
    %s52 = sphi 0, %s54
    %s55 = sphi 0, %s52
    %s56 = sphi 0, %s55
    %s72 = sphi 0, %s56
    %s76 = sphi 0, %s76
    %s78 = sphi 0, %s76
    %s79 = sphi 0, %s78
    %s93 = sphi 0, %s79
    %s97 = sphi 0, %s97
    %s99 = sphi 0, %s97
    %s100 = sphi 0, %s99
    %s114 = sphi 0, %s100
    %s118 = sphi 0, %s118
    %s120 = sphi 0, %s118
    %s121 = sphi 0, %s120
    %s135 = sphi 0, %s121
    %s139 = sphi 0, %s139
    %s141 = sphi 0, %s139
    %s142 = sphi 0, %s141
    %s156 = sphi 0, %s142
    %s160 = sphi 0, %s160
    %s162 = sphi 0, %s160
    %s163 = sphi 0, %s162
    %s177 = sphi 0, %s163
    %s181 = sphi 0, %s181
    %s183 = sphi 0, %s181
    %s184 = sphi 0, %s183
    %s198 = sphi 0, %s184
    %s202 = sphi 0, %s202
    %s204 = sphi 0, %s202
    %s205 = sphi 0, %s204
    %s219 = sphi 0, %s205
    %s223 = sphi 0, %s223
    %s225 = sphi 0, %s223
    %s226 = sphi 0, %s225
    %s240 = sphi 0, %s226
    %s246 = sphi 0, %s248
    %s249 = sphi 0, %s246
    %s250 = sphi 0, %s249
    %s266 = sphi 0, %s250
  $region4: #{closed_call.19} parent=0 // loop_header_branch
    %19 = sbr.rel (%p17) target = $region8
  $region5: #{closed_call.19} parent=0 // loop_body
    %s21 = ssub.s32 %s16, 1
    %s22 = ssub.s32 %s16, 2
    %s23 = sadd.s32 %s16, 1
    %s24 = ssub.s32 %s16, %s23
    %p25 = scmp.eq.s32.totalorder %s24, 0
    %s27 = sadd.s32 %s26, 1
    %s28 = scalar_select %p25, %s26, %s27
    %p31 = pneg %p25
    %p32 = scmp.eq.s32.totalorder %s16, 1
    %p33 = por %p31, %p32
    %p34 = scmp.ne.s32.totalorder %s26, %s29
    %p35 = scmp.eq.s32.totalorder %s16, 0
    %p36 = por %p34, %p35
    %p37 = scmp.ne.s32.totalorder %s26, %s29
    %p38 = scmp.eq.s32.totalorder %s21, 1
    %p39 = por %p37, %p38
    %p40 = scmp.ne.s32.totalorder %s29, %s30
    %p41 = scmp.eq.s32.totalorder %s21, 0
    %p42 = por %p40, %p41
    %p43 = scmp.ne.s32.totalorder %s29, %s30
    %p44 = scmp.eq.s32.totalorder %s22, 1
    %p45 = por %p43, %p44
    %p47 = scmp.ne.s32.totalorder %s30, %s46
    %p48 = scmp.eq.s32.totalorder %s22, 0
    %p49 = por %p47, %p48
    %s50 = ssub.s32 %s16, %s23
    %p51 = scmp.eq.s32.totalorder %s50, 0
    %s53 = sadd.s32 %s52, 1
    %s54 = scalar_select %p51, %s52, %s53
    %p57 = pneg %p51
    %p58 = scmp.eq.s32.totalorder %s16, 1
    %p59 = por %p57, %p58
    %p60 = scmp.ne.s32.totalorder %s52, %s55
    %p61 = scmp.eq.s32.totalorder %s16, 0
    %p62 = por %p60, %p61
    %p63 = scmp.ne.s32.totalorder %s52, %s55
    %p64 = scmp.eq.s32.totalorder %s21, 1
    %p65 = por %p63, %p64
    %p66 = scmp.ne.s32.totalorder %s55, %s56
    %p67 = scmp.eq.s32.totalorder %s21, 0
    %p68 = por %p66, %p67
    %p69 = scmp.ne.s32.totalorder %s55, %s56
    %p70 = scmp.eq.s32.totalorder %s22, 1
    %p71 = por %p69, %p70
    %p73 = scmp.ne.s32.totalorder %s56, %s72
    %p74 = scmp.eq.s32.totalorder %s22, 0
    %p75 = por %p73, %p74
    %s77 = sadd.s32 %s76, 1
    %p80 = scmp.eq.s32.totalorder %s16, 1
    %p81 = scmp.ne.s32.totalorder %s76, %s78
    %p82 = scmp.eq.s32.totalorder %s16, 0
    %p83 = por %p81, %p82
    %p84 = scmp.ne.s32.totalorder %s76, %s78
    %p85 = scmp.eq.s32.totalorder %s21, 1
    %p86 = por %p84, %p85
    %p87 = scmp.ne.s32.totalorder %s78, %s79
    %p88 = scmp.eq.s32.totalorder %s21, 0
    %p89 = por %p87, %p88
    %p90 = scmp.ne.s32.totalorder %s78, %s79
    %p91 = scmp.eq.s32.totalorder %s22, 1
    %p92 = por %p90, %p91
    %p94 = scmp.ne.s32.totalorder %s79, %s93
    %p95 = scmp.eq.s32.totalorder %s22, 0
    %p96 = por %p94, %p95
    %s98 = sadd.s32 %s97, 1
    %p101 = scmp.eq.s32.totalorder %s16, 1
    %p102 = scmp.ne.s32.totalorder %s97, %s99
    %p103 = scmp.eq.s32.totalorder %s16, 0
    %p104 = por %p102, %p103
    %p105 = scmp.ne.s32.totalorder %s97, %s99
    %p106 = scmp.eq.s32.totalorder %s21, 1
    %p107 = por %p105, %p106
    %p108 = scmp.ne.s32.totalorder %s99, %s100
    %p109 = scmp.eq.s32.totalorder %s21, 0
    %p110 = por %p108, %p109
    %p111 = scmp.ne.s32.totalorder %s99, %s100
    %p112 = scmp.eq.s32.totalorder %s22, 1
    %p113 = por %p111, %p112
    %p115 = scmp.ne.s32.totalorder %s100, %s114
    %p116 = scmp.eq.s32.totalorder %s22, 0
    %p117 = por %p115, %p116
    %s119 = sadd.s32 %s118, 1
    %p122 = scmp.eq.s32.totalorder %s16, 1
    %p123 = scmp.ne.s32.totalorder %s118, %s120
    %p124 = scmp.eq.s32.totalorder %s16, 0
    %p125 = por %p123, %p124
    %p126 = scmp.ne.s32.totalorder %s118, %s120
    %p127 = scmp.eq.s32.totalorder %s21, 1
    %p128 = por %p126, %p127
    %p129 = scmp.ne.s32.totalorder %s120, %s121
    %p130 = scmp.eq.s32.totalorder %s21, 0
    %p131 = por %p129, %p130
    %p132 = scmp.ne.s32.totalorder %s120, %s121
    %p133 = scmp.eq.s32.totalorder %s22, 1
    %p134 = por %p132, %p133
    %p136 = scmp.ne.s32.totalorder %s121, %s135
    %p137 = scmp.eq.s32.totalorder %s22, 0
    %p138 = por %p136, %p137
    %s140 = sadd.s32 %s139, 1
    %p143 = scmp.eq.s32.totalorder %s16, 1
    %p144 = scmp.ne.s32.totalorder %s139, %s141
    %p145 = scmp.eq.s32.totalorder %s16, 0
    %p146 = por %p144, %p145
    %p147 = scmp.ne.s32.totalorder %s139, %s141
    %p148 = scmp.eq.s32.totalorder %s21, 1
    %p149 = por %p147, %p148
    %p150 = scmp.ne.s32.totalorder %s141, %s142
    %p151 = scmp.eq.s32.totalorder %s21, 0
    %p152 = por %p150, %p151
    %p153 = scmp.ne.s32.totalorder %s141, %s142
    %p154 = scmp.eq.s32.totalorder %s22, 1
    %p155 = por %p153, %p154
    %p157 = scmp.ne.s32.totalorder %s142, %s156
    %p158 = scmp.eq.s32.totalorder %s22, 0
    %p159 = por %p157, %p158
    %s161 = sadd.s32 %s160, 1
    %p164 = scmp.eq.s32.totalorder %s16, 1
    %p165 = scmp.ne.s32.totalorder %s160, %s162
    %p166 = scmp.eq.s32.totalorder %s16, 0
    %p167 = por %p165, %p166
    %p168 = scmp.ne.s32.totalorder %s160, %s162
    %p169 = scmp.eq.s32.totalorder %s21, 1
    %p170 = por %p168, %p169
    %p171 = scmp.ne.s32.totalorder %s162, %s163
    %p172 = scmp.eq.s32.totalorder %s21, 0
    %p173 = por %p171, %p172
    %p174 = scmp.ne.s32.totalorder %s162, %s163
    %p175 = scmp.eq.s32.totalorder %s22, 1
    %p176 = por %p174, %p175
    %p178 = scmp.ne.s32.totalorder %s163, %s177
    %p179 = scmp.eq.s32.totalorder %s22, 0
    %p180 = por %p178, %p179
    %s182 = sadd.s32 %s181, 1
    %p185 = scmp.eq.s32.totalorder %s16, 1
    %p186 = scmp.ne.s32.totalorder %s181, %s183
    %p187 = scmp.eq.s32.totalorder %s16, 0
    %p188 = por %p186, %p187
    %p189 = scmp.ne.s32.totalorder %s181, %s183
    %p190 = scmp.eq.s32.totalorder %s21, 1
    %p191 = por %p189, %p190
    %p192 = scmp.ne.s32.totalorder %s183, %s184
    %p193 = scmp.eq.s32.totalorder %s21, 0
    %p194 = por %p192, %p193
    %p195 = scmp.ne.s32.totalorder %s183, %s184
    %p196 = scmp.eq.s32.totalorder %s22, 1
    %p197 = por %p195, %p196
    %p199 = scmp.ne.s32.totalorder %s184, %s198
    %p200 = scmp.eq.s32.totalorder %s22, 0
    %p201 = por %p199, %p200
    %s203 = sadd.s32 %s202, 1
    %p206 = scmp.eq.s32.totalorder %s16, 1
    %p207 = scmp.ne.s32.totalorder %s202, %s204
    %p208 = scmp.eq.s32.totalorder %s16, 0
    %p209 = por %p207, %p208
    %p210 = scmp.ne.s32.totalorder %s202, %s204
    %p211 = scmp.eq.s32.totalorder %s21, 1
    %p212 = por %p210, %p211
    %p213 = scmp.ne.s32.totalorder %s204, %s205
    %p214 = scmp.eq.s32.totalorder %s21, 0
    %p215 = por %p213, %p214
    %p216 = scmp.ne.s32.totalorder %s204, %s205
    %p217 = scmp.eq.s32.totalorder %s22, 1
    %p218 = por %p216, %p217
    %p220 = scmp.ne.s32.totalorder %s205, %s219
    %p221 = scmp.eq.s32.totalorder %s22, 0
    %p222 = por %p220, %p221
    %s224 = sadd.s32 %s223, 1
    %p227 = scmp.eq.s32.totalorder %s16, 1
    %p228 = scmp.ne.s32.totalorder %s223, %s225
    %p229 = scmp.eq.s32.totalorder %s16, 0
    %p230 = por %p228, %p229
    %p231 = scmp.ne.s32.totalorder %s223, %s225
    %p232 = scmp.eq.s32.totalorder %s21, 1
    %p233 = por %p231, %p232
    %p234 = scmp.ne.s32.totalorder %s225, %s226
    %p235 = scmp.eq.s32.totalorder %s21, 0
    %p236 = por %p234, %p235
    %p237 = scmp.ne.s32.totalorder %s225, %s226
    %p238 = scmp.eq.s32.totalorder %s22, 1
    %p239 = por %p237, %p238
    %p241 = scmp.ne.s32.totalorder %s226, %s240
    %p242 = scmp.eq.s32.totalorder %s22, 0
    %p243 = por %p241, %p242
    %s244 = ssub.s32 %s16, %s23
    %p245 = scmp.eq.s32.totalorder %s244, 0
    %s247 = sadd.s32 %s246, 1
    %s248 = scalar_select %p245, %s246, %s247
    %p251 = pneg %p245
    %p252 = scmp.eq.s32.totalorder %s16, 1
    %p253 = por %p251, %p252
    %p254 = scmp.ne.s32.totalorder %s246, %s249
    %p255 = scmp.eq.s32.totalorder %s16, 0
    %p256 = por %p254, %p255
    %p257 = scmp.ne.s32.totalorder %s246, %s249
    %p258 = scmp.eq.s32.totalorder %s21, 1
    %p259 = por %p257, %p258
    %p260 = scmp.ne.s32.totalorder %s249, %s250
    %p261 = scmp.eq.s32.totalorder %s21, 0
    %p262 = por %p260, %p261
    %p263 = scmp.ne.s32.totalorder %s249, %s250
    %p264 = scmp.eq.s32.totalorder %s22, 1
    %p265 = por %p263, %p264
    %p267 = scmp.ne.s32.totalorder %s250, %s266
    %p268 = scmp.eq.s32.totalorder %s22, 0
    %p269 = por %p267, %p268
    %p270 = scmp.le.s32.totalorder 1, %s16
    %p271 = scmp.lt.s32.totalorder %s16, 3
    %p272 = pnand %p270, %p271
    %p273 = pneg %p272
    // Predicated region
    $region9: #{closed_call.19} parent=5 // pred_check
      _
    $region10: #{closed_call.19} parent=5 // pred_check_branch
      %275 = sbr.rel (%p272) target = $region12
    $region11: #{closed_call.19} parent=5 // pred_region
      %s276 = ssub.s32 %s16, 1
      // Predicated region
      $region13: #{closed_call.19} parent=11 // pred_check
        %p277 = pneg %p89
      $region14: #{closed_call.19} parent=11 // pred_check_branch
        %279 = sbr.rel (%p277) target = $region16
      $region15: #{closed_call.19} parent=11 // pred_region
        _
      $region16: #{closed_call.19} parent=11 // pred_fallthru
        _
      // Predicated region
      $region17: #{closed_call.19} parent=11 // pred_check
        %p280 = pneg %p110
      $region18: #{closed_call.19} parent=11 // pred_check_branch
        %282 = sbr.rel (%p280) target = $region20
      $region19: #{closed_call.19} parent=11 // pred_region
        _
      $region20: #{closed_call.19} parent=11 // pred_fallthru
        _
      // Predicated region
      $region21: #{closed_call.19} parent=11 // pred_check
        %p283 = pneg %p131
      $region22: #{closed_call.19} parent=11 // pred_check_branch
        %285 = sbr.rel (%p283) target = $region24
      $region23: #{closed_call.19} parent=11 // pred_region
        _
      $region24: #{closed_call.19} parent=11 // pred_fallthru
        _
      // Predicated region
      $region25: #{closed_call.19} parent=11 // pred_check
        %p286 = pneg %p152
      $region26: #{closed_call.19} parent=11 // pred_check_branch
        %288 = sbr.rel (%p286) target = $region28
      $region27: #{closed_call.19} parent=11 // pred_region
        _
      $region28: #{closed_call.19} parent=11 // pred_fallthru
        _
      // Predicated region
      $region29: #{closed_call.19} parent=11 // pred_check
        %p289 = pneg %p173
      $region30: #{closed_call.19} parent=11 // pred_check_branch
        %291 = sbr.rel (%p289) target = $region32
      $region31: #{closed_call.19} parent=11 // pred_region
        _
      $region32: #{closed_call.19} parent=11 // pred_fallthru
        _
      // Predicated region
      $region33: #{closed_call.19} parent=11 // pred_check
        %p292 = pneg %p194
      $region34: #{closed_call.19} parent=11 // pred_check_branch
        %294 = sbr.rel (%p292) target = $region36
      $region35: #{closed_call.19} parent=11 // pred_region
        _
      $region36: #{closed_call.19} parent=11 // pred_fallthru
        _
      // Predicated region
      $region37: #{closed_call.19} parent=11 // pred_check
        %p295 = pneg %p215
      $region38: #{closed_call.19} parent=11 // pred_check_branch
        %297 = sbr.rel (%p295) target = $region40
      $region39: #{closed_call.19} parent=11 // pred_region
        _
      $region40: #{closed_call.19} parent=11 // pred_fallthru
        _
      // Predicated region
      $region41: #{closed_call.19} parent=11 // pred_check
        %p298 = pneg %p236
      $region42: #{closed_call.19} parent=11 // pred_check_branch
        %300 = sbr.rel (%p298) target = $region44
      $region43: #{closed_call.19} parent=11 // pred_region
        _
      $region44: #{closed_call.19} parent=11 // pred_fallthru
        _
    $region12: #{closed_call.19} parent=5 // pred_fallthru
      _
    %p301 = scmp.lt.s32.totalorder %s16, 2
    // Predicated region
    $region45: #{closed_call.19} parent=5 // pred_check
      %p302 = pneg %p301
    $region46: #{closed_call.19} parent=5 // pred_check_branch
      %304 = sbr.rel (%p302) target = $region48
    $region47: #{closed_call.19} parent=5 // pred_region
      // Predicated region
      $region49: #{closed_call.19} parent=47 // pred_check
        %p305 = pneg %p36
      $region50: #{closed_call.19} parent=47 // pred_check_branch
        %307 = sbr.rel (%p305) target = $region52
      $region51: #{closed_call.19} parent=47 // pred_region
        %p308 = scmp.lt.s32.totalorder %s16, 1
        %s309 = scalar_select %p308, %s16, 1
        %s310 = smul.addr %s309, 4
        %s311 = scalar_lea.vmem %s0, %s310
      $region52: #{closed_call.19} parent=47 // pred_fallthru
        _
      // Predicated region
      $region53: #{closed_call.19} parent=47 // pred_check
        %p312 = pneg %p62
      $region54: #{closed_call.19} parent=47 // pred_check_branch
        %314 = sbr.rel (%p312) target = $region56
      $region55: #{closed_call.19} parent=47 // pred_region
        %p315 = scmp.lt.s32.totalorder %s16, 1
        %s316 = scalar_select %p315, %s16, 1
        %s317 = smul.addr %s316, 4
        %s318 = scalar_lea.vmem %s1, %s317
      $region56: #{closed_call.19} parent=47 // pred_fallthru
        _
    $region48: #{closed_call.19} parent=5 // pred_fallthru
      _
    %p319 = scmp.le.s32.totalorder 1, %s16
    %p320 = scmp.lt.s32.totalorder %s16, 3
    %p321 = pnand %p319, %p320
    %p322 = pneg %p321
    // Predicated region
    $region57: #{closed_call.19} parent=5 // pred_check
      _
    $region58: #{closed_call.19} parent=5 // pred_check_branch
      %324 = sbr.rel (%p321) target = $region60
    $region59: #{closed_call.19} parent=5 // pred_region
      %s325 = ssub.s32 %s16, 1
      %p326 = scmp.lt.s32.totalorder %s21, 1
      %s327 = scalar_select %p326, %s21, 1
      %s328 = smul.addr %s327, 4
      %s329 = scalar_lea.vmem %s0, %s328
      %p330 = pneg %p42
      %p331 = pneg %p39
      %p332 = scmp.lt.s32.totalorder %s21, 1
      %s333 = scalar_select %p332, %s21, 1
      %s334 = smul.addr %s333, 4
      %s335 = scalar_lea.vmem %s1, %s334
      %p336 = pneg %p68
      %p337 = pneg %p65
      %p338 = pneg %p89
      %p339 = pneg %p86
      %p340 = pneg %p110
      %p341 = pneg %p107
      %p342 = pneg %p131
      %p343 = pneg %p128
      %p344 = pneg %p152
      %p345 = pneg %p149
      %p346 = pneg %p173
      %p347 = pneg %p170
      %p348 = pneg %p194
      %p349 = pneg %p191
      %p350 = pneg %p215
      %p351 = pneg %p212
      %p352 = pneg %p236
      %p353 = pneg %p233
      %p354 = pneg %p262
      %p355 = pneg %p259
      %p356 = scmp.lt.s32.totalorder %s21, 1
      %s357 = scalar_select %p356, %s21, 1
      %s358 = smul.addr %s357, 4
      %s359 = scalar_lea.vmem %s10, %s358
      %p360 = scmp.lt.s32.totalorder %s21, 1
      %s361 = scalar_select %p360, %s21, 1
      %s362 = smul.addr %s361, 4
      %s363 = scalar_lea.vmem %s0, %s362
      %p364 = scmp.lt.s32.totalorder %s21, 1
      %s365 = scalar_select %p364, %s21, 1
      %s366 = smul.addr %s365, 4
      %s367 = scalar_lea.vmem %s1, %s366
      %p368 = scmp.lt.s32.totalorder %s21, 1
      %s369 = scalar_select %p368, %s21, 1
      %s370 = smul.addr %s369, 4
      %s371 = scalar_lea.vmem %s10, %s370
      %v373 = vld [vmem:[%s363] sm:$0xf]
      %v374 = vld [vmem:[%s367] sm:$0xf]
      %v375 = vld [vmem:[%s2] sm:$0xf]
      %v376 = vld [vmem:[%s2 + $0x4] sm:$0xf]
      %v377 = vld [vmem:[%s2 + $0x8] sm:$0xf]
      %v378 = vld [vmem:[%s2 + $0xc] sm:$0xf]
      %v379 = vld [vmem:[%s3] sm:$0x1]
      %v381 = vlaneseq
      %v382 = vshrl.u32 %v381, 7
      %v383 = vsub.s32 0, %v382
      %v384 = vrot.slane %v379, %v383
      %v390 = vunpack.c.l.b16 %v375
      %v391 = vunpack.c.l.b16 %v376
      %v392 = vunpack.c.l.b16 %v377
      %v393 = vunpack.c.l.b16 %v378
      %v394 = vpack.c.b16 %v391, %v390
      %v395 = vpack.c.b16 %v393, %v392
      %vm398 = vcmask 261120
      %v400 = vsel %vm398, %v373, 0
      %402 = vmatprep.subr.bf16.mxu0 0
      %403 = vmatpush1.bf16.msra.mxu0 0
      %404 = vmatprep.subr.bf16.mxu0 0
      %405 = vmatpush1.bf16.msra.mxu0 0
      %406 = vmatprep.subr.bf16.mxu0 0
      %407 = vmatpush1.bf16.msra.mxu0 0
      %408 = vmatprep.subr.bf16.mxu0 0
      %409 = vmatpush1.bf16.msra.mxu0 0
      %410 = vmatprep.subr.bf16.mxu0 0
      %411 = vmatpush1.bf16.msra.mxu0 0
      %412 = vmatprep.subr.bf16.mxu0 0
      %413 = vmatpush1.bf16.msra.mxu0 0
      %414 = vmatprep.subr.bf16.mxu0 0
      %415 = vmatpush1.bf16.msra.mxu0 %v395
      %416 = vmatprep.subr.bf16.mxu0 0
      %417 = vmatpush1.bf16.msra.mxu0 %v394
      %418 = vmatprep.subr.bf16.mxu0 0
      %419 = vmatpush2.bf16.msra.mxu0 0
      %420 = vmatprep.subr.bf16.mxu0 0
      %421 = vmatpush2.bf16.msra.mxu0 0
      %422 = vmatprep.subr.bf16.mxu0 0
      %423 = vmatpush2.bf16.msra.mxu0 0
      %424 = vmatprep.subr.bf16.mxu0 0
      %425 = vmatpush2.bf16.msra.mxu0 0
      %426 = vmatprep.subr.bf16.mxu0 0
      %427 = vmatpush2.bf16.msra.mxu0 0
      %428 = vmatprep.subr.bf16.mxu0 0
      %429 = vmatpush2.bf16.msra.mxu0 0
      %430 = vmatprep.subr.bf16.mxu0 0
      %431 = vmatpush2.bf16.msra.mxu0 0
      %432 = vmatprep.subr.bf16.mxu0 0
      %433 = vmatpush2.bf16.msra.mxu0 0
      %434 = vmatprep.mubr.bf16.mxu0 0
      %435 = vmatmul.mubr.bf16.gmra.mxu0 %v400
      %v436 = vpop.f32.mrf.mxu0
      %v437 = vadd.f32 %v384, %v436
      %v438 = vpop.f32.mrf.mxu0
      %v439 = vpop.f32.mrf.mxu0
      %v440 = vpop.f32.mrf.mxu0
      %441 = vdwg.mxu0
      %v442 = vmul.f32 %v437, 0.35355338
      %v443 = vld [vmem:[%s4] sm:$0xf]
      %v444 = vld [vmem:[%s4 + $0x4] sm:$0xf]
      %v445 = vld [vmem:[%s4 + $0x8] sm:$0xf]
      %v446 = vld [vmem:[%s4 + $0xc] sm:$0xf]
      %v447 = vld [vmem:[%s5] sm:$0x1]
      %v449 = vlaneseq
      %v450 = vshrl.u32 %v449, 7
      %v451 = vsub.s32 0, %v450
      %v452 = vrot.slane %v447, %v451
      %v458 = vunpack.c.l.b16 %v443
      %v459 = vunpack.c.l.b16 %v444
      %v460 = vunpack.c.l.b16 %v445
      %v461 = vunpack.c.l.b16 %v446
      %v462 = vpack.c.b16 %v459, %v458
      %v463 = vpack.c.b16 %v461, %v460
      %v467 = vsel %vm398, %v374, 0
      %469 = vmatprep.subr.bf16.mxu0 0
      %470 = vmatpush1.bf16.msra.mxu0 0
      %471 = vmatprep.subr.bf16.mxu0 0
      %472 = vmatpush1.bf16.msra.mxu0 0
      %473 = vmatprep.subr.bf16.mxu0 0
      %474 = vmatpush1.bf16.msra.mxu0 0
      %475 = vmatprep.subr.bf16.mxu0 0
      %476 = vmatpush1.bf16.msra.mxu0 0
      %477 = vmatprep.subr.bf16.mxu0 0
      %478 = vmatpush1.bf16.msra.mxu0 0
      %479 = vmatprep.subr.bf16.mxu0 0
      %480 = vmatpush1.bf16.msra.mxu0 0
      %481 = vmatprep.subr.bf16.mxu0 0
      %482 = vmatpush1.bf16.msra.mxu0 %v463
      %483 = vmatprep.subr.bf16.mxu0 0
      %484 = vmatpush1.bf16.msra.mxu0 %v462
      %485 = vmatprep.subr.bf16.mxu0 0
      %486 = vmatpush2.bf16.msra.mxu0 0
      %487 = vmatprep.subr.bf16.mxu0 0
      %488 = vmatpush2.bf16.msra.mxu0 0
      %489 = vmatprep.subr.bf16.mxu0 0
      %490 = vmatpush2.bf16.msra.mxu0 0
      %491 = vmatprep.subr.bf16.mxu0 0
      %492 = vmatpush2.bf16.msra.mxu0 0
      %493 = vmatprep.subr.bf16.mxu0 0
      %494 = vmatpush2.bf16.msra.mxu0 0
      %495 = vmatprep.subr.bf16.mxu0 0
      %496 = vmatpush2.bf16.msra.mxu0 0
      %497 = vmatprep.subr.bf16.mxu0 0
      %498 = vmatpush2.bf16.msra.mxu0 0
      %499 = vmatprep.subr.bf16.mxu0 0
      %500 = vmatpush2.bf16.msra.mxu0 0
      %501 = vmatprep.mubr.bf16.mxu0 0
      %502 = vmatmul.mubr.bf16.gmra.mxu0 %v467
      %v503 = vpop.f32.mrf.mxu0
      %v504 = vadd.f32 %v452, %v503
      %v505 = vpop.f32.mrf.mxu0
      %v506 = vpop.f32.mrf.mxu0
      %v507 = vpop.f32.mrf.mxu0
      %508 = vdwg.mxu0
      %v509 = vlaneseq
      %v510 = vshrl.u32 %v509, 7
      %v511 = vlaneseq
      %v512 = vand.u32 %v511, 127
      %vm513 = vcmp.gt.s32.totalorder %v512, %v510
      %v514 = vsel %vm513, -1e+09, 0.0
      %v515 = vpack.c.bf16 %v442, %v442
      %v516 = vpack.c.bf16 %v504, %v504
      %vm517 = vcmask 64512
      %v519 = vsel %vm517, %v515, 0
      %v522 = vsel %vm517, %v516, 0
      %524 = vmatprep.subr.bf16.mxu0 0
      %525 = vmatpush1.bf16.xpose.msra.mxu0 0
      %526 = vmatprep.subr.bf16.mxu0 0
      %527 = vmatpush1.bf16.xpose.msra.mxu0 0
      %528 = vmatprep.subr.bf16.mxu0 0
      %529 = vmatpush1.bf16.xpose.msra.mxu0 0
      %530 = vmatprep.subr.bf16.mxu0 0
      %531 = vmatpush1.bf16.xpose.msra.mxu0 0
      %532 = vmatprep.subr.bf16.mxu0 0
      %533 = vmatpush1.bf16.xpose.msra.mxu0 0
      %534 = vmatprep.subr.bf16.mxu0 0
      %535 = vmatpush1.bf16.xpose.msra.mxu0 0
      %536 = vmatprep.subr.bf16.mxu0 0
      %537 = vmatpush1.bf16.xpose.msra.mxu0 0
      %538 = vmatprep.subr.bf16.mxu0 0
      %539 = vmatpush1.bf16.xpose.msra.mxu0 %v522
      %540 = vmatprep.subr.bf16.mxu0 0
      %541 = vmatpush2.bf16.xpose.msra.mxu0 0
      %542 = vmatprep.subr.bf16.mxu0 0
      %543 = vmatpush2.bf16.xpose.msra.mxu0 0
      %544 = vmatprep.subr.bf16.mxu0 0
      %545 = vmatpush2.bf16.xpose.msra.mxu0 0
      %546 = vmatprep.subr.bf16.mxu0 0
      %547 = vmatpush2.bf16.xpose.msra.mxu0 0
      %548 = vmatprep.subr.bf16.mxu0 0
      %549 = vmatpush2.bf16.xpose.msra.mxu0 0
      %550 = vmatprep.subr.bf16.mxu0 0
      %551 = vmatpush2.bf16.xpose.msra.mxu0 0
      %552 = vmatprep.subr.bf16.mxu0 0
      %553 = vmatpush2.bf16.xpose.msra.mxu0 0
      %554 = vmatprep.subr.bf16.mxu0 0
      %555 = vmatpush2.bf16.xpose.msra.mxu0 0
      %556 = vmatprep.mubr.bf16.mxu0 0
      %557 = vmatmul.mubr.bf16.gmra.mxu0 %v519
      %v558 = vpop.f32.mrf.mxu0
      %v559 = vadd.f32 %v514, %v558
      %v560 = vpop.f32.mrf.mxu0
      %v561 = vpop.f32.mrf.mxu0
      %v562 = vpop.f32.mrf.mxu0
      %563 = vdwg.mxu0
      %v564 = vsel %vm517, %v559, -inf
      %565 = vmax.xlane.f32.xlu0 %v564
      %v566 = vpop.xlane.xlu0 %565
      %v567 = vsub.f32 %v559, %v566
      %v568 = vmul.f32 %v567, 1.442695
      %v569 = vpow.pop %v568
      %v570 = vsel %vm517, %v569, 0.0
      %571 = vadd.xlane.f32.xlu0 %v570
      %v572 = vpop.xlane.xlu0 %571
      %v573 = vrcp.pop %v572
      %v574 = vmul.f32 %v569, %v573
      %v575 = vpack.c.bf16 %v574, %v574
      %577 = vrot.lane.b32.xlu0 %v516, 96
      %v578 = vpop.permute.xlu0 %577
      %v580 = vsel %vm517, %v575, 0
      %vm582 = vcmask 1043456
      %v584 = vsel %vm582, %v578, 0
      %586 = vmatprep.subr.bf16.mxu0 0
      %587 = vmatpush1.bf16.msra.mxu0 0
      %588 = vmatprep.subr.bf16.mxu0 0
      %589 = vmatpush1.bf16.msra.mxu0 0
      %590 = vmatprep.subr.bf16.mxu0 0
      %591 = vmatpush1.bf16.msra.mxu0 0
      %592 = vmatprep.subr.bf16.mxu0 0
      %593 = vmatpush1.bf16.msra.mxu0 0
      %594 = vmatprep.subr.bf16.mxu0 0
      %595 = vmatpush1.bf16.msra.mxu0 0
      %596 = vmatprep.subr.bf16.mxu0 0
      %597 = vmatpush1.bf16.msra.mxu0 0
      %598 = vmatprep.subr.bf16.mxu0 0
      %599 = vmatpush1.bf16.msra.mxu0 0
      %600 = vmatprep.subr.bf16.mxu0 0
      %601 = vmatpush1.bf16.msra.mxu0 %v584
      %602 = vmatprep.subr.bf16.mxu0 0
      %603 = vmatpush2.bf16.msra.mxu0 0
      %604 = vmatprep.subr.bf16.mxu0 0
      %605 = vmatpush2.bf16.msra.mxu0 0
      %606 = vmatprep.subr.bf16.mxu0 0
      %607 = vmatpush2.bf16.msra.mxu0 0
      %608 = vmatprep.subr.bf16.mxu0 0
      %609 = vmatpush2.bf16.msra.mxu0 0
      %610 = vmatprep.subr.bf16.mxu0 0
      %611 = vmatpush2.bf16.msra.mxu0 0
      %612 = vmatprep.subr.bf16.mxu0 0
      %613 = vmatpush2.bf16.msra.mxu0 0
      %614 = vmatprep.subr.bf16.mxu0 0
      %615 = vmatpush2.bf16.msra.mxu0 0
      %616 = vmatprep.subr.bf16.mxu0 0
      %617 = vmatpush2.bf16.msra.mxu0 0
      %618 = vmatprep.mubr.bf16.mxu0 0
      %619 = vmatmul.mubr.bf16.gmra.mxu0 %v580
      %v620 = vpop.f32.mrf.mxu0
      %v621 = vadd.f32 0.0, %v620
      %v622 = vpop.f32.mrf.mxu0
      %v623 = vpop.f32.mrf.mxu0
      %v624 = vpop.f32.mrf.mxu0
      %625 = vdwg.mxu0
      %v626 = vpack.c.bf16 %v621, %v621
      %vm627 = vcmask 60416
      %628 = vst.msk [vmem:[#allocation2] sm:$0xf] %vm627, %v626
      %630 = vrot.lane.b32.xlu0 %v515, 120
      %v631 = vpop.permute.xlu0 %630
      %632 = vrot.lane.b32.xlu0 %v516, 120
      %v633 = vpop.permute.xlu0 %632
      %v635 = vsel %vm517, %v631, 0
      %v638 = vsel %vm517, %v633, 0
      %640 = vmatprep.subr.bf16.mxu0 0
      %641 = vmatpush1.bf16.xpose.msra.mxu0 0
      %642 = vmatprep.subr.bf16.mxu0 0
      %643 = vmatpush1.bf16.xpose.msra.mxu0 0
      %644 = vmatprep.subr.bf16.mxu0 0
      %645 = vmatpush1.bf16.xpose.msra.mxu0 0
      %646 = vmatprep.subr.bf16.mxu0 0
      %647 = vmatpush1.bf16.xpose.msra.mxu0 0
      %648 = vmatprep.subr.bf16.mxu0 0
      %649 = vmatpush1.bf16.xpose.msra.mxu0 0
      %650 = vmatprep.subr.bf16.mxu0 0
      %651 = vmatpush1.bf16.xpose.msra.mxu0 0
      %652 = vmatprep.subr.bf16.mxu0 0
      %653 = vmatpush1.bf16.xpose.msra.mxu0 0
      %654 = vmatprep.subr.bf16.mxu0 0
      %655 = vmatpush1.bf16.xpose.msra.mxu0 %v638
      %656 = vmatprep.subr.bf16.mxu0 0
      %657 = vmatpush2.bf16.xpose.msra.mxu0 0
      %658 = vmatprep.subr.bf16.mxu0 0
      %659 = vmatpush2.bf16.xpose.msra.mxu0 0
      %660 = vmatprep.subr.bf16.mxu0 0
      %661 = vmatpush2.bf16.xpose.msra.mxu0 0
      %662 = vmatprep.subr.bf16.mxu0 0
      %663 = vmatpush2.bf16.xpose.msra.mxu0 0
      %664 = vmatprep.subr.bf16.mxu0 0
      %665 = vmatpush2.bf16.xpose.msra.mxu0 0
      %666 = vmatprep.subr.bf16.mxu0 0
      %667 = vmatpush2.bf16.xpose.msra.mxu0 0
      %668 = vmatprep.subr.bf16.mxu0 0
      %669 = vmatpush2.bf16.xpose.msra.mxu0 0
      %670 = vmatprep.subr.bf16.mxu0 0
      %671 = vmatpush2.bf16.xpose.msra.mxu0 0
      %672 = vmatprep.mubr.bf16.mxu0 0
      %673 = vmatmul.mubr.bf16.gmra.mxu0 %v635
      %v674 = vpop.f32.mrf.mxu0
      %v675 = vadd.f32 %v514, %v674
      %v676 = vpop.f32.mrf.mxu0
      %v677 = vpop.f32.mrf.mxu0
      %v678 = vpop.f32.mrf.mxu0
      %679 = vdwg.mxu0
      %v680 = vsel %vm517, %v675, -inf
      %681 = vmax.xlane.f32.xlu0 %v680
      %v682 = vpop.xlane.xlu0 %681
      %v683 = vsub.f32 %v675, %v682
      %v684 = vmul.f32 %v683, 1.442695
      %v685 = vpow.pop %v684
      %v686 = vsel %vm517, %v685, 0.0
      %687 = vadd.xlane.f32.xlu0 %v686
      %v688 = vpop.xlane.xlu0 %687
      %v689 = vrcp.pop %v688
      %v690 = vmul.f32 %v685, %v689
      %v691 = vpack.c.bf16 %v690, %v690
      %692 = vrot.lane.b32.xlu0 %v516, 88
      %v693 = vpop.permute.xlu0 %692
      %v695 = vsel %vm517, %v691, 0
      %v698 = vsel %vm582, %v693, 0
      %700 = vmatprep.subr.bf16.mxu0 0
      %701 = vmatpush1.bf16.msra.mxu0 0
      %702 = vmatprep.subr.bf16.mxu0 0
      %703 = vmatpush1.bf16.msra.mxu0 0
      %704 = vmatprep.subr.bf16.mxu0 0
      %705 = vmatpush1.bf16.msra.mxu0 0
      %706 = vmatprep.subr.bf16.mxu0 0
      %707 = vmatpush1.bf16.msra.mxu0 0
      %708 = vmatprep.subr.bf16.mxu0 0
      %709 = vmatpush1.bf16.msra.mxu0 0
      %710 = vmatprep.subr.bf16.mxu0 0
      %711 = vmatpush1.bf16.msra.mxu0 0
      %712 = vmatprep.subr.bf16.mxu0 0
      %713 = vmatpush1.bf16.msra.mxu0 0
      %714 = vmatprep.subr.bf16.mxu0 0
      %715 = vmatpush1.bf16.msra.mxu0 %v698
      %716 = vmatprep.subr.bf16.mxu0 0
      %717 = vmatpush2.bf16.msra.mxu0 0
      %718 = vmatprep.subr.bf16.mxu0 0
      %719 = vmatpush2.bf16.msra.mxu0 0
      %720 = vmatprep.subr.bf16.mxu0 0
      %721 = vmatpush2.bf16.msra.mxu0 0
      %722 = vmatprep.subr.bf16.mxu0 0
      %723 = vmatpush2.bf16.msra.mxu0 0
      %724 = vmatprep.subr.bf16.mxu0 0
      %725 = vmatpush2.bf16.msra.mxu0 0
      %726 = vmatprep.subr.bf16.mxu0 0
      %727 = vmatpush2.bf16.msra.mxu0 0
      %728 = vmatprep.subr.bf16.mxu0 0
      %729 = vmatpush2.bf16.msra.mxu0 0
      %730 = vmatprep.subr.bf16.mxu0 0
      %731 = vmatpush2.bf16.msra.mxu0 0
      %732 = vmatprep.mubr.bf16.mxu0 0
      %733 = vmatmul.mubr.bf16.gmra.mxu0 %v695
      %v734 = vpop.f32.mrf.mxu0
      %v735 = vadd.f32 0.0, %v734
      %v736 = vpop.f32.mrf.mxu0
      %v737 = vpop.f32.mrf.mxu0
      %v738 = vpop.f32.mrf.mxu0
      %739 = vdwg.mxu0
      %v740 = vpack.c.bf16 %v735, %v735
      %v742 = vunpack.c.l.b16 %v740
      %v743 = vpack.c.b16 %v742, %v742
      %744 = vrot.lane.b32.xlu0 %v743, 8
      %v745 = vpop.permute.xlu0 %744
      %vm747 = vcmask 126016
      %748 = vst.msk [vmem:[#allocation2] sm:$0xf] %vm747, %v745
      %749 = vrot.lane.b32.xlu0 %v515, 112
      %v750 = vpop.permute.xlu0 %749
      %751 = vrot.lane.b32.xlu0 %v516, 112
      %v752 = vpop.permute.xlu0 %751
      %v754 = vsel %vm517, %v750, 0
      %v757 = vsel %vm517, %v752, 0
      %759 = vmatprep.subr.bf16.mxu0 0
      %760 = vmatpush1.bf16.xpose.msra.mxu0 0
      %761 = vmatprep.subr.bf16.mxu0 0
      %762 = vmatpush1.bf16.xpose.msra.mxu0 0
      %763 = vmatprep.subr.bf16.mxu0 0
      %764 = vmatpush1.bf16.xpose.msra.mxu0 0
      %765 = vmatprep.subr.bf16.mxu0 0
      %766 = vmatpush1.bf16.xpose.msra.mxu0 0
      %767 = vmatprep.subr.bf16.mxu0 0
      %768 = vmatpush1.bf16.xpose.msra.mxu0 0
      %769 = vmatprep.subr.bf16.mxu0 0
      %770 = vmatpush1.bf16.xpose.msra.mxu0 0
      %771 = vmatprep.subr.bf16.mxu0 0
      %772 = vmatpush1.bf16.xpose.msra.mxu0 0
      %773 = vmatprep.subr.bf16.mxu0 0
      %774 = vmatpush1.bf16.xpose.msra.mxu0 %v757
      %775 = vmatprep.subr.bf16.mxu0 0
      %776 = vmatpush2.bf16.xpose.msra.mxu0 0
      %777 = vmatprep.subr.bf16.mxu0 0
      %778 = vmatpush2.bf16.xpose.msra.mxu0 0
      %779 = vmatprep.subr.bf16.mxu0 0
      %780 = vmatpush2.bf16.xpose.msra.mxu0 0
      %781 = vmatprep.subr.bf16.mxu0 0
      %782 = vmatpush2.bf16.xpose.msra.mxu0 0
      %783 = vmatprep.subr.bf16.mxu0 0
      %784 = vmatpush2.bf16.xpose.msra.mxu0 0
      %785 = vmatprep.subr.bf16.mxu0 0
      %786 = vmatpush2.bf16.xpose.msra.mxu0 0
      %787 = vmatprep.subr.bf16.mxu0 0
      %788 = vmatpush2.bf16.xpose.msra.mxu0 0
      %789 = vmatprep.subr.bf16.mxu0 0
      %790 = vmatpush2.bf16.xpose.msra.mxu0 0
      %791 = vmatprep.mubr.bf16.mxu0 0
      %792 = vmatmul.mubr.bf16.gmra.mxu0 %v754
      %v793 = vpop.f32.mrf.mxu0
      %v794 = vadd.f32 %v514, %v793
      %v795 = vpop.f32.mrf.mxu0
      %v796 = vpop.f32.mrf.mxu0
      %v797 = vpop.f32.mrf.mxu0
      %798 = vdwg.mxu0
      %v799 = vsel %vm517, %v794, -inf
      %800 = vmax.xlane.f32.xlu0 %v799
      %v801 = vpop.xlane.xlu0 %800
      %v802 = vsub.f32 %v794, %v801
      %v803 = vmul.f32 %v802, 1.442695
      %v804 = vpow.pop %v803
      %v805 = vsel %vm517, %v804, 0.0
      %806 = vadd.xlane.f32.xlu0 %v805
      %v807 = vpop.xlane.xlu0 %806
      %v808 = vrcp.pop %v807
      %v809 = vmul.f32 %v804, %v808
      %v810 = vpack.c.bf16 %v809, %v809
      %811 = vrot.lane.b32.xlu0 %v516, 80
      %v812 = vpop.permute.xlu0 %811
      %v814 = vsel %vm517, %v810, 0
      %v817 = vsel %vm582, %v812, 0
      %819 = vmatprep.subr.bf16.mxu0 0
      %820 = vmatpush1.bf16.msra.mxu0 0
      %821 = vmatprep.subr.bf16.mxu0 0
      %822 = vmatpush1.bf16.msra.mxu0 0
      %823 = vmatprep.subr.bf16.mxu0 0
      %824 = vmatpush1.bf16.msra.mxu0 0
      %825 = vmatprep.subr.bf16.mxu0 0
      %826 = vmatpush1.bf16.msra.mxu0 0
      %827 = vmatprep.subr.bf16.mxu0 0
      %828 = vmatpush1.bf16.msra.mxu0 0
      %829 = vmatprep.subr.bf16.mxu0 0
      %830 = vmatpush1.bf16.msra.mxu0 0
      %831 = vmatprep.subr.bf16.mxu0 0
      %832 = vmatpush1.bf16.msra.mxu0 0
      %833 = vmatprep.subr.bf16.mxu0 0
      %834 = vmatpush1.bf16.msra.mxu0 %v817
      %835 = vmatprep.subr.bf16.mxu0 0
      %836 = vmatpush2.bf16.msra.mxu0 0
      %837 = vmatprep.subr.bf16.mxu0 0
      %838 = vmatpush2.bf16.msra.mxu0 0
      %839 = vmatprep.subr.bf16.mxu0 0
      %840 = vmatpush2.bf16.msra.mxu0 0
      %841 = vmatprep.subr.bf16.mxu0 0
      %842 = vmatpush2.bf16.msra.mxu0 0
      %843 = vmatprep.subr.bf16.mxu0 0
      %844 = vmatpush2.bf16.msra.mxu0 0
      %845 = vmatprep.subr.bf16.mxu0 0
      %846 = vmatpush2.bf16.msra.mxu0 0
      %847 = vmatprep.subr.bf16.mxu0 0
      %848 = vmatpush2.bf16.msra.mxu0 0
      %849 = vmatprep.subr.bf16.mxu0 0
      %850 = vmatpush2.bf16.msra.mxu0 0
      %851 = vmatprep.mubr.bf16.mxu0 0
      %852 = vmatmul.mubr.bf16.gmra.mxu0 %v814
      %v853 = vpop.f32.mrf.mxu0
      %v854 = vadd.f32 0.0, %v853
      %v855 = vpop.f32.mrf.mxu0
      %v856 = vpop.f32.mrf.mxu0
      %v857 = vpop.f32.mrf.mxu0
      %858 = vdwg.mxu0
      %v859 = vpack.c.bf16 %v854, %v854
      %v861 = vunpack.c.l.b16 %v859
      %v862 = vpack.c.b16 %v861, %v861
      %863 = vrot.lane.b32.xlu0 %v862, 16
      %v864 = vpop.permute.xlu0 %863
      %vm866 = vcmask 191616
      %867 = vst.msk [vmem:[#allocation2] sm:$0xf] %vm866, %v864
      %868 = vrot.lane.b32.xlu0 %v515, 104
      %v869 = vpop.permute.xlu0 %868
      %870 = vrot.lane.b32.xlu0 %v516, 104
      %v871 = vpop.permute.xlu0 %870
      %v873 = vsel %vm517, %v869, 0
      %v876 = vsel %vm517, %v871, 0
      %878 = vmatprep.subr.bf16.mxu0 0
      %879 = vmatpush1.bf16.xpose.msra.mxu0 0
      %880 = vmatprep.subr.bf16.mxu0 0
      %881 = vmatpush1.bf16.xpose.msra.mxu0 0
      %882 = vmatprep.subr.bf16.mxu0 0
      %883 = vmatpush1.bf16.xpose.msra.mxu0 0
      %884 = vmatprep.subr.bf16.mxu0 0
      %885 = vmatpush1.bf16.xpose.msra.mxu0 0
      %886 = vmatprep.subr.bf16.mxu0 0
      %887 = vmatpush1.bf16.xpose.msra.mxu0 0
      %888 = vmatprep.subr.bf16.mxu0 0
      %889 = vmatpush1.bf16.xpose.msra.mxu0 0
      %890 = vmatprep.subr.bf16.mxu0 0
      %891 = vmatpush1.bf16.xpose.msra.mxu0 0
      %892 = vmatprep.subr.bf16.mxu0 0
      %893 = vmatpush1.bf16.xpose.msra.mxu0 %v876
      %894 = vmatprep.subr.bf16.mxu0 0
      %895 = vmatpush2.bf16.xpose.msra.mxu0 0
      %896 = vmatprep.subr.bf16.mxu0 0
      %897 = vmatpush2.bf16.xpose.msra.mxu0 0
      %898 = vmatprep.subr.bf16.mxu0 0
      %899 = vmatpush2.bf16.xpose.msra.mxu0 0
      %900 = vmatprep.subr.bf16.mxu0 0
      %901 = vmatpush2.bf16.xpose.msra.mxu0 0
      %902 = vmatprep.subr.bf16.mxu0 0
      %903 = vmatpush2.bf16.xpose.msra.mxu0 0
      %904 = vmatprep.subr.bf16.mxu0 0
      %905 = vmatpush2.bf16.xpose.msra.mxu0 0
      %906 = vmatprep.subr.bf16.mxu0 0
      %907 = vmatpush2.bf16.xpose.msra.mxu0 0
      %908 = vmatprep.subr.bf16.mxu0 0
      %909 = vmatpush2.bf16.xpose.msra.mxu0 0
      %910 = vmatprep.mubr.bf16.mxu0 0
      %911 = vmatmul.mubr.bf16.gmra.mxu0 %v873
      %v912 = vpop.f32.mrf.mxu0
      %v913 = vadd.f32 %v514, %v912
      %v914 = vpop.f32.mrf.mxu0
      %v915 = vpop.f32.mrf.mxu0
      %v916 = vpop.f32.mrf.mxu0
      %917 = vdwg.mxu0
      %v918 = vsel %vm517, %v913, -inf
      %919 = vmax.xlane.f32.xlu0 %v918
      %v920 = vpop.xlane.xlu0 %919
      %v921 = vsub.f32 %v913, %v920
      %v922 = vmul.f32 %v921, 1.442695
      %v923 = vpow.pop %v922
      %v924 = vsel %vm517, %v923, 0.0
      %925 = vadd.xlane.f32.xlu0 %v924
      %v926 = vpop.xlane.xlu0 %925
      %v927 = vrcp.pop %v926
      %v928 = vmul.f32 %v923, %v927
      %v929 = vpack.c.bf16 %v928, %v928
      %930 = vrot.lane.b32.xlu0 %v516, 72
      %v931 = vpop.permute.xlu0 %930
      %v933 = vsel %vm517, %v929, 0
      %v936 = vsel %vm582, %v931, 0
      %938 = vmatprep.subr.bf16.mxu0 0
      %939 = vmatpush1.bf16.msra.mxu0 0
      %940 = vmatprep.subr.bf16.mxu0 0
      %941 = vmatpush1.bf16.msra.mxu0 0
      %942 = vmatprep.subr.bf16.mxu0 0
      %943 = vmatpush1.bf16.msra.mxu0 0
      %944 = vmatprep.subr.bf16.mxu0 0
      %945 = vmatpush1.bf16.msra.mxu0 0
      %946 = vmatprep.subr.bf16.mxu0 0
      %947 = vmatpush1.bf16.msra.mxu0 0
      %948 = vmatprep.subr.bf16.mxu0 0
      %949 = vmatpush1.bf16.msra.mxu0 0
      %950 = vmatprep.subr.bf16.mxu0 0
      %951 = vmatpush1.bf16.msra.mxu0 0
      %952 = vmatprep.subr.bf16.mxu0 0
      %953 = vmatpush1.bf16.msra.mxu0 %v936
      %954 = vmatprep.subr.bf16.mxu0 0
      %955 = vmatpush2.bf16.msra.mxu0 0
      %956 = vmatprep.subr.bf16.mxu0 0
      %957 = vmatpush2.bf16.msra.mxu0 0
      %958 = vmatprep.subr.bf16.mxu0 0
      %959 = vmatpush2.bf16.msra.mxu0 0
      %960 = vmatprep.subr.bf16.mxu0 0
      %961 = vmatpush2.bf16.msra.mxu0 0
      %962 = vmatprep.subr.bf16.mxu0 0
      %963 = vmatpush2.bf16.msra.mxu0 0
      %964 = vmatprep.subr.bf16.mxu0 0
      %965 = vmatpush2.bf16.msra.mxu0 0
      %966 = vmatprep.subr.bf16.mxu0 0
      %967 = vmatpush2.bf16.msra.mxu0 0
      %968 = vmatprep.subr.bf16.mxu0 0
      %969 = vmatpush2.bf16.msra.mxu0 0
      %970 = vmatprep.mubr.bf16.mxu0 0
      %971 = vmatmul.mubr.bf16.gmra.mxu0 %v933
      %v972 = vpop.f32.mrf.mxu0
      %v973 = vadd.f32 0.0, %v972
      %v974 = vpop.f32.mrf.mxu0
      %v975 = vpop.f32.mrf.mxu0
      %v976 = vpop.f32.mrf.mxu0
      %977 = vdwg.mxu0
      %v978 = vpack.c.bf16 %v973, %v973
      %v980 = vunpack.c.l.b16 %v978
      %v981 = vpack.c.b16 %v980, %v980
      %982 = vrot.lane.b32.xlu0 %v981, 24
      %v983 = vpop.permute.xlu0 %982
      %vm985 = vcmask 257216
      %986 = vst.msk [vmem:[#allocation2] sm:$0xf] %vm985, %v983
      %v987 = vld [vmem:[#allocation2] sm:$0xf]
      %v988 = vld [vmem:[%s6] sm:$0xf]
      %v989 = vld [vmem:[%s6 + $0x4] sm:$0xf]
      %v990 = vld [vmem:[%s6 + $0x8] sm:$0xf]
      %v991 = vld [vmem:[%s6 + $0xc] sm:$0xf]
      %v992 = vld [vmem:[%s7] sm:$0x1]
      %v994 = vlaneseq
      %v995 = vshrl.u32 %v994, 7
      %v996 = vsub.s32 0, %v995
      %v997 = vrot.slane %v992, %v996
      %v1003 = vunpack.c.l.b16 %v988
      %v1004 = vunpack.c.l.b16 %v989
      %v1005 = vunpack.c.l.b16 %v990
      %v1006 = vunpack.c.l.b16 %v991
      %v1007 = vpack.c.b16 %v1004, %v1003
      %v1008 = vpack.c.b16 %v1006, %v1005
      %v1012 = vsel %vm398, %v987, 0
      %1014 = vmatprep.subr.bf16.mxu0 0
      %1015 = vmatpush1.bf16.msra.mxu0 0
      %1016 = vmatprep.subr.bf16.mxu0 0
      %1017 = vmatpush1.bf16.msra.mxu0 0
      %1018 = vmatprep.subr.bf16.mxu0 0
      %1019 = vmatpush1.bf16.msra.mxu0 0
      %1020 = vmatprep.subr.bf16.mxu0 0
      %1021 = vmatpush1.bf16.msra.mxu0 0
      %1022 = vmatprep.subr.bf16.mxu0 0
      %1023 = vmatpush1.bf16.msra.mxu0 0
      %1024 = vmatprep.subr.bf16.mxu0 0
      %1025 = vmatpush1.bf16.msra.mxu0 0
      %1026 = vmatprep.subr.bf16.mxu0 0
      %1027 = vmatpush1.bf16.msra.mxu0 %v1008
      %1028 = vmatprep.subr.bf16.mxu0 0
      %1029 = vmatpush1.bf16.msra.mxu0 %v1007
      %1030 = vmatprep.subr.bf16.mxu0 0
      %1031 = vmatpush2.bf16.msra.mxu0 0
      %1032 = vmatprep.subr.bf16.mxu0 0
      %1033 = vmatpush2.bf16.msra.mxu0 0
      %1034 = vmatprep.subr.bf16.mxu0 0
      %1035 = vmatpush2.bf16.msra.mxu0 0
      %1036 = vmatprep.subr.bf16.mxu0 0
      %1037 = vmatpush2.bf16.msra.mxu0 0
      %1038 = vmatprep.subr.bf16.mxu0 0
      %1039 = vmatpush2.bf16.msra.mxu0 0
      %1040 = vmatprep.subr.bf16.mxu0 0
      %1041 = vmatpush2.bf16.msra.mxu0 0
      %1042 = vmatprep.subr.bf16.mxu0 0
      %1043 = vmatpush2.bf16.msra.mxu0 0
      %1044 = vmatprep.subr.bf16.mxu0 0
      %1045 = vmatpush2.bf16.msra.mxu0 0
      %1046 = vmatprep.mubr.bf16.mxu0 0
      %1047 = vmatmul.mubr.bf16.gmra.mxu0 %v1012
      %v1048 = vpop.f32.mrf.mxu0
      %v1049 = vadd.f32 %v997, %v1048
      %v1050 = vpop.f32.mrf.mxu0
      %v1051 = vpop.f32.mrf.mxu0
      %v1052 = vpop.f32.mrf.mxu0
      %1053 = vdwg.mxu0
      %v1054 = vld [vmem:[%s363] sm:$0xf]
      %v1055 = vunpack.c.l.bf16 %v1054
      %v1056 = vadd.f32 %v1055, %v1049
      %v1057 = vsel %vm398, %v1056, 0.0
      %1058 = vadd.xlane.f32.xlu0 %v1057
      %v1059 = vpop.xlane.xlu0 %1058
      %v1060 = vrcp.pop 32.0
      %v1061 = vmul.f32 %v1059, %v1060
      %v1062 = vsub.f32 %v1056, %v1061
      %v1063 = vmul.f32 %v1062, %v1062
      %v1064 = vsel %vm398, %v1063, 0.0
      %1065 = vadd.xlane.f32.xlu0 %v1064
      %v1066 = vpop.xlane.xlu0 %1065
      %v1067 = vmul.f32 %v1066, %v1060
      %v1068 = vadd.f32 %v1067, 1e-05
      %v1069 = vrsqrt.pop %v1068
      %v1070 = vmul.f32 %v1062, %v1069
      %v1071 = vld [vmem:[%s8] sm:$0x1]
      %v1073 = vlaneseq
      %v1074 = vshrl.u32 %v1073, 7
      %v1075 = vsub.s32 0, %v1074
      %v1076 = vrot.slane %v1071, %v1075
      %v1078 = vmul.f32 %v1070, %v1076
      %v1079 = vld [vmem:[%s9] sm:$0x1]
      %v1081 = vlaneseq
      %v1082 = vshrl.u32 %v1081, 7
      %v1083 = vsub.s32 0, %v1082
      %v1084 = vrot.slane %v1079, %v1083
      %v1086 = vadd.f32 %v1078, %v1084
      %v1087 = vpack.c.bf16 %v1086, %v1086
      %vm1088 = vcmask 257024
      %1089 = vst.msk [vmem:[%s371] sm:$0xf] %vm1088, %v1087
      %p1090 = scmp.lt.s32.totalorder %s21, 1
      %s1091 = scalar_select %p1090, %s21, 1
      %s1092 = smul.addr %s1091, 4
      %s1093 = scalar_lea.vmem %s10, %s1092
      // Predicated region
      $region61: #{closed_call.19} parent=59 // pred_check
        %p1094 = pneg %p259
      $region62: #{closed_call.19} parent=59 // pred_check_branch
        %1096 = sbr.rel (%p1094) target = $region64
      $region63: #{closed_call.19} parent=59 // pred_region
        _
      $region64: #{closed_call.19} parent=59 // pred_fallthru
        _
    $region60: #{closed_call.19} parent=5 // pred_fallthru
      _
    %p1097 = scmp.le.s32.totalorder 2, %s16
    // Predicated region
    $region65: #{closed_call.19} parent=5 // pred_check
      %p1098 = pneg %p1097
    $region66: #{closed_call.19} parent=5 // pred_check_branch
      %1100 = sbr.rel (%p1098) target = $region68
    $region67: #{closed_call.19} parent=5 // pred_region
      %s1101 = ssub.s32 %s16, 2
      // Predicated region
      $region69: #{closed_call.19} parent=67 // pred_check
        %p1102 = pneg %p265
      $region70: #{closed_call.19} parent=67 // pred_check_branch
        %1104 = sbr.rel (%p1102) target = $region72
      $region71: #{closed_call.19} parent=67 // pred_region
        %p1105 = scmp.lt.s32.totalorder %s22, 1
        %s1106 = scalar_select %p1105, %s22, 1
        %s1107 = smul.addr %s1106, 4
        %s1108 = scalar_lea.vmem %s10, %s1107
      $region72: #{closed_call.19} parent=67 // pred_fallthru
        _
    $region68: #{closed_call.19} parent=5 // pred_fallthru
      _
  $region6: #{closed_call.19} parent=0 // loop_footer
    %s20 = sadd.s32 1, %s16
  $region7: #{closed_call.19} parent=0 // loop_footer_branch
    %15 = sbr.rel target = $region3
  $region8: #{closed_call.19} parent=0 // loop_exit
    _

// kernel: nlg_bert_forward.10
$region0: #{nlg_bert_forward.10}
  #allocation0 [shape = 'u32[]', space=smem, size = 0x4, offset = 0x4, fixed_abs, tag = 'smem constant byte address 0x4 - core index']
  #allocation1 [shape = 'u32[144,128]{1,0:T(1,128)}', space=vmem, size = 0x12000, scoped, tag = 'internal scratch']
  #allocation2 [shape = 'bf16[8,32]{1,0:T(8,128)(2,1)}', space=vmem, size = 0x800, scoped, tag = 'scratch operand']
  %s0 = inlined_call_operand.vmem [shape: bf16[2,8,32], index: 0, kind: input, shape index: {}]
  %s1 = inlined_call_operand.vmem [shape: bf16[2,8,32], index: 1, kind: input, shape index: {}]
  %s2 = inlined_call_operand.vmem [shape: bf16[32,32], index: 2, kind: input, shape index: {}]
  %s3 = inlined_call_operand.vmem [shape: f32[1,32], index: 3, kind: input, shape index: {}]
  %s4 = inlined_call_operand.vmem [shape: bf16[32,64], index: 4, kind: input, shape index: {}]
  %s5 = inlined_call_operand.vmem [shape: f32[1,64], index: 5, kind: input, shape index: {}]
  %s6 = inlined_call_operand.vmem [shape: bf16[32,32], index: 6, kind: input, shape index: {}]
  %s7 = inlined_call_operand.vmem [shape: f32[1,32], index: 7, kind: input, shape index: {}]
  %s8 = inlined_call_operand.vmem [shape: f32[1,32], index: 8, kind: input, shape index: {}]
  %s9 = inlined_call_operand.vmem [shape: f32[1,32], index: 9, kind: input, shape index: {}]
  %s10 = inlined_call_operand.vmem [shape: bf16[2,8,32], index: 10, kind: output, shape index: {0}]
  %s11 = inlined_call_operand.hbm [shape: f32[2,4,8,8], index: 11, kind: output, shape index: {1}]
  %12 = xla_tuple %s10, %s11
  %s13 = sld [smem:[#allocation0]]
  $region81: #{nlg_bert_forward.10} parent=0
    _
  %s15 = ssub.s32 1, %s13
  %s16 = scalar_select 0, %s15, %s13
  $region1: #{nlg_bert_forward.10} parent=0
    #allocation3 [shape = 'u8[32768]{0}', space=vmem, size = 0x8000, scoped, tag = 'output window, operand 1']
    #allocation4 [shape = 's32[2]{0}', space=sflag, size = 0x8, scoped, tag = 'scoped memory for nlg_bert_forward.10']
    %17 = vsyncpa [#allocation4], 0
    %s18 = scalar_lea.sflag [#allocation4], 1
    %19 = vsyncpa %s18, 0
    loop: start=0, step=1, limit=4
    $region2: #{nlg_bert_forward.10} parent=1 // loop_pre_header
      _
    $region3: #{nlg_bert_forward.10} parent=1 // loop_header
      %s21 = sphi 0, %s25
      %p22 = scmp.ge.s32.totalorder %s21, 4
      %s31 = sphi 0, %s33
      %s34 = sphi 0, %s31
      %s35 = sphi 0, %s34
      %s51 = sphi 0, %s35
      %s57 = sphi 0, %s59
      %s60 = sphi 0, %s57
      %s61 = sphi 0, %s60
      %s77 = sphi 0, %s61
      %s81 = sphi 0, %s81
      %s83 = sphi 0, %s81
      %s84 = sphi 0, %s83
      %s98 = sphi 0, %s84
      %s102 = sphi 0, %s102
      %s104 = sphi 0, %s102
      %s105 = sphi 0, %s104
      %s119 = sphi 0, %s105
      %s123 = sphi 0, %s123
      %s125 = sphi 0, %s123
      %s126 = sphi 0, %s125
      %s140 = sphi 0, %s126
      %s144 = sphi 0, %s144
      %s146 = sphi 0, %s144
      %s147 = sphi 0, %s146
      %s161 = sphi 0, %s147
      %s165 = sphi 0, %s165
      %s167 = sphi 0, %s165
      %s168 = sphi 0, %s167
      %s182 = sphi 0, %s168
      %s186 = sphi 0, %s186
      %s188 = sphi 0, %s186
      %s189 = sphi 0, %s188
      %s203 = sphi 0, %s189
      %s207 = sphi 0, %s207
      %s209 = sphi 0, %s207
      %s210 = sphi 0, %s209
      %s224 = sphi 0, %s210
      %s228 = sphi 0, %s228
      %s230 = sphi 0, %s228
      %s231 = sphi 0, %s230
      %s245 = sphi 0, %s231
      %s251 = sphi 0, %s253
      %s254 = sphi 0, %s251
      %s255 = sphi 0, %s254
      %s271 = sphi 0, %s255
      %s277 = sphi 0, %s279
      %s280 = sphi 0, %s277
      %s281 = sphi 0, %s280
      %s297 = sphi 0, %s281
    $region4: #{nlg_bert_forward.10} parent=1 // loop_header_branch
      %24 = sbr.rel (%p22) target = $region8
    $region5: #{nlg_bert_forward.10} parent=1 // loop_body
      %s26 = ssub.s32 %s21, 1
      %s27 = ssub.s32 %s21, 2
      %s28 = sadd.s32 %s21, 1
      %s29 = ssub.s32 %s21, %s28
      %p30 = scmp.eq.s32.totalorder %s29, 0
      %s32 = sadd.s32 %s31, 1
      %s33 = scalar_select %p30, %s31, %s32
      %p36 = pneg %p30
      %p37 = scmp.eq.s32.totalorder %s21, 1
      %p38 = por %p36, %p37
      %p39 = scmp.ne.s32.totalorder %s31, %s34
      %p40 = scmp.eq.s32.totalorder %s21, 0
      %p41 = por %p39, %p40
      %p42 = scmp.ne.s32.totalorder %s31, %s34
      %p43 = scmp.eq.s32.totalorder %s26, 1
      %p44 = por %p42, %p43
      %p45 = scmp.ne.s32.totalorder %s34, %s35
      %p46 = scmp.eq.s32.totalorder %s26, 0
      %p47 = por %p45, %p46
      %p48 = scmp.ne.s32.totalorder %s34, %s35
      %p49 = scmp.eq.s32.totalorder %s27, 1
      %p50 = por %p48, %p49
      %p52 = scmp.ne.s32.totalorder %s35, %s51
      %p53 = scmp.eq.s32.totalorder %s27, 0
      %p54 = por %p52, %p53
      %s55 = ssub.s32 %s21, %s28
      %p56 = scmp.eq.s32.totalorder %s55, 0
      %s58 = sadd.s32 %s57, 1
      %s59 = scalar_select %p56, %s57, %s58
      %p62 = pneg %p56
      %p63 = scmp.eq.s32.totalorder %s21, 1
      %p64 = por %p62, %p63
      %p65 = scmp.ne.s32.totalorder %s57, %s60
      %p66 = scmp.eq.s32.totalorder %s21, 0
      %p67 = por %p65, %p66
      %p68 = scmp.ne.s32.totalorder %s57, %s60
      %p69 = scmp.eq.s32.totalorder %s26, 1
      %p70 = por %p68, %p69
      %p71 = scmp.ne.s32.totalorder %s60, %s61
      %p72 = scmp.eq.s32.totalorder %s26, 0
      %p73 = por %p71, %p72
      %p74 = scmp.ne.s32.totalorder %s60, %s61
      %p75 = scmp.eq.s32.totalorder %s27, 1
      %p76 = por %p74, %p75
      %p78 = scmp.ne.s32.totalorder %s61, %s77
      %p79 = scmp.eq.s32.totalorder %s27, 0
      %p80 = por %p78, %p79
      %s82 = sadd.s32 %s81, 1
      %p85 = scmp.eq.s32.totalorder %s21, 1
      %p86 = scmp.ne.s32.totalorder %s81, %s83
      %p87 = scmp.eq.s32.totalorder %s21, 0
      %p88 = por %p86, %p87
      %p89 = scmp.ne.s32.totalorder %s81, %s83
      %p90 = scmp.eq.s32.totalorder %s26, 1
      %p91 = por %p89, %p90
      %p92 = scmp.ne.s32.totalorder %s83, %s84
      %p93 = scmp.eq.s32.totalorder %s26, 0
      %p94 = por %p92, %p93
      %p95 = scmp.ne.s32.totalorder %s83, %s84
      %p96 = scmp.eq.s32.totalorder %s27, 1
      %p97 = por %p95, %p96
      %p99 = scmp.ne.s32.totalorder %s84, %s98
      %p100 = scmp.eq.s32.totalorder %s27, 0
      %p101 = por %p99, %p100
      %s103 = sadd.s32 %s102, 1
      %p106 = scmp.eq.s32.totalorder %s21, 1
      %p107 = scmp.ne.s32.totalorder %s102, %s104
      %p108 = scmp.eq.s32.totalorder %s21, 0
      %p109 = por %p107, %p108
      %p110 = scmp.ne.s32.totalorder %s102, %s104
      %p111 = scmp.eq.s32.totalorder %s26, 1
      %p112 = por %p110, %p111
      %p113 = scmp.ne.s32.totalorder %s104, %s105
      %p114 = scmp.eq.s32.totalorder %s26, 0
      %p115 = por %p113, %p114
      %p116 = scmp.ne.s32.totalorder %s104, %s105
      %p117 = scmp.eq.s32.totalorder %s27, 1
      %p118 = por %p116, %p117
      %p120 = scmp.ne.s32.totalorder %s105, %s119
      %p121 = scmp.eq.s32.totalorder %s27, 0
      %p122 = por %p120, %p121
      %s124 = sadd.s32 %s123, 1
      %p127 = scmp.eq.s32.totalorder %s21, 1
      %p128 = scmp.ne.s32.totalorder %s123, %s125
      %p129 = scmp.eq.s32.totalorder %s21, 0
      %p130 = por %p128, %p129
      %p131 = scmp.ne.s32.totalorder %s123, %s125
      %p132 = scmp.eq.s32.totalorder %s26, 1
      %p133 = por %p131, %p132
      %p134 = scmp.ne.s32.totalorder %s125, %s126
      %p135 = scmp.eq.s32.totalorder %s26, 0
      %p136 = por %p134, %p135
      %p137 = scmp.ne.s32.totalorder %s125, %s126
      %p138 = scmp.eq.s32.totalorder %s27, 1
      %p139 = por %p137, %p138
      %p141 = scmp.ne.s32.totalorder %s126, %s140
      %p142 = scmp.eq.s32.totalorder %s27, 0
      %p143 = por %p141, %p142
      %s145 = sadd.s32 %s144, 1
      %p148 = scmp.eq.s32.totalorder %s21, 1
      %p149 = scmp.ne.s32.totalorder %s144, %s146
      %p150 = scmp.eq.s32.totalorder %s21, 0
      %p151 = por %p149, %p150
      %p152 = scmp.ne.s32.totalorder %s144, %s146
      %p153 = scmp.eq.s32.totalorder %s26, 1
      %p154 = por %p152, %p153
      %p155 = scmp.ne.s32.totalorder %s146, %s147
      %p156 = scmp.eq.s32.totalorder %s26, 0
      %p157 = por %p155, %p156
      %p158 = scmp.ne.s32.totalorder %s146, %s147
      %p159 = scmp.eq.s32.totalorder %s27, 1
      %p160 = por %p158, %p159
      %p162 = scmp.ne.s32.totalorder %s147, %s161
      %p163 = scmp.eq.s32.totalorder %s27, 0
      %p164 = por %p162, %p163
      %s166 = sadd.s32 %s165, 1
      %p169 = scmp.eq.s32.totalorder %s21, 1
      %p170 = scmp.ne.s32.totalorder %s165, %s167
      %p171 = scmp.eq.s32.totalorder %s21, 0
      %p172 = por %p170, %p171
      %p173 = scmp.ne.s32.totalorder %s165, %s167
      %p174 = scmp.eq.s32.totalorder %s26, 1
      %p175 = por %p173, %p174
      %p176 = scmp.ne.s32.totalorder %s167, %s168
      %p177 = scmp.eq.s32.totalorder %s26, 0
      %p178 = por %p176, %p177
      %p179 = scmp.ne.s32.totalorder %s167, %s168
      %p180 = scmp.eq.s32.totalorder %s27, 1
      %p181 = por %p179, %p180
      %p183 = scmp.ne.s32.totalorder %s168, %s182
      %p184 = scmp.eq.s32.totalorder %s27, 0
      %p185 = por %p183, %p184
      %s187 = sadd.s32 %s186, 1
      %p190 = scmp.eq.s32.totalorder %s21, 1
      %p191 = scmp.ne.s32.totalorder %s186, %s188
      %p192 = scmp.eq.s32.totalorder %s21, 0
      %p193 = por %p191, %p192
      %p194 = scmp.ne.s32.totalorder %s186, %s188
      %p195 = scmp.eq.s32.totalorder %s26, 1
      %p196 = por %p194, %p195
      %p197 = scmp.ne.s32.totalorder %s188, %s189
      %p198 = scmp.eq.s32.totalorder %s26, 0
      %p199 = por %p197, %p198
      %p200 = scmp.ne.s32.totalorder %s188, %s189
      %p201 = scmp.eq.s32.totalorder %s27, 1
      %p202 = por %p200, %p201
      %p204 = scmp.ne.s32.totalorder %s189, %s203
      %p205 = scmp.eq.s32.totalorder %s27, 0
      %p206 = por %p204, %p205
      %s208 = sadd.s32 %s207, 1
      %p211 = scmp.eq.s32.totalorder %s21, 1
      %p212 = scmp.ne.s32.totalorder %s207, %s209
      %p213 = scmp.eq.s32.totalorder %s21, 0
      %p214 = por %p212, %p213
      %p215 = scmp.ne.s32.totalorder %s207, %s209
      %p216 = scmp.eq.s32.totalorder %s26, 1
      %p217 = por %p215, %p216
      %p218 = scmp.ne.s32.totalorder %s209, %s210
      %p219 = scmp.eq.s32.totalorder %s26, 0
      %p220 = por %p218, %p219
      %p221 = scmp.ne.s32.totalorder %s209, %s210
      %p222 = scmp.eq.s32.totalorder %s27, 1
      %p223 = por %p221, %p222
      %p225 = scmp.ne.s32.totalorder %s210, %s224
      %p226 = scmp.eq.s32.totalorder %s27, 0
      %p227 = por %p225, %p226
      %s229 = sadd.s32 %s228, 1
      %p232 = scmp.eq.s32.totalorder %s21, 1
      %p233 = scmp.ne.s32.totalorder %s228, %s230
      %p234 = scmp.eq.s32.totalorder %s21, 0
      %p235 = por %p233, %p234
      %p236 = scmp.ne.s32.totalorder %s228, %s230
      %p237 = scmp.eq.s32.totalorder %s26, 1
      %p238 = por %p236, %p237
      %p239 = scmp.ne.s32.totalorder %s230, %s231
      %p240 = scmp.eq.s32.totalorder %s26, 0
      %p241 = por %p239, %p240
      %p242 = scmp.ne.s32.totalorder %s230, %s231
      %p243 = scmp.eq.s32.totalorder %s27, 1
      %p244 = por %p242, %p243
      %p246 = scmp.ne.s32.totalorder %s231, %s245
      %p247 = scmp.eq.s32.totalorder %s27, 0
      %p248 = por %p246, %p247
      %s249 = ssub.s32 %s21, %s28
      %p250 = scmp.eq.s32.totalorder %s249, 0
      %s252 = sadd.s32 %s251, 1
      %s253 = scalar_select %p250, %s251, %s252
      %p256 = pneg %p250
      %p257 = scmp.eq.s32.totalorder %s21, 1
      %p258 = por %p256, %p257
      %p259 = scmp.ne.s32.totalorder %s251, %s254
      %p260 = scmp.eq.s32.totalorder %s21, 0
      %p261 = por %p259, %p260
      %p262 = scmp.ne.s32.totalorder %s251, %s254
      %p263 = scmp.eq.s32.totalorder %s26, 1
      %p264 = por %p262, %p263
      %p265 = scmp.ne.s32.totalorder %s254, %s255
      %p266 = scmp.eq.s32.totalorder %s26, 0
      %p267 = por %p265, %p266
      %p268 = scmp.ne.s32.totalorder %s254, %s255
      %p269 = scmp.eq.s32.totalorder %s27, 1
      %p270 = por %p268, %p269
      %p272 = scmp.ne.s32.totalorder %s255, %s271
      %p273 = scmp.eq.s32.totalorder %s27, 0
      %p274 = por %p272, %p273
      %s275 = ssub.s32 %s21, %s28
      %p276 = scmp.eq.s32.totalorder %s275, 0
      %s278 = sadd.s32 %s277, 1
      %s279 = scalar_select %p276, %s277, %s278
      %p282 = pneg %p276
      %p283 = scmp.eq.s32.totalorder %s21, 1
      %p284 = por %p282, %p283
      %p285 = scmp.ne.s32.totalorder %s277, %s280
      %p286 = scmp.eq.s32.totalorder %s21, 0
      %p287 = por %p285, %p286
      %p288 = scmp.ne.s32.totalorder %s277, %s280
      %p289 = scmp.eq.s32.totalorder %s26, 1
      %p290 = por %p288, %p289
      %p291 = scmp.ne.s32.totalorder %s280, %s281
      %p292 = scmp.eq.s32.totalorder %s26, 0
      %p293 = por %p291, %p292
      %p294 = scmp.ne.s32.totalorder %s280, %s281
      %p295 = scmp.eq.s32.totalorder %s27, 1
      %p296 = por %p294, %p295
      %p298 = scmp.ne.s32.totalorder %s281, %s297
      %p299 = scmp.eq.s32.totalorder %s27, 0
      %p300 = por %p298, %p299
      %p301 = scmp.le.s32.totalorder 1, %s21
      %p302 = scmp.lt.s32.totalorder %s21, 3
      %p303 = pnand %p301, %p302
      %p304 = pneg %p303
      // Predicated region
      $region9: #{nlg_bert_forward.10} parent=5 // pred_check
        _
      $region10: #{nlg_bert_forward.10} parent=5 // pred_check_branch
        %306 = sbr.rel (%p303) target = $region12
      $region11: #{nlg_bert_forward.10} parent=5 // pred_region
        %s307 = ssub.s32 %s21, 1
        // Predicated region
        $region13: #{nlg_bert_forward.10} parent=11 // pred_check
          %p308 = pneg %p94
        $region14: #{nlg_bert_forward.10} parent=11 // pred_check_branch
          %310 = sbr.rel (%p308) target = $region16
        $region15: #{nlg_bert_forward.10} parent=11 // pred_region
          _
        $region16: #{nlg_bert_forward.10} parent=11 // pred_fallthru
          _
        // Predicated region
        $region17: #{nlg_bert_forward.10} parent=11 // pred_check
          %p311 = pneg %p115
        $region18: #{nlg_bert_forward.10} parent=11 // pred_check_branch
          %313 = sbr.rel (%p311) target = $region20
        $region19: #{nlg_bert_forward.10} parent=11 // pred_region
          _
        $region20: #{nlg_bert_forward.10} parent=11 // pred_fallthru
          _
        // Predicated region
        $region21: #{nlg_bert_forward.10} parent=11 // pred_check
          %p314 = pneg %p136
        $region22: #{nlg_bert_forward.10} parent=11 // pred_check_branch
          %316 = sbr.rel (%p314) target = $region24
        $region23: #{nlg_bert_forward.10} parent=11 // pred_region
          _
        $region24: #{nlg_bert_forward.10} parent=11 // pred_fallthru
          _
        // Predicated region
        $region25: #{nlg_bert_forward.10} parent=11 // pred_check
          %p317 = pneg %p157
        $region26: #{nlg_bert_forward.10} parent=11 // pred_check_branch
          %319 = sbr.rel (%p317) target = $region28
        $region27: #{nlg_bert_forward.10} parent=11 // pred_region
          _
        $region28: #{nlg_bert_forward.10} parent=11 // pred_fallthru
          _
        // Predicated region
        $region29: #{nlg_bert_forward.10} parent=11 // pred_check
          %p320 = pneg %p178
        $region30: #{nlg_bert_forward.10} parent=11 // pred_check_branch
          %322 = sbr.rel (%p320) target = $region32
        $region31: #{nlg_bert_forward.10} parent=11 // pred_region
          _
        $region32: #{nlg_bert_forward.10} parent=11 // pred_fallthru
          _
        // Predicated region
        $region33: #{nlg_bert_forward.10} parent=11 // pred_check
          %p323 = pneg %p199
        $region34: #{nlg_bert_forward.10} parent=11 // pred_check_branch
          %325 = sbr.rel (%p323) target = $region36
        $region35: #{nlg_bert_forward.10} parent=11 // pred_region
          _
        $region36: #{nlg_bert_forward.10} parent=11 // pred_fallthru
          _
        // Predicated region
        $region37: #{nlg_bert_forward.10} parent=11 // pred_check
          %p326 = pneg %p220
        $region38: #{nlg_bert_forward.10} parent=11 // pred_check_branch
          %328 = sbr.rel (%p326) target = $region40
        $region39: #{nlg_bert_forward.10} parent=11 // pred_region
          _
        $region40: #{nlg_bert_forward.10} parent=11 // pred_fallthru
          _
        // Predicated region
        $region41: #{nlg_bert_forward.10} parent=11 // pred_check
          %p329 = pneg %p241
        $region42: #{nlg_bert_forward.10} parent=11 // pred_check_branch
          %331 = sbr.rel (%p329) target = $region44
        $region43: #{nlg_bert_forward.10} parent=11 // pred_region
          _
        $region44: #{nlg_bert_forward.10} parent=11 // pred_fallthru
          _
      $region12: #{nlg_bert_forward.10} parent=5 // pred_fallthru
        _
      %p332 = scmp.lt.s32.totalorder %s21, 2
      // Predicated region
      $region45: #{nlg_bert_forward.10} parent=5 // pred_check
        %p333 = pneg %p332
      $region46: #{nlg_bert_forward.10} parent=5 // pred_check_branch
        %335 = sbr.rel (%p333) target = $region48
      $region47: #{nlg_bert_forward.10} parent=5 // pred_region
        // Predicated region
        $region49: #{nlg_bert_forward.10} parent=47 // pred_check
          %p336 = pneg %p41
        $region50: #{nlg_bert_forward.10} parent=47 // pred_check_branch
          %338 = sbr.rel (%p336) target = $region52
        $region51: #{nlg_bert_forward.10} parent=47 // pred_region
          %p339 = scmp.lt.s32.totalorder %s21, 1
          %s340 = scalar_select %p339, %s21, 1
          %s341 = smul.addr %s340, 4
          %s342 = scalar_lea.vmem %s0, %s341
        $region52: #{nlg_bert_forward.10} parent=47 // pred_fallthru
          _
        // Predicated region
        $region53: #{nlg_bert_forward.10} parent=47 // pred_check
          %p343 = pneg %p67
        $region54: #{nlg_bert_forward.10} parent=47 // pred_check_branch
          %345 = sbr.rel (%p343) target = $region56
        $region55: #{nlg_bert_forward.10} parent=47 // pred_region
          %p346 = scmp.lt.s32.totalorder %s21, 1
          %s347 = scalar_select %p346, %s21, 1
          %s348 = smul.addr %s347, 4
          %s349 = scalar_lea.vmem %s1, %s348
        $region56: #{nlg_bert_forward.10} parent=47 // pred_fallthru
          _
      $region48: #{nlg_bert_forward.10} parent=5 // pred_fallthru
        _
      %p350 = scmp.le.s32.totalorder 1, %s21
      %p351 = scmp.lt.s32.totalorder %s21, 3
      %p352 = pnand %p350, %p351
      %p353 = pneg %p352
      // Predicated region
      $region57: #{nlg_bert_forward.10} parent=5 // pred_check
        _
      $region58: #{nlg_bert_forward.10} parent=5 // pred_check_branch
        %355 = sbr.rel (%p352) target = $region60
      $region59: #{nlg_bert_forward.10} parent=5 // pred_region
        %s356 = ssub.s32 %s21, 1
        %p357 = scmp.lt.s32.totalorder %s26, 1
        %s358 = scalar_select %p357, %s26, 1
        %s359 = smul.addr %s358, 4
        %s360 = scalar_lea.vmem %s0, %s359
        %p361 = pneg %p47
        %p362 = pneg %p44
        %p363 = scmp.lt.s32.totalorder %s26, 1
        %s364 = scalar_select %p363, %s26, 1
        %s365 = smul.addr %s364, 4
        %s366 = scalar_lea.vmem %s1, %s365
        %p367 = pneg %p73
        %p368 = pneg %p70
        %p369 = pneg %p94
        %p370 = pneg %p91
        %p371 = pneg %p115
        %p372 = pneg %p112
        %p373 = pneg %p136
        %p374 = pneg %p133
        %p375 = pneg %p157
        %p376 = pneg %p154
        %p377 = pneg %p178
        %p378 = pneg %p175
        %p379 = pneg %p199
        %p380 = pneg %p196
        %p381 = pneg %p220
        %p382 = pneg %p217
        %p383 = pneg %p241
        %p384 = pneg %p238
        %p385 = pneg %p267
        %p386 = pneg %p264
        %p387 = scmp.lt.s32.totalorder %s26, 1
        %s388 = scalar_select %p387, %s26, 1
        %s389 = smul.addr %s388, 4
        %s390 = scalar_lea.vmem %s10, %s389
        %p391 = pneg %p293
        %p392 = pneg %p290
        %s393 = sand.u32 %s280, 1
        %s394 = scalar_lea.sflag [#allocation4], %s393
        %s395 = sand.u32 %s280, 1
        %s396 = smul.addr %s395, 32
        %s397 = scalar_lea.vmem [#allocation3], %s396
        %p398 = scmp.lt.s32.totalorder %s26, 1
        %s399 = scalar_select %p398, %s26, 1
        %s400 = smul.addr %s399, 4
        %s401 = scalar_lea.vmem %s0, %s400
        %p402 = scmp.lt.s32.totalorder %s26, 1
        %s403 = scalar_select %p402, %s26, 1
        %s404 = smul.addr %s403, 4
        %s405 = scalar_lea.vmem %s1, %s404
        %p406 = scmp.lt.s32.totalorder %s26, 1
        %s407 = scalar_select %p406, %s26, 1
        %s408 = smul.addr %s407, 4
        %s409 = scalar_lea.vmem %s10, %s408
        %v411 = vld [vmem:[%s401] sm:$0xf]
        %v412 = vld [vmem:[%s405] sm:$0xf]
        %v413 = vld [vmem:[%s2] sm:$0xf]
        %v414 = vld [vmem:[%s2 + $0x4] sm:$0xf]
        %v415 = vld [vmem:[%s2 + $0x8] sm:$0xf]
        %v416 = vld [vmem:[%s2 + $0xc] sm:$0xf]
        %v417 = vld [vmem:[%s3] sm:$0x1]
        %v419 = vlaneseq
        %v420 = vshrl.u32 %v419, 7
        %v421 = vsub.s32 0, %v420
        %v422 = vrot.slane %v417, %v421
        %v428 = vunpack.c.l.b16 %v413
        %v429 = vunpack.c.l.b16 %v414
        %v430 = vunpack.c.l.b16 %v415
        %v431 = vunpack.c.l.b16 %v416
        %v432 = vpack.c.b16 %v429, %v428
        %v433 = vpack.c.b16 %v431, %v430
        %vm436 = vcmask 261120
        %v438 = vsel %vm436, %v411, 0
        %440 = vmatprep.subr.bf16.mxu0 0
        %441 = vmatpush1.bf16.msra.mxu0 0
        %442 = vmatprep.subr.bf16.mxu0 0
        %443 = vmatpush1.bf16.msra.mxu0 0
        %444 = vmatprep.subr.bf16.mxu0 0
        %445 = vmatpush1.bf16.msra.mxu0 0
        %446 = vmatprep.subr.bf16.mxu0 0
        %447 = vmatpush1.bf16.msra.mxu0 0
        %448 = vmatprep.subr.bf16.mxu0 0
        %449 = vmatpush1.bf16.msra.mxu0 0
        %450 = vmatprep.subr.bf16.mxu0 0
        %451 = vmatpush1.bf16.msra.mxu0 0
        %452 = vmatprep.subr.bf16.mxu0 0
        %453 = vmatpush1.bf16.msra.mxu0 %v433
        %454 = vmatprep.subr.bf16.mxu0 0
        %455 = vmatpush1.bf16.msra.mxu0 %v432
        %456 = vmatprep.subr.bf16.mxu0 0
        %457 = vmatpush2.bf16.msra.mxu0 0
        %458 = vmatprep.subr.bf16.mxu0 0
        %459 = vmatpush2.bf16.msra.mxu0 0
        %460 = vmatprep.subr.bf16.mxu0 0
        %461 = vmatpush2.bf16.msra.mxu0 0
        %462 = vmatprep.subr.bf16.mxu0 0
        %463 = vmatpush2.bf16.msra.mxu0 0
        %464 = vmatprep.subr.bf16.mxu0 0
        %465 = vmatpush2.bf16.msra.mxu0 0
        %466 = vmatprep.subr.bf16.mxu0 0
        %467 = vmatpush2.bf16.msra.mxu0 0
        %468 = vmatprep.subr.bf16.mxu0 0
        %469 = vmatpush2.bf16.msra.mxu0 0
        %470 = vmatprep.subr.bf16.mxu0 0
        %471 = vmatpush2.bf16.msra.mxu0 0
        %472 = vmatprep.mubr.bf16.mxu0 0
        %473 = vmatmul.mubr.bf16.gmra.mxu0 %v438
        %v474 = vpop.f32.mrf.mxu0
        %v475 = vadd.f32 %v422, %v474
        %v476 = vpop.f32.mrf.mxu0
        %v477 = vpop.f32.mrf.mxu0
        %v478 = vpop.f32.mrf.mxu0
        %479 = vdwg.mxu0
        %v480 = vmul.f32 %v475, 0.35355338
        %v481 = vld [vmem:[%s4] sm:$0xf]
        %v482 = vld [vmem:[%s4 + $0x4] sm:$0xf]
        %v483 = vld [vmem:[%s4 + $0x8] sm:$0xf]
        %v484 = vld [vmem:[%s4 + $0xc] sm:$0xf]
        %v485 = vld [vmem:[%s5] sm:$0x1]
        %v487 = vlaneseq
        %v488 = vshrl.u32 %v487, 7
        %v489 = vsub.s32 0, %v488
        %v490 = vrot.slane %v485, %v489
        %v496 = vunpack.c.l.b16 %v481
        %v497 = vunpack.c.l.b16 %v482
        %v498 = vunpack.c.l.b16 %v483
        %v499 = vunpack.c.l.b16 %v484
        %v500 = vpack.c.b16 %v497, %v496
        %v501 = vpack.c.b16 %v499, %v498
        %v505 = vsel %vm436, %v412, 0
        %507 = vmatprep.subr.bf16.mxu0 0
        %508 = vmatpush1.bf16.msra.mxu0 0
        %509 = vmatprep.subr.bf16.mxu0 0
        %510 = vmatpush1.bf16.msra.mxu0 0
        %511 = vmatprep.subr.bf16.mxu0 0
        %512 = vmatpush1.bf16.msra.mxu0 0
        %513 = vmatprep.subr.bf16.mxu0 0
        %514 = vmatpush1.bf16.msra.mxu0 0
        %515 = vmatprep.subr.bf16.mxu0 0
        %516 = vmatpush1.bf16.msra.mxu0 0
        %517 = vmatprep.subr.bf16.mxu0 0
        %518 = vmatpush1.bf16.msra.mxu0 0
        %519 = vmatprep.subr.bf16.mxu0 0
        %520 = vmatpush1.bf16.msra.mxu0 %v501
        %521 = vmatprep.subr.bf16.mxu0 0
        %522 = vmatpush1.bf16.msra.mxu0 %v500
        %523 = vmatprep.subr.bf16.mxu0 0
        %524 = vmatpush2.bf16.msra.mxu0 0
        %525 = vmatprep.subr.bf16.mxu0 0
        %526 = vmatpush2.bf16.msra.mxu0 0
        %527 = vmatprep.subr.bf16.mxu0 0
        %528 = vmatpush2.bf16.msra.mxu0 0
        %529 = vmatprep.subr.bf16.mxu0 0
        %530 = vmatpush2.bf16.msra.mxu0 0
        %531 = vmatprep.subr.bf16.mxu0 0
        %532 = vmatpush2.bf16.msra.mxu0 0
        %533 = vmatprep.subr.bf16.mxu0 0
        %534 = vmatpush2.bf16.msra.mxu0 0
        %535 = vmatprep.subr.bf16.mxu0 0
        %536 = vmatpush2.bf16.msra.mxu0 0
        %537 = vmatprep.subr.bf16.mxu0 0
        %538 = vmatpush2.bf16.msra.mxu0 0
        %539 = vmatprep.mubr.bf16.mxu0 0
        %540 = vmatmul.mubr.bf16.gmra.mxu0 %v505
        %v541 = vpop.f32.mrf.mxu0
        %v542 = vadd.f32 %v490, %v541
        %v543 = vpop.f32.mrf.mxu0
        %v544 = vpop.f32.mrf.mxu0
        %v545 = vpop.f32.mrf.mxu0
        %546 = vdwg.mxu0
        %v547 = vpack.c.bf16 %v480, %v480
        %v548 = vpack.c.bf16 %v542, %v542
        %vm549 = vcmask 64512
        %v551 = vsel %vm549, %v547, 0
        %v554 = vsel %vm549, %v548, 0
        %556 = vmatprep.subr.bf16.mxu0 0
        %557 = vmatpush1.bf16.xpose.msra.mxu0 0
        %558 = vmatprep.subr.bf16.mxu0 0
        %559 = vmatpush1.bf16.xpose.msra.mxu0 0
        %560 = vmatprep.subr.bf16.mxu0 0
        %561 = vmatpush1.bf16.xpose.msra.mxu0 0
        %562 = vmatprep.subr.bf16.mxu0 0
        %563 = vmatpush1.bf16.xpose.msra.mxu0 0
        %564 = vmatprep.subr.bf16.mxu0 0
        %565 = vmatpush1.bf16.xpose.msra.mxu0 0
        %566 = vmatprep.subr.bf16.mxu0 0
        %567 = vmatpush1.bf16.xpose.msra.mxu0 0
        %568 = vmatprep.subr.bf16.mxu0 0
        %569 = vmatpush1.bf16.xpose.msra.mxu0 0
        %570 = vmatprep.subr.bf16.mxu0 0
        %571 = vmatpush1.bf16.xpose.msra.mxu0 %v554
        %572 = vmatprep.subr.bf16.mxu0 0
        %573 = vmatpush2.bf16.xpose.msra.mxu0 0
        %574 = vmatprep.subr.bf16.mxu0 0
        %575 = vmatpush2.bf16.xpose.msra.mxu0 0
        %576 = vmatprep.subr.bf16.mxu0 0
        %577 = vmatpush2.bf16.xpose.msra.mxu0 0
        %578 = vmatprep.subr.bf16.mxu0 0
        %579 = vmatpush2.bf16.xpose.msra.mxu0 0
        %580 = vmatprep.subr.bf16.mxu0 0
        %581 = vmatpush2.bf16.xpose.msra.mxu0 0
        %582 = vmatprep.subr.bf16.mxu0 0
        %583 = vmatpush2.bf16.xpose.msra.mxu0 0
        %584 = vmatprep.subr.bf16.mxu0 0
        %585 = vmatpush2.bf16.xpose.msra.mxu0 0
        %586 = vmatprep.subr.bf16.mxu0 0
        %587 = vmatpush2.bf16.xpose.msra.mxu0 0
        %588 = vmatprep.mubr.bf16.mxu0 0
        %589 = vmatmul.mubr.bf16.gmra.mxu0 %v551
        %v590 = vpop.f32.mrf.mxu0
        %v591 = vadd.f32 0.0, %v590
        %v592 = vpop.f32.mrf.mxu0
        %v593 = vpop.f32.mrf.mxu0
        %v594 = vpop.f32.mrf.mxu0
        %595 = vdwg.mxu0
        %v596 = vsel %vm549, %v591, -inf
        %597 = vmax.xlane.f32.xlu0 %v596
        %v598 = vpop.xlane.xlu0 %597
        %v599 = vsub.f32 %v591, %v598
        %v600 = vmul.f32 %v599, 1.442695
        %v601 = vpow.pop %v600
        %v602 = vsel %vm549, %v601, 0.0
        %603 = vadd.xlane.f32.xlu0 %v602
        %v604 = vpop.xlane.xlu0 %603
        %v605 = vrcp.pop %v604
        %v606 = vmul.f32 %v601, %v605
        %607 = vst.msk [vmem:[%s397] sm:$0xff] %vm549, %v606
        %v608 = vpack.c.bf16 %v606, %v606
        %610 = vrot.lane.b32.xlu0 %v548, 96
        %v611 = vpop.permute.xlu0 %610
        %v613 = vsel %vm549, %v608, 0
        %vm615 = vcmask 1043456
        %v617 = vsel %vm615, %v611, 0
        %619 = vmatprep.subr.bf16.mxu0 0
        %620 = vmatpush1.bf16.msra.mxu0 0
        %621 = vmatprep.subr.bf16.mxu0 0
        %622 = vmatpush1.bf16.msra.mxu0 0
        %623 = vmatprep.subr.bf16.mxu0 0
        %624 = vmatpush1.bf16.msra.mxu0 0
        %625 = vmatprep.subr.bf16.mxu0 0
        %626 = vmatpush1.bf16.msra.mxu0 0
        %627 = vmatprep.subr.bf16.mxu0 0
        %628 = vmatpush1.bf16.msra.mxu0 0
        %629 = vmatprep.subr.bf16.mxu0 0
        %630 = vmatpush1.bf16.msra.mxu0 0
        %631 = vmatprep.subr.bf16.mxu0 0
        %632 = vmatpush1.bf16.msra.mxu0 0
        %633 = vmatprep.subr.bf16.mxu0 0
        %634 = vmatpush1.bf16.msra.mxu0 %v617
        %635 = vmatprep.subr.bf16.mxu0 0
        %636 = vmatpush2.bf16.msra.mxu0 0
        %637 = vmatprep.subr.bf16.mxu0 0
        %638 = vmatpush2.bf16.msra.mxu0 0
        %639 = vmatprep.subr.bf16.mxu0 0
        %640 = vmatpush2.bf16.msra.mxu0 0
        %641 = vmatprep.subr.bf16.mxu0 0
        %642 = vmatpush2.bf16.msra.mxu0 0
        %643 = vmatprep.subr.bf16.mxu0 0
        %644 = vmatpush2.bf16.msra.mxu0 0
        %645 = vmatprep.subr.bf16.mxu0 0
        %646 = vmatpush2.bf16.msra.mxu0 0
        %647 = vmatprep.subr.bf16.mxu0 0
        %648 = vmatpush2.bf16.msra.mxu0 0
        %649 = vmatprep.subr.bf16.mxu0 0
        %650 = vmatpush2.bf16.msra.mxu0 0
        %651 = vmatprep.mubr.bf16.mxu0 0
        %652 = vmatmul.mubr.bf16.gmra.mxu0 %v613
        %v653 = vpop.f32.mrf.mxu0
        %v654 = vadd.f32 0.0, %v653
        %v655 = vpop.f32.mrf.mxu0
        %v656 = vpop.f32.mrf.mxu0
        %v657 = vpop.f32.mrf.mxu0
        %658 = vdwg.mxu0
        %v659 = vpack.c.bf16 %v654, %v654
        %vm660 = vcmask 60416
        %661 = vst.msk [vmem:[#allocation2] sm:$0xf] %vm660, %v659
        %663 = vrot.lane.b32.xlu0 %v547, 120
        %v664 = vpop.permute.xlu0 %663
        %665 = vrot.lane.b32.xlu0 %v548, 120
        %v666 = vpop.permute.xlu0 %665
        %v668 = vsel %vm549, %v664, 0
        %v671 = vsel %vm549, %v666, 0
        %673 = vmatprep.subr.bf16.mxu0 0
        %674 = vmatpush1.bf16.xpose.msra.mxu0 0
        %675 = vmatprep.subr.bf16.mxu0 0
        %676 = vmatpush1.bf16.xpose.msra.mxu0 0
        %677 = vmatprep.subr.bf16.mxu0 0
        %678 = vmatpush1.bf16.xpose.msra.mxu0 0
        %679 = vmatprep.subr.bf16.mxu0 0
        %680 = vmatpush1.bf16.xpose.msra.mxu0 0
        %681 = vmatprep.subr.bf16.mxu0 0
        %682 = vmatpush1.bf16.xpose.msra.mxu0 0
        %683 = vmatprep.subr.bf16.mxu0 0
        %684 = vmatpush1.bf16.xpose.msra.mxu0 0
        %685 = vmatprep.subr.bf16.mxu0 0
        %686 = vmatpush1.bf16.xpose.msra.mxu0 0
        %687 = vmatprep.subr.bf16.mxu0 0
        %688 = vmatpush1.bf16.xpose.msra.mxu0 %v671
        %689 = vmatprep.subr.bf16.mxu0 0
        %690 = vmatpush2.bf16.xpose.msra.mxu0 0
        %691 = vmatprep.subr.bf16.mxu0 0
        %692 = vmatpush2.bf16.xpose.msra.mxu0 0
        %693 = vmatprep.subr.bf16.mxu0 0
        %694 = vmatpush2.bf16.xpose.msra.mxu0 0
        %695 = vmatprep.subr.bf16.mxu0 0
        %696 = vmatpush2.bf16.xpose.msra.mxu0 0
        %697 = vmatprep.subr.bf16.mxu0 0
        %698 = vmatpush2.bf16.xpose.msra.mxu0 0
        %699 = vmatprep.subr.bf16.mxu0 0
        %700 = vmatpush2.bf16.xpose.msra.mxu0 0
        %701 = vmatprep.subr.bf16.mxu0 0
        %702 = vmatpush2.bf16.xpose.msra.mxu0 0
        %703 = vmatprep.subr.bf16.mxu0 0
        %704 = vmatpush2.bf16.xpose.msra.mxu0 0
        %705 = vmatprep.mubr.bf16.mxu0 0
        %706 = vmatmul.mubr.bf16.gmra.mxu0 %v668
        %v707 = vpop.f32.mrf.mxu0
        %v708 = vadd.f32 0.0, %v707
        %v709 = vpop.f32.mrf.mxu0
        %v710 = vpop.f32.mrf.mxu0
        %v711 = vpop.f32.mrf.mxu0
        %712 = vdwg.mxu0
        %v713 = vsel %vm549, %v708, -inf
        %714 = vmax.xlane.f32.xlu0 %v713
        %v715 = vpop.xlane.xlu0 %714
        %v716 = vsub.f32 %v708, %v715
        %v717 = vmul.f32 %v716, 1.442695
        %v718 = vpow.pop %v717
        %v719 = vsel %vm549, %v718, 0.0
        %720 = vadd.xlane.f32.xlu0 %v719
        %v721 = vpop.xlane.xlu0 %720
        %v722 = vrcp.pop %v721
        %v723 = vmul.f32 %v718, %v722
        %s724 = scalar_lea.vmem %s397, 8 [#allocation3]
        %725 = vst.msk [vmem:[%s724] sm:$0xff] %vm549, %v723
        %v726 = vpack.c.bf16 %v723, %v723
        %727 = vrot.lane.b32.xlu0 %v548, 88
        %v728 = vpop.permute.xlu0 %727
        %v730 = vsel %vm549, %v726, 0
        %v733 = vsel %vm615, %v728, 0
        %735 = vmatprep.subr.bf16.mxu0 0
        %736 = vmatpush1.bf16.msra.mxu0 0
        %737 = vmatprep.subr.bf16.mxu0 0
        %738 = vmatpush1.bf16.msra.mxu0 0
        %739 = vmatprep.subr.bf16.mxu0 0
        %740 = vmatpush1.bf16.msra.mxu0 0
        %741 = vmatprep.subr.bf16.mxu0 0
        %742 = vmatpush1.bf16.msra.mxu0 0
        %743 = vmatprep.subr.bf16.mxu0 0
        %744 = vmatpush1.bf16.msra.mxu0 0
        %745 = vmatprep.subr.bf16.mxu0 0
        %746 = vmatpush1.bf16.msra.mxu0 0
        %747 = vmatprep.subr.bf16.mxu0 0
        %748 = vmatpush1.bf16.msra.mxu0 0
        %749 = vmatprep.subr.bf16.mxu0 0
        %750 = vmatpush1.bf16.msra.mxu0 %v733
        %751 = vmatprep.subr.bf16.mxu0 0
        %752 = vmatpush2.bf16.msra.mxu0 0
        %753 = vmatprep.subr.bf16.mxu0 0
        %754 = vmatpush2.bf16.msra.mxu0 0
        %755 = vmatprep.subr.bf16.mxu0 0
        %756 = vmatpush2.bf16.msra.mxu0 0
        %757 = vmatprep.subr.bf16.mxu0 0
        %758 = vmatpush2.bf16.msra.mxu0 0
        %759 = vmatprep.subr.bf16.mxu0 0
        %760 = vmatpush2.bf16.msra.mxu0 0
        %761 = vmatprep.subr.bf16.mxu0 0
        %762 = vmatpush2.bf16.msra.mxu0 0
        %763 = vmatprep.subr.bf16.mxu0 0
        %764 = vmatpush2.bf16.msra.mxu0 0
        %765 = vmatprep.subr.bf16.mxu0 0
        %766 = vmatpush2.bf16.msra.mxu0 0
        %767 = vmatprep.mubr.bf16.mxu0 0
        %768 = vmatmul.mubr.bf16.gmra.mxu0 %v730
        %v769 = vpop.f32.mrf.mxu0
        %v770 = vadd.f32 0.0, %v769
        %v771 = vpop.f32.mrf.mxu0
        %v772 = vpop.f32.mrf.mxu0
        %v773 = vpop.f32.mrf.mxu0
        %774 = vdwg.mxu0
        %v775 = vpack.c.bf16 %v770, %v770
        %v777 = vunpack.c.l.b16 %v775
        %v778 = vpack.c.b16 %v777, %v777
        %779 = vrot.lane.b32.xlu0 %v778, 8
        %v780 = vpop.permute.xlu0 %779
        %vm782 = vcmask 126016
        %783 = vst.msk [vmem:[#allocation2] sm:$0xf] %vm782, %v780
        %784 = vrot.lane.b32.xlu0 %v547, 112
        %v785 = vpop.permute.xlu0 %784
        %786 = vrot.lane.b32.xlu0 %v548, 112
        %v787 = vpop.permute.xlu0 %786
        %v789 = vsel %vm549, %v785, 0
        %v792 = vsel %vm549, %v787, 0
        %794 = vmatprep.subr.bf16.mxu0 0
        %795 = vmatpush1.bf16.xpose.msra.mxu0 0
        %796 = vmatprep.subr.bf16.mxu0 0
        %797 = vmatpush1.bf16.xpose.msra.mxu0 0
        %798 = vmatprep.subr.bf16.mxu0 0
        %799 = vmatpush1.bf16.xpose.msra.mxu0 0
        %800 = vmatprep.subr.bf16.mxu0 0
        %801 = vmatpush1.bf16.xpose.msra.mxu0 0
        %802 = vmatprep.subr.bf16.mxu0 0
        %803 = vmatpush1.bf16.xpose.msra.mxu0 0
        %804 = vmatprep.subr.bf16.mxu0 0
        %805 = vmatpush1.bf16.xpose.msra.mxu0 0
        %806 = vmatprep.subr.bf16.mxu0 0
        %807 = vmatpush1.bf16.xpose.msra.mxu0 0
        %808 = vmatprep.subr.bf16.mxu0 0
        %809 = vmatpush1.bf16.xpose.msra.mxu0 %v792
        %810 = vmatprep.subr.bf16.mxu0 0
        %811 = vmatpush2.bf16.xpose.msra.mxu0 0
        %812 = vmatprep.subr.bf16.mxu0 0
        %813 = vmatpush2.bf16.xpose.msra.mxu0 0
        %814 = vmatprep.subr.bf16.mxu0 0
        %815 = vmatpush2.bf16.xpose.msra.mxu0 0
        %816 = vmatprep.subr.bf16.mxu0 0
        %817 = vmatpush2.bf16.xpose.msra.mxu0 0
        %818 = vmatprep.subr.bf16.mxu0 0
        %819 = vmatpush2.bf16.xpose.msra.mxu0 0
        %820 = vmatprep.subr.bf16.mxu0 0
        %821 = vmatpush2.bf16.xpose.msra.mxu0 0
        %822 = vmatprep.subr.bf16.mxu0 0
        %823 = vmatpush2.bf16.xpose.msra.mxu0 0
        %824 = vmatprep.subr.bf16.mxu0 0
        %825 = vmatpush2.bf16.xpose.msra.mxu0 0
        %826 = vmatprep.mubr.bf16.mxu0 0
        %827 = vmatmul.mubr.bf16.gmra.mxu0 %v789
        %v828 = vpop.f32.mrf.mxu0
        %v829 = vadd.f32 0.0, %v828
        %v830 = vpop.f32.mrf.mxu0
        %v831 = vpop.f32.mrf.mxu0
        %v832 = vpop.f32.mrf.mxu0
        %833 = vdwg.mxu0
        %v834 = vsel %vm549, %v829, -inf
        %835 = vmax.xlane.f32.xlu0 %v834
        %v836 = vpop.xlane.xlu0 %835
        %v837 = vsub.f32 %v829, %v836
        %v838 = vmul.f32 %v837, 1.442695
        %v839 = vpow.pop %v838
        %v840 = vsel %vm549, %v839, 0.0
        %841 = vadd.xlane.f32.xlu0 %v840
        %v842 = vpop.xlane.xlu0 %841
        %v843 = vrcp.pop %v842
        %v844 = vmul.f32 %v839, %v843
        %s845 = scalar_lea.vmem %s397, 16 [#allocation3]
        %846 = vst.msk [vmem:[%s845] sm:$0xff] %vm549, %v844
        %v847 = vpack.c.bf16 %v844, %v844
        %848 = vrot.lane.b32.xlu0 %v548, 80
        %v849 = vpop.permute.xlu0 %848
        %v851 = vsel %vm549, %v847, 0
        %v854 = vsel %vm615, %v849, 0
        %856 = vmatprep.subr.bf16.mxu0 0
        %857 = vmatpush1.bf16.msra.mxu0 0
        %858 = vmatprep.subr.bf16.mxu0 0
        %859 = vmatpush1.bf16.msra.mxu0 0
        %860 = vmatprep.subr.bf16.mxu0 0
        %861 = vmatpush1.bf16.msra.mxu0 0
        %862 = vmatprep.subr.bf16.mxu0 0
        %863 = vmatpush1.bf16.msra.mxu0 0
        %864 = vmatprep.subr.bf16.mxu0 0
        %865 = vmatpush1.bf16.msra.mxu0 0
        %866 = vmatprep.subr.bf16.mxu0 0
        %867 = vmatpush1.bf16.msra.mxu0 0
        %868 = vmatprep.subr.bf16.mxu0 0
        %869 = vmatpush1.bf16.msra.mxu0 0
        %870 = vmatprep.subr.bf16.mxu0 0
        %871 = vmatpush1.bf16.msra.mxu0 %v854
        %872 = vmatprep.subr.bf16.mxu0 0
        %873 = vmatpush2.bf16.msra.mxu0 0
        %874 = vmatprep.subr.bf16.mxu0 0
        %875 = vmatpush2.bf16.msra.mxu0 0
        %876 = vmatprep.subr.bf16.mxu0 0
        %877 = vmatpush2.bf16.msra.mxu0 0
        %878 = vmatprep.subr.bf16.mxu0 0
        %879 = vmatpush2.bf16.msra.mxu0 0
        %880 = vmatprep.subr.bf16.mxu0 0
        %881 = vmatpush2.bf16.msra.mxu0 0
        %882 = vmatprep.subr.bf16.mxu0 0
        %883 = vmatpush2.bf16.msra.mxu0 0
        %884 = vmatprep.subr.bf16.mxu0 0
        %885 = vmatpush2.bf16.msra.mxu0 0
        %886 = vmatprep.subr.bf16.mxu0 0
        %887 = vmatpush2.bf16.msra.mxu0 0
        %888 = vmatprep.mubr.bf16.mxu0 0
        %889 = vmatmul.mubr.bf16.gmra.mxu0 %v851
        %v890 = vpop.f32.mrf.mxu0
        %v891 = vadd.f32 0.0, %v890
        %v892 = vpop.f32.mrf.mxu0
        %v893 = vpop.f32.mrf.mxu0
        %v894 = vpop.f32.mrf.mxu0
        %895 = vdwg.mxu0
        %v896 = vpack.c.bf16 %v891, %v891
        %v898 = vunpack.c.l.b16 %v896
        %v899 = vpack.c.b16 %v898, %v898
        %900 = vrot.lane.b32.xlu0 %v899, 16
        %v901 = vpop.permute.xlu0 %900
        %vm903 = vcmask 191616
        %904 = vst.msk [vmem:[#allocation2] sm:$0xf] %vm903, %v901
        %905 = vrot.lane.b32.xlu0 %v547, 104
        %v906 = vpop.permute.xlu0 %905
        %907 = vrot.lane.b32.xlu0 %v548, 104
        %v908 = vpop.permute.xlu0 %907
        %v910 = vsel %vm549, %v906, 0
        %v913 = vsel %vm549, %v908, 0
        %915 = vmatprep.subr.bf16.mxu0 0
        %916 = vmatpush1.bf16.xpose.msra.mxu0 0
        %917 = vmatprep.subr.bf16.mxu0 0
        %918 = vmatpush1.bf16.xpose.msra.mxu0 0
        %919 = vmatprep.subr.bf16.mxu0 0
        %920 = vmatpush1.bf16.xpose.msra.mxu0 0
        %921 = vmatprep.subr.bf16.mxu0 0
        %922 = vmatpush1.bf16.xpose.msra.mxu0 0
        %923 = vmatprep.subr.bf16.mxu0 0
        %924 = vmatpush1.bf16.xpose.msra.mxu0 0
        %925 = vmatprep.subr.bf16.mxu0 0
        %926 = vmatpush1.bf16.xpose.msra.mxu0 0
        %927 = vmatprep.subr.bf16.mxu0 0
        %928 = vmatpush1.bf16.xpose.msra.mxu0 0
        %929 = vmatprep.subr.bf16.mxu0 0
        %930 = vmatpush1.bf16.xpose.msra.mxu0 %v913
        %931 = vmatprep.subr.bf16.mxu0 0
        %932 = vmatpush2.bf16.xpose.msra.mxu0 0
        %933 = vmatprep.subr.bf16.mxu0 0
        %934 = vmatpush2.bf16.xpose.msra.mxu0 0
        %935 = vmatprep.subr.bf16.mxu0 0
        %936 = vmatpush2.bf16.xpose.msra.mxu0 0
        %937 = vmatprep.subr.bf16.mxu0 0
        %938 = vmatpush2.bf16.xpose.msra.mxu0 0
        %939 = vmatprep.subr.bf16.mxu0 0
        %940 = vmatpush2.bf16.xpose.msra.mxu0 0
        %941 = vmatprep.subr.bf16.mxu0 0
        %942 = vmatpush2.bf16.xpose.msra.mxu0 0
        %943 = vmatprep.subr.bf16.mxu0 0
        %944 = vmatpush2.bf16.xpose.msra.mxu0 0
        %945 = vmatprep.subr.bf16.mxu0 0
        %946 = vmatpush2.bf16.xpose.msra.mxu0 0
        %947 = vmatprep.mubr.bf16.mxu0 0
        %948 = vmatmul.mubr.bf16.gmra.mxu0 %v910
        %v949 = vpop.f32.mrf.mxu0
        %v950 = vadd.f32 0.0, %v949
        %v951 = vpop.f32.mrf.mxu0
        %v952 = vpop.f32.mrf.mxu0
        %v953 = vpop.f32.mrf.mxu0
        %954 = vdwg.mxu0
        %v955 = vsel %vm549, %v950, -inf
        %956 = vmax.xlane.f32.xlu0 %v955
        %v957 = vpop.xlane.xlu0 %956
        %v958 = vsub.f32 %v950, %v957
        %v959 = vmul.f32 %v958, 1.442695
        %v960 = vpow.pop %v959
        %v961 = vsel %vm549, %v960, 0.0
        %962 = vadd.xlane.f32.xlu0 %v961
        %v963 = vpop.xlane.xlu0 %962
        %v964 = vrcp.pop %v963
        %v965 = vmul.f32 %v960, %v964
        %s966 = scalar_lea.vmem %s397, 24 [#allocation3]
        %967 = vst.msk [vmem:[%s966] sm:$0xff] %vm549, %v965
        %v968 = vpack.c.bf16 %v965, %v965
        %969 = vrot.lane.b32.xlu0 %v548, 72
        %v970 = vpop.permute.xlu0 %969
        %v972 = vsel %vm549, %v968, 0
        %v975 = vsel %vm615, %v970, 0
        %977 = vmatprep.subr.bf16.mxu0 0
        %978 = vmatpush1.bf16.msra.mxu0 0
        %979 = vmatprep.subr.bf16.mxu0 0
        %980 = vmatpush1.bf16.msra.mxu0 0
        %981 = vmatprep.subr.bf16.mxu0 0
        %982 = vmatpush1.bf16.msra.mxu0 0
        %983 = vmatprep.subr.bf16.mxu0 0
        %984 = vmatpush1.bf16.msra.mxu0 0
        %985 = vmatprep.subr.bf16.mxu0 0
        %986 = vmatpush1.bf16.msra.mxu0 0
        %987 = vmatprep.subr.bf16.mxu0 0
        %988 = vmatpush1.bf16.msra.mxu0 0
        %989 = vmatprep.subr.bf16.mxu0 0
        %990 = vmatpush1.bf16.msra.mxu0 0
        %991 = vmatprep.subr.bf16.mxu0 0
        %992 = vmatpush1.bf16.msra.mxu0 %v975
        %993 = vmatprep.subr.bf16.mxu0 0
        %994 = vmatpush2.bf16.msra.mxu0 0
        %995 = vmatprep.subr.bf16.mxu0 0
        %996 = vmatpush2.bf16.msra.mxu0 0
        %997 = vmatprep.subr.bf16.mxu0 0
        %998 = vmatpush2.bf16.msra.mxu0 0
        %999 = vmatprep.subr.bf16.mxu0 0
        %1000 = vmatpush2.bf16.msra.mxu0 0
        %1001 = vmatprep.subr.bf16.mxu0 0
        %1002 = vmatpush2.bf16.msra.mxu0 0
        %1003 = vmatprep.subr.bf16.mxu0 0
        %1004 = vmatpush2.bf16.msra.mxu0 0
        %1005 = vmatprep.subr.bf16.mxu0 0
        %1006 = vmatpush2.bf16.msra.mxu0 0
        %1007 = vmatprep.subr.bf16.mxu0 0
        %1008 = vmatpush2.bf16.msra.mxu0 0
        %1009 = vmatprep.mubr.bf16.mxu0 0
        %1010 = vmatmul.mubr.bf16.gmra.mxu0 %v972
        %v1011 = vpop.f32.mrf.mxu0
        %v1012 = vadd.f32 0.0, %v1011
        %v1013 = vpop.f32.mrf.mxu0
        %v1014 = vpop.f32.mrf.mxu0
        %v1015 = vpop.f32.mrf.mxu0
        %1016 = vdwg.mxu0
        %v1017 = vpack.c.bf16 %v1012, %v1012
        %v1019 = vunpack.c.l.b16 %v1017
        %v1020 = vpack.c.b16 %v1019, %v1019
        %1021 = vrot.lane.b32.xlu0 %v1020, 24
        %v1022 = vpop.permute.xlu0 %1021
        %vm1024 = vcmask 257216
        %1025 = vst.msk [vmem:[#allocation2] sm:$0xf] %vm1024, %v1022
        %v1026 = vld [vmem:[#allocation2] sm:$0xf]
        %v1027 = vld [vmem:[%s6] sm:$0xf]
        %v1028 = vld [vmem:[%s6 + $0x4] sm:$0xf]
        %v1029 = vld [vmem:[%s6 + $0x8] sm:$0xf]
        %v1030 = vld [vmem:[%s6 + $0xc] sm:$0xf]
        %v1031 = vld [vmem:[%s7] sm:$0x1]
        %v1033 = vlaneseq
        %v1034 = vshrl.u32 %v1033, 7
        %v1035 = vsub.s32 0, %v1034
        %v1036 = vrot.slane %v1031, %v1035
        %v1042 = vunpack.c.l.b16 %v1027
        %v1043 = vunpack.c.l.b16 %v1028
        %v1044 = vunpack.c.l.b16 %v1029
        %v1045 = vunpack.c.l.b16 %v1030
        %v1046 = vpack.c.b16 %v1043, %v1042
        %v1047 = vpack.c.b16 %v1045, %v1044
        %v1051 = vsel %vm436, %v1026, 0
        %1053 = vmatprep.subr.bf16.mxu0 0
        %1054 = vmatpush1.bf16.msra.mxu0 0
        %1055 = vmatprep.subr.bf16.mxu0 0
        %1056 = vmatpush1.bf16.msra.mxu0 0
        %1057 = vmatprep.subr.bf16.mxu0 0
        %1058 = vmatpush1.bf16.msra.mxu0 0
        %1059 = vmatprep.subr.bf16.mxu0 0
        %1060 = vmatpush1.bf16.msra.mxu0 0
        %1061 = vmatprep.subr.bf16.mxu0 0
        %1062 = vmatpush1.bf16.msra.mxu0 0
        %1063 = vmatprep.subr.bf16.mxu0 0
        %1064 = vmatpush1.bf16.msra.mxu0 0
        %1065 = vmatprep.subr.bf16.mxu0 0
        %1066 = vmatpush1.bf16.msra.mxu0 %v1047
        %1067 = vmatprep.subr.bf16.mxu0 0
        %1068 = vmatpush1.bf16.msra.mxu0 %v1046
        %1069 = vmatprep.subr.bf16.mxu0 0
        %1070 = vmatpush2.bf16.msra.mxu0 0
        %1071 = vmatprep.subr.bf16.mxu0 0
        %1072 = vmatpush2.bf16.msra.mxu0 0
        %1073 = vmatprep.subr.bf16.mxu0 0
        %1074 = vmatpush2.bf16.msra.mxu0 0
        %1075 = vmatprep.subr.bf16.mxu0 0
        %1076 = vmatpush2.bf16.msra.mxu0 0
        %1077 = vmatprep.subr.bf16.mxu0 0
        %1078 = vmatpush2.bf16.msra.mxu0 0
        %1079 = vmatprep.subr.bf16.mxu0 0
        %1080 = vmatpush2.bf16.msra.mxu0 0
        %1081 = vmatprep.subr.bf16.mxu0 0
        %1082 = vmatpush2.bf16.msra.mxu0 0
        %1083 = vmatprep.subr.bf16.mxu0 0
        %1084 = vmatpush2.bf16.msra.mxu0 0
        %1085 = vmatprep.mubr.bf16.mxu0 0
        %1086 = vmatmul.mubr.bf16.gmra.mxu0 %v1051
        %v1087 = vpop.f32.mrf.mxu0
        %v1088 = vadd.f32 %v1036, %v1087
        %v1089 = vpop.f32.mrf.mxu0
        %v1090 = vpop.f32.mrf.mxu0
        %v1091 = vpop.f32.mrf.mxu0
        %1092 = vdwg.mxu0
        %v1093 = vld [vmem:[%s401] sm:$0xf]
        %v1094 = vunpack.c.l.bf16 %v1093
        %v1095 = vadd.f32 %v1094, %v1088
        %v1096 = vsel %vm436, %v1095, 0.0
        %1097 = vadd.xlane.f32.xlu0 %v1096
        %v1098 = vpop.xlane.xlu0 %1097
        %v1099 = vrcp.pop 32.0
        %v1100 = vmul.f32 %v1098, %v1099
        %v1101 = vsub.f32 %v1095, %v1100
        %v1102 = vmul.f32 %v1101, %v1101
        %v1103 = vsel %vm436, %v1102, 0.0
        %1104 = vadd.xlane.f32.xlu0 %v1103
        %v1105 = vpop.xlane.xlu0 %1104
        %v1106 = vmul.f32 %v1105, %v1099
        %v1107 = vadd.f32 %v1106, 1e-05
        %v1108 = vrsqrt.pop %v1107
        %v1109 = vmul.f32 %v1101, %v1108
        %v1110 = vld [vmem:[%s8] sm:$0x1]
        %v1112 = vlaneseq
        %v1113 = vshrl.u32 %v1112, 7
        %v1114 = vsub.s32 0, %v1113
        %v1115 = vrot.slane %v1110, %v1114
        %v1117 = vmul.f32 %v1109, %v1115
        %v1118 = vld [vmem:[%s9] sm:$0x1]
        %v1120 = vlaneseq
        %v1121 = vshrl.u32 %v1120, 7
        %v1122 = vsub.s32 0, %v1121
        %v1123 = vrot.slane %v1118, %v1122
        %v1125 = vadd.f32 %v1117, %v1123
        %v1126 = vpack.c.bf16 %v1125, %v1125
        %vm1127 = vcmask 257024
        %1128 = vst.msk [vmem:[%s409] sm:$0xf] %vm1127, %v1126
        %p1129 = scmp.lt.s32.totalorder %s26, 1
        %s1130 = scalar_select %p1129, %s26, 1
        %s1131 = smul.addr %s1130, 4
        %s1132 = scalar_lea.vmem %s10, %s1131
        %s1133 = sand.u32 %s280, 1
        %s1134 = scalar_lea.sflag [#allocation4], %s1133
        %s1135 = sand.u32 %s280, 1
        %s1136 = smul.addr %s1135, 32
        %s1137 = scalar_lea.vmem [#allocation3], %s1136
        // Predicated region
        $region61: #{nlg_bert_forward.10} parent=59 // pred_check
          %p1138 = pneg %p264
        $region62: #{nlg_bert_forward.10} parent=59 // pred_check_branch
          %1140 = sbr.rel (%p1138) target = $region64
        $region63: #{nlg_bert_forward.10} parent=59 // pred_region
          _
        $region64: #{nlg_bert_forward.10} parent=59 // pred_fallthru
          _
        // Predicated region
        $region65: #{nlg_bert_forward.10} parent=59 // pred_check
          %p1141 = pneg %p290
        $region66: #{nlg_bert_forward.10} parent=59 // pred_check_branch
          %1143 = sbr.rel (%p1141) target = $region68
        $region67: #{nlg_bert_forward.10} parent=59 // pred_region
          %s1145 = ssub.s32 512, 512
          %1146 = vsyncadd %s1134, %s1145
          %s1147 = smul.addr %s26, 4
          %s1148 = smul.addr %s1147, 128
          %s1149 = scalar_lea.hbm %s11, %s1148
          %s1150 = sshll.u32 %s1137, 4
          %s1151 = int_to_ptr.vmem [resolvable:$true] %s1150
          %1156 = dma.vmem_to_hbm [thread:$0]  %s1151, 512, %s1149, %s1134, 128, 128, 8
        $region68: #{nlg_bert_forward.10} parent=59 // pred_fallthru
          _
      $region60: #{nlg_bert_forward.10} parent=5 // pred_fallthru
        _
      %p1157 = scmp.le.s32.totalorder 2, %s21
      // Predicated region
      $region69: #{nlg_bert_forward.10} parent=5 // pred_check
        %p1158 = pneg %p1157
      $region70: #{nlg_bert_forward.10} parent=5 // pred_check_branch
        %1160 = sbr.rel (%p1158) target = $region72
      $region71: #{nlg_bert_forward.10} parent=5 // pred_region
        %s1161 = ssub.s32 %s21, 2
        // Predicated region
        $region73: #{nlg_bert_forward.10} parent=71 // pred_check
          %p1162 = pneg %p270
        $region74: #{nlg_bert_forward.10} parent=71 // pred_check_branch
          %1164 = sbr.rel (%p1162) target = $region76
        $region75: #{nlg_bert_forward.10} parent=71 // pred_region
          %p1165 = scmp.lt.s32.totalorder %s27, 1
          %s1166 = scalar_select %p1165, %s27, 1
          %s1167 = smul.addr %s1166, 4
          %s1168 = scalar_lea.vmem %s10, %s1167
        $region76: #{nlg_bert_forward.10} parent=71 // pred_fallthru
          _
        // Predicated region
        $region77: #{nlg_bert_forward.10} parent=71 // pred_check
          %p1169 = pneg %p296
        $region78: #{nlg_bert_forward.10} parent=71 // pred_check_branch
          %1171 = sbr.rel (%p1169) target = $region80
        $region79: #{nlg_bert_forward.10} parent=71 // pred_region
          %s1172 = sand.u32 %s281, 1
          %s1173 = scalar_lea.sflag [#allocation4], %s1172
          %s1174 = sand.u32 %s281, 1
          %s1175 = smul.addr %s1174, 32
          %s1176 = scalar_lea.vmem [#allocation3], %s1175
          %1177 = dma.done %s1173, 512
        $region80: #{nlg_bert_forward.10} parent=71 // pred_fallthru
          _
      $region72: #{nlg_bert_forward.10} parent=5 // pred_fallthru
        _
    $region6: #{nlg_bert_forward.10} parent=1 // loop_footer
      %s25 = sadd.s32 1, %s21
    $region7: #{nlg_bert_forward.10} parent=1 // loop_footer_branch
      %20 = sbr.rel target = $region3
    $region8: #{nlg_bert_forward.10} parent=1 // loop_exit
      _
    %1178 = vsyncpa [#allocation4], 1
    %s1179 = scalar_lea.sflag [#allocation4], 1
    %1180 = vsyncpa %s1179, 1

</llo_original>
